<compile_context>
chip_gen: v6e
topology: v6e:2x2x1
jax: 0.10.0
libtpu: 0.0.40
codegen_flags: <defaults>
</compile_context>

<pallas_src>
import math
import jax
import jax.numpy as jnp
from jax import lax
from jax.experimental import pallas as pl
from jax.experimental.pallas import tpu as pltpu


# ----------------------------------------------------------------------------
# Small sizing helpers.
# ----------------------------------------------------------------------------
def _round_up(x, m):
    return -(-x // m) * m


def _pick_batch_block(n_pad, target=64):
    """n_pad is a multiple of 8; pick a batch tile that divides it."""
    if n_pad <= max(target, 8):
        return n_pad
    for nb in range(target, 7, -8):
        if n_pad % nb == 0:
            return nb
    return 8


def _pick_time_chunk(L, target=32):
    """Time-chunk size for the hoisted projection (>=2 chunks when possible)."""
    if L <= 4:
        return L
    cap = max(1, min(target, L // 2))
    for tc in range(cap, 0, -1):
        if L % tc == 0:
            return tc
    return L


def _pick_unroll(Tc, Nb, H):
    """Size the time-loop unroll to the 64-vreg file: 3 carries (h, c, last_h)
    stay live, each unrolled step adds ~8 (Nb, H)-f32 tiles of temporaries
    (4H gates + c_new + h_new + slack).  Keep headroom for weights/addresses."""
    vpt = (_round_up(Nb, 8) // 8) * (_round_up(H, 128) // 128)
    u = max(1, (48 - 3 * vpt) // (8 * vpt))
    u = min(u, Tc)
    while Tc % u:
        u -= 1
    return u


def _vmem_limit_bytes():
    """~48 MiB on v7x (64 MiB physical), ~100 MiB on v5e/v6e (128 MiB)."""
    try:
        phys = int(pltpu.get_tpu_info().vmem_capacity_bytes)
    except Exception:
        phys = 128 * 1024 * 1024
    return int(max(min(phys - 16 * 1024 * 1024, 100 * 1024 * 1024),
                   32 * 1024 * 1024))


# ----------------------------------------------------------------------------
# Fused kernel: num_layers stacked LSTM layers + last-valid-step gather + FC.
# ----------------------------------------------------------------------------
def make_fused_lstm_kernel(num_layers, L, Nb, H, Tc, unroll, mm_dtype, n_seq):
    """Kernel ref order:
         x_ref     : (L, Nb, D)   time-major input block (mm_dtype)
         len_ref   : (Nb, 1)      int32 sequence lengths
         [w_ih (K,4H), w_hh (H,4H), b (1,4H)] * num_layers   (gate order i,f,o,g)
         w_fc_ref  : (H, O_pad)   mm_dtype
         b_fc_ref  : (1, O_pad)   f32
         out_ref   : (Nb, O_pad)  f32
         xp_ref    : (2, Tc, Nb, 4H) f32 scratch — double-buffered projection
         seq_refs  : (L, Nb, H)   mm_dtype scratch — inter-layer sequences
    """
    G = 4 * H
    n_chunks = L // Tc

    def kernel(*refs):
        x_ref, len_ref = refs[0], refs[1]
        pos = 2
        layer_refs = []
        for _ in range(num_layers):
            layer_refs.append((refs[pos], refs[pos + 1], refs[pos + 2]))
            pos += 3
        w_fc_ref, b_fc_ref = refs[pos], refs[pos + 1]
        out_ref = refs[pos + 2]
        xp_ref = refs[pos + 3]
        seq_refs = list(refs[pos + 4: pos + 4 + n_seq])

        # Zero-padding-aware last valid index, hoisted & broadcast ONCE
        # (jnp broadcasts are not CSE'd under unroll).  Valid lengths: [1, L].
        last_idx = jnp.broadcast_to(len_ref[...] - 1, (Nb, H))      # int32
        last_h = jnp.zeros((Nb, H), jnp.float32)

        for l in range(num_layers):
            w_ih_ref, w_hh_ref, b_ref = layer_refs[l]
            w_ih = w_ih_ref[...]                       # (K, 4H) mm_dtype
            w_hh = w_hh_ref[...]                       # (H, 4H) mm_dtype
            bias = b_ref[...]                          # (1, 4H) f32
            is_last = (l == num_layers - 1)
            inp_ref = x_ref if l == 0 else seq_refs[(l - 1) % n_seq]
            out_seq = None if is_last else seq_refs[l % n_seq]

            # TODO(synk): on v5e, prefetch layer l+1's weights with a manual
            # make_async_copy double buffer under this layer's recurrence.

            # Prologue: project chunk 0 into xp slot 0 (off the serial path).
            def proj0(tl, _, _inp=inp_ref, _w=w_ih, _b=bias):
                xp_ref[0, tl] = (jnp.dot(_inp[tl], _w,
                                         preferred_element_type=jnp.float32)
                                 + _b)
                return 0
            lax.fori_loop(0, Tc, proj0, 0, unroll=unroll)

            def make_step(t0, slot, do_proj, _inp=inp_ref, _w_ih=w_ih,
                          _w_hh=w_hh, _b=bias, _out=out_seq, _last=is_last):
                def step(tl, carry):
                    h, c_st, lh = carry
                    if do_proj:
                        # Next chunk's input projection (pure MXU) — no data
                        # dependence on the h->c->h chain, so it can hide
                        # under this chunk's EUP/VPU-bound recurrence.
                        xt = _inp[t0 + Tc + tl]
                        xp_ref[1 - slot, tl] = (
                            jnp.dot(xt, _w_ih,
                                    preferred_element_type=jnp.float32) + _b)
                    gates = xp_ref[slot, tl] + jnp.dot(
                        h, _w_hh, preferred_element_type=jnp.float32)
                    # Gate order (i, f, o, g): one sigmoid over contiguous 3H.
                    sg = jax.nn.sigmoid(gates[:, :3 * H])
                    i_g = sg[:, 0 * H:1 * H]
                    f_g = sg[:, 1 * H:2 * H]
                    o_g = sg[:, 2 * H:3 * H]
                    g_g = jnp.tanh(gates[:, 3 * H:])
                    c_new = f_g * c_st + i_g * g_g
                    h_f32 = o_g * jnp.tanh(c_new)
                    h_new = h_f32.astype(mm_dtype)
                    if _last:
                        # Capture h at t == lengths-1 (padding-aware).
                        lh = jnp.where(last_idx == t0 + tl, h_f32, lh)
                    else:
                        _out[t0 + tl] = h_new
                    return (h_new, c_new, lh)
                return step

            h = jnp.zeros((Nb, H), mm_dtype)
            c_st = jnp.zeros((Nb, H), jnp.float32)
            for c_idx in range(n_chunks):
                slot = c_idx % 2
                do_proj = (c_idx + 1) < n_chunks
                h, c_st, last_h = lax.fori_loop(
                    0, Tc, make_step(c_idx * Tc, slot, do_proj),
                    (h, c_st, last_h), unroll=unroll)

        # Head: dropout is identity in eval mode, then FC (lane-padded output).
        # TODO(synk): training-mode dropout (p=0.2) not implemented.
        out_ref[...] = (jnp.dot(last_h.astype(mm_dtype), w_fc_ref[...],
                                preferred_element_type=jnp.float32)
                        + b_fc_ref[...])

    return kernel


# ----------------------------------------------------------------------------
# Wrapper: single fused pallas_call for the whole forward pass.
# ----------------------------------------------------------------------------
def basic_lstm_forward(x_nld, lengths, params, *, matmul_dtype=jnp.bfloat16):
    """Fused BasicLSTM forward.  lengths must be in [1, L] (PyTorch padded-
    sequence style); lengths == 0 is not supported (returns zeros here)."""
    x_nld = jnp.asarray(x_nld, jnp.float32)
    N, L, D = x_nld.shape
    layers = params["layers"]
    num_layers = len(layers)
    H = layers[0][1].shape[0]
    O = params["w_fc"].shape[1]

    lengths = jnp.asarray(lengths).reshape(-1).astype(jnp.int32)

    # Pad batch to a multiple of 8 so every (Nb, .) tile is sublane-aligned;
    # pad rows get length 1 and are sliced away at the end.
    N_pad = max(8, _round_up(N, 8))
    if N_pad != N:
        x_nld = jnp.pad(x_nld, ((0, N_pad - N), (0, 0), (0, 0)))
        lengths = jnp.pad(lengths, (0, N_pad - N), constant_values=1)

    # Lane-dense final store: pad FC output columns to a multiple of 128.
    O_pad = _round_up(O, 128)
    w_fc = jnp.pad(params["w_fc"], ((0, 0), (0, O_pad - O)))
    b_fc = jnp.pad(params["b_fc"], ((0, 0), (0, O_pad - O)))
    # TODO(synk): for real models with H not a multiple of 128, also pad H so
    # per-gate extraction is lane-dense.

    Nb = _pick_batch_block(N_pad)
    n_batch = N_pad // Nb
    Tc = _pick_time_chunk(L)
    unroll = _pick_unroll(Tc, Nb, H)
    n_seq = min(2, max(num_layers - 1, 0))   # ping-pong inter-layer buffers

    # Time-major (L, N_pad, D); matmul operands in mm_dtype (bf16 by default),
    # f32 accumulation inside the kernel.
    x_lnd = jnp.transpose(x_nld, (1, 0, 2)).astype(matmul_dtype)
    lengths2d = lengths.reshape(N_pad, 1)

    # PyTorch gate order (i, f, g, o) -> (i, f, o, g): sigmoid covers the
    # contiguous first 3H columns. Column permutation is free in the wrapper.
    def perm_gates(w):
        return jnp.concatenate(
            [w[:, 0:H], w[:, H:2 * H], w[:, 3 * H:4 * H], w[:, 2 * H:3 * H]],
            axis=1)

    flat_args = [x_lnd, lengths2d]
    in_specs = [
        pl.BlockSpec((L, Nb, D), lambda b: (0, b, 0)),
        pl.BlockSpec((Nb, 1), lambda b: (b, 0)),
    ]
    for (w_ih, w_hh, bias) in layers:
        w_ih_p = perm_gates(w_ih).astype(matmul_dtype)
        w_hh_p = perm_gates(w_hh).astype(matmul_dtype)
        bias_p = perm_gates(bias).astype(jnp.float32)
        flat_args += [w_ih_p, w_hh_p, bias_p]
        in_specs += [
            pl.BlockSpec(w_ih_p.shape, lambda b: (0, 0)),
            pl.BlockSpec(w_hh_p.shape, lambda b: (0, 0)),
            pl.BlockSpec(bias_p.shape, lambda b: (0, 0)),
        ]
    w_fc_p = w_fc.astype(matmul_dtype)
    b_fc_p = b_fc.astype(jnp.float32)
    flat_args += [w_fc_p, b_fc_p]
    in_specs += [
        pl.BlockSpec(w_fc_p.shape, lambda b: (0, 0)),
        pl.BlockSpec(b_fc_p.shape, lambda b: (0, 0)),
    ]

    scratch_shapes = [pltpu.VMEM((2, Tc, Nb, 4 * H), jnp.float32)]
    scratch_shapes += [pltpu.VMEM((L, Nb, H), matmul_dtype)
                       for _ in range(n_seq)]

    kernel = make_fused_lstm_kernel(num_layers, L, Nb, H, Tc, unroll,
                                    matmul_dtype, n_seq)

    out = pl.pallas_call(
        kernel,
        out_shape=jax.ShapeDtypeStruct((N_pad, O_pad), jnp.float32),
        grid=(n_batch,),
        in_specs=in_specs,
        out_specs=pl.BlockSpec((Nb, O_pad), lambda b: (b, 0)),
        scratch_shapes=scratch_shapes,
        compiler_params=pltpu.CompilerParams(
            dimension_semantics=("parallel",),
            vmem_limit_bytes=_vmem_limit_bytes(),
        ),
    )(*flat_args)

    return out[:N, :O]


# ----------------------------------------------------------------------------
# Pure-JAX reference (same math, PyTorch gate order, f32 everywhere).
# ----------------------------------------------------------------------------
def reference_forward(x_nld, lengths, params):
    x = jnp.transpose(x_nld.astype(jnp.float32), (1, 0, 2))
    L, N, _ = x.shape
    for (w_ih, w_hh, b) in params["layers"]:
        H = w_hh.shape[0]
        h = jnp.zeros((N, H), jnp.float32)
        c = jnp.zeros((N, H), jnp.float32)
        ys = []
        for t in range(L):
            gates = x[t] @ w_ih + h @ w_hh + b
            i_g = jax.nn.sigmoid(gates[:, 0 * H:1 * H])
            f_g = jax.nn.sigmoid(gates[:, 1 * H:2 * H])
            g_g = jnp.tanh(gates[:, 2 * H:3 * H])
            o_g = jax.nn.sigmoid(gates[:, 3 * H:4 * H])
            c = f_g * c + i_g * g_g
            h = o_g * jnp.tanh(c)
            ys.append(h)
        x = jnp.stack(ys, axis=0)
    last = x[lengths - 1, jnp.arange(N)]                       # (N, H)
    return last @ params["w_fc"] + params["b_fc"]


# ----------------------------------------------------------------------------
# Deterministic parameter init (PyTorch-style uniform(-1/sqrt(H), 1/sqrt(H))).
# ----------------------------------------------------------------------------
def init_params(key, input_dim, rnn_size, output_dim, num_layers):
    H = rnn_size
    bound = 1.0 / math.sqrt(H)
    layers = []
    for layer in range(num_layers):
        din = input_dim if layer == 0 else H
        key, k1, k2, k3, k4 = jax.random.split(key, 5)
        w_ih = jax.random.uniform(k1, (din, 4 * H), jnp.float32, -bound, bound)
        w_hh = jax.random.uniform(k2, (H, 4 * H), jnp.float32, -bound, bound)
        b_ih = jax.random.uniform(k3, (1, 4 * H), jnp.float32, -bound, bound)
        b_hh = jax.random.uniform(k4, (1, 4 * H), jnp.float32, -bound, bound)
        layers.append((w_ih, w_hh, b_ih + b_hh))
    feat = H  # unidirectional
    fb = 1.0 / math.sqrt(feat)
    key, k1, k2 = jax.random.split(key, 3)
    w_fc = jax.random.uniform(k1, (feat, output_dim), jnp.float32, -fb, fb)
    b_fc = jax.random.uniform(k2, (1, output_dim), jnp.float32, -fb, fb)
    return {"layers": layers, "w_fc": w_fc, "b_fc": b_fc}


if __name__ == "__main__":
    N, L, D = 2, 8, 16           # batch, sequence, feature
    H, O, NUM_LAYERS = 32, 4, 2  # rnn_size, output_dim, num_layers

    key = jax.random.PRNGKey(0)
    key, kx = jax.random.split(key)
    x = jax.random.normal(kx, (N, L, D), jnp.float32)
    lengths = jnp.array([5, 8], dtype=jnp.int32)

    params = init_params(key, D, H, O, NUM_LAYERS)
    ref = reference_forward(x, lengths, params)

    # Exact-math check (f32 matmul operands).
    out_f32 = jax.block_until_ready(
        basic_lstm_forward(x, lengths, params, matmul_dtype=jnp.float32))
    assert out_f32.shape == (N, O)
    assert jnp.allclose(out_f32, ref, rtol=1e-4, atol=1e-4), (out_f32, ref)

    # Default fast path: bf16 matmul operands, f32 accumulation / cell state.
    out = jax.block_until_ready(basic_lstm_forward(x, lengths, params))
    assert out.shape == (N, O)
    assert jnp.allclose(out, ref, rtol=5e-2, atol=5e-2), (out, ref)

    print("KERNEL_OK")
</pallas_src>

<mosaic_0001>
module attributes {stable_mosaic.version = 11 : i64} {
  func.func @kernel(%arg0: i32, %arg1: memref<8x8x16xf32, #tpu.memory_space<vmem>>, %arg2: memref<8x1xi32, #tpu.memory_space<vmem>>, %arg3: memref<16x128xf32, #tpu.memory_space<vmem>>, %arg4: memref<32x128xf32, #tpu.memory_space<vmem>>, %arg5: memref<1x128xf32, #tpu.memory_space<vmem>>, %arg6: memref<32x128xf32, #tpu.memory_space<vmem>>, %arg7: memref<32x128xf32, #tpu.memory_space<vmem>>, %arg8: memref<1x128xf32, #tpu.memory_space<vmem>>, %arg9: memref<32x128xf32, #tpu.memory_space<vmem>>, %arg10: memref<1x128xf32, #tpu.memory_space<vmem>>, %arg11: memref<8x128xf32, #tpu.memory_space<vmem>>, %arg12: memref<2x4x8x128xf32, #tpu.memory_space<vmem>>, %arg13: memref<8x8x32xf32, #tpu.memory_space<vmem>>) attributes {dimension_semantics = [#tpu.dimension_semantics<parallel>], iteration_bounds = array<i64: 1>, scalar_prefetch = 0 : i64, scratch_operands = 2 : i64, tpu.core_type = #tpu.core_type<tc>, window_params = [{transform_indices = @transform_0, window_bounds = array<i64: 8, 8, 16>}, {transform_indices = @transform_1, window_bounds = array<i64: 8, 1>}, {pipeline_mode = #tpu.pipeline_mode<synchronous>, transform_indices = @transform_2, window_bounds = array<i64: 16, 128>}, {pipeline_mode = #tpu.pipeline_mode<synchronous>, transform_indices = @transform_3, window_bounds = array<i64: 32, 128>}, {pipeline_mode = #tpu.pipeline_mode<synchronous>, transform_indices = @transform_4, window_bounds = array<i64: 1, 128>}, {pipeline_mode = #tpu.pipeline_mode<synchronous>, transform_indices = @transform_5, window_bounds = array<i64: 32, 128>}, {pipeline_mode = #tpu.pipeline_mode<synchronous>, transform_indices = @transform_6, window_bounds = array<i64: 32, 128>}, {pipeline_mode = #tpu.pipeline_mode<synchronous>, transform_indices = @transform_7, window_bounds = array<i64: 1, 128>}, {pipeline_mode = #tpu.pipeline_mode<synchronous>, transform_indices = @transform_8, window_bounds = array<i64: 32, 128>}, {pipeline_mode = #tpu.pipeline_mode<synchronous>, transform_indices = @transform_9, window_bounds = array<i64: 1, 128>}, {transform_indices = @transform_10, window_bounds = array<i64: 8, 128>}]} {
    %c0 = arith.constant 0 : index
    %c0_0 = arith.constant 0 : index
    %0 = vector.load %arg2[%c0, %c0_0] : memref<8x1xi32, #tpu.memory_space<vmem>>, vector<8x1xi32>
    %c1_i32 = arith.constant 1 : i32
    %1 = vector.broadcast %c1_i32 : i32 to vector<8x1xi32>
    %2 = arith.subi %0, %1 : vector<8x1xi32>
    %3 = vector.shape_cast %2 : vector<8x1xi32> to vector<8x1xi32>
    %4 = vector.broadcast %3 : vector<8x1xi32> to vector<8x32xi32>
    %cst = arith.constant 0.000000e+00 : f32
    %5 = vector.broadcast %cst : f32 to vector<8x32xf32>
    %c0_1 = arith.constant 0 : index
    %c0_2 = arith.constant 0 : index
    %6 = vector.load %arg3[%c0_1, %c0_2] : memref<16x128xf32, #tpu.memory_space<vmem>>, vector<16x128xf32>
    %c0_3 = arith.constant 0 : index
    %c0_4 = arith.constant 0 : index
    %7 = vector.load %arg4[%c0_3, %c0_4] : memref<32x128xf32, #tpu.memory_space<vmem>>, vector<32x128xf32>
    %c0_5 = arith.constant 0 : index
    %c0_6 = arith.constant 0 : index
    %8 = vector.load %arg5[%c0_5, %c0_6] : memref<1x128xf32, #tpu.memory_space<vmem>>, vector<1x128xf32>
    %c0_i32 = arith.constant 0 : i32
    %9 = arith.index_cast %c0_i32 : i32 to index
    %c0_7 = arith.constant 0 : index
    %c0_8 = arith.constant 0 : index
    %10 = vector.load %arg1[%9, %c0_7, %c0_8] : memref<8x8x16xf32, #tpu.memory_space<vmem>>, vector<1x8x16xf32>
    %11 = vector.shape_cast %10 : vector<1x8x16xf32> to vector<8x16xf32>
    %cst_9 = arith.constant dense<0.000000e+00> : vector<8x128xf32>
    %12 = tpu.matmul %11, %6, %cst_9 {dimension_numbers = #tpu.dot_dimension_numbers<[1], [0], [0], [1], [0, 0, 1, 1], [], []>} : vector<8x16xf32>, vector<16x128xf32>, vector<8x128xf32> -> vector<8x128xf32>
    %13 = vector.broadcast %8 : vector<1x128xf32> to vector<8x128xf32>
    %14 = arith.addf %12, %13 : vector<8x128xf32>
    %c0_10 = arith.constant 0 : index
    %15 = arith.index_cast %c0_i32 : i32 to index
    %c0_11 = arith.constant 0 : index
    %c0_12 = arith.constant 0 : index
    %16 = vector.load %arg12[%c0_10, %15, %c0_11, %c0_12] : memref<2x4x8x128xf32, #tpu.memory_space<vmem>>, vector<1x1x8x128xf32>
    %17 = vector.shape_cast %16 : vector<1x1x8x128xf32> to vector<8x128xf32>
    %18 = vector.shape_cast %14 : vector<8x128xf32> to vector<1x1x8x128xf32>
    tpu.vector_store %arg12[%c0_10, %15, %c0_11, %c0_12], %18 {strides = array<i32>} : memref<2x4x8x128xf32, #tpu.memory_space<vmem>>, vector<1x1x8x128xf32>,
    %c1_i32_13 = arith.constant 1 : i32
    %19 = arith.index_cast %c1_i32_13 : i32 to index
    %c0_14 = arith.constant 0 : index
    %c0_15 = arith.constant 0 : index
    %20 = vector.load %arg1[%19, %c0_14, %c0_15] : memref<8x8x16xf32, #tpu.memory_space<vmem>>, vector<1x8x16xf32>
    %21 = vector.shape_cast %20 : vector<1x8x16xf32> to vector<8x16xf32>
    %cst_16 = arith.constant dense<0.000000e+00> : vector<8x128xf32>
    %22 = tpu.matmul %21, %6, %cst_16 {dimension_numbers = #tpu.dot_dimension_numbers<[1], [0], [0], [1], [0, 0, 1, 1], [], []>} : vector<8x16xf32>, vector<16x128xf32>, vector<8x128xf32> -> vector<8x128xf32>
    %23 = vector.broadcast %8 : vector<1x128xf32> to vector<8x128xf32>
    %24 = arith.addf %22, %23 : vector<8x128xf32>
    %c0_17 = arith.constant 0 : index
    %25 = arith.index_cast %c1_i32_13 : i32 to index
    %c0_18 = arith.constant 0 : index
    %c0_19 = arith.constant 0 : index
    %26 = vector.load %arg12[%c0_17, %25, %c0_18, %c0_19] : memref<2x4x8x128xf32, #tpu.memory_space<vmem>>, vector<1x1x8x128xf32>
    %27 = vector.shape_cast %26 : vector<1x1x8x128xf32> to vector<8x128xf32>
    %28 = vector.shape_cast %24 : vector<8x128xf32> to vector<1x1x8x128xf32>
    tpu.vector_store %arg12[%c0_17, %25, %c0_18, %c0_19], %28 {strides = array<i32>} : memref<2x4x8x128xf32, #tpu.memory_space<vmem>>, vector<1x1x8x128xf32>,
    %c2_i32 = arith.constant 2 : i32
    %29 = arith.index_cast %c2_i32 : i32 to index
    %c0_20 = arith.constant 0 : index
    %c0_21 = arith.constant 0 : index
    %30 = vector.load %arg1[%29, %c0_20, %c0_21] : memref<8x8x16xf32, #tpu.memory_space<vmem>>, vector<1x8x16xf32>
    %31 = vector.shape_cast %30 : vector<1x8x16xf32> to vector<8x16xf32>
    %cst_22 = arith.constant dense<0.000000e+00> : vector<8x128xf32>
    %32 = tpu.matmul %31, %6, %cst_22 {dimension_numbers = #tpu.dot_dimension_numbers<[1], [0], [0], [1], [0, 0, 1, 1], [], []>} : vector<8x16xf32>, vector<16x128xf32>, vector<8x128xf32> -> vector<8x128xf32>
    %33 = vector.broadcast %8 : vector<1x128xf32> to vector<8x128xf32>
    %34 = arith.addf %32, %33 : vector<8x128xf32>
    %c0_23 = arith.constant 0 : index
    %35 = arith.index_cast %c2_i32 : i32 to index
    %c0_24 = arith.constant 0 : index
    %c0_25 = arith.constant 0 : index
    %36 = vector.load %arg12[%c0_23, %35, %c0_24, %c0_25] : memref<2x4x8x128xf32, #tpu.memory_space<vmem>>, vector<1x1x8x128xf32>
    %37 = vector.shape_cast %36 : vector<1x1x8x128xf32> to vector<8x128xf32>
    %38 = vector.shape_cast %34 : vector<8x128xf32> to vector<1x1x8x128xf32>
    tpu.vector_store %arg12[%c0_23, %35, %c0_24, %c0_25], %38 {strides = array<i32>} : memref<2x4x8x128xf32, #tpu.memory_space<vmem>>, vector<1x1x8x128xf32>,
    %c3_i32 = arith.constant 3 : i32
    %39 = arith.index_cast %c3_i32 : i32 to index
    %c0_26 = arith.constant 0 : index
    %c0_27 = arith.constant 0 : index
    %40 = vector.load %arg1[%39, %c0_26, %c0_27] : memref<8x8x16xf32, #tpu.memory_space<vmem>>, vector<1x8x16xf32>
    %41 = vector.shape_cast %40 : vector<1x8x16xf32> to vector<8x16xf32>
    %cst_28 = arith.constant dense<0.000000e+00> : vector<8x128xf32>
    %42 = tpu.matmul %41, %6, %cst_28 {dimension_numbers = #tpu.dot_dimension_numbers<[1], [0], [0], [1], [0, 0, 1, 1], [], []>} : vector<8x16xf32>, vector<16x128xf32>, vector<8x128xf32> -> vector<8x128xf32>
    %43 = vector.broadcast %8 : vector<1x128xf32> to vector<8x128xf32>
    %44 = arith.addf %42, %43 : vector<8x128xf32>
    %c0_29 = arith.constant 0 : index
    %45 = arith.index_cast %c3_i32 : i32 to index
    %c0_30 = arith.constant 0 : index
    %c0_31 = arith.constant 0 : index
    %46 = vector.load %arg12[%c0_29, %45, %c0_30, %c0_31] : memref<2x4x8x128xf32, #tpu.memory_space<vmem>>, vector<1x1x8x128xf32>
    %47 = vector.shape_cast %46 : vector<1x1x8x128xf32> to vector<8x128xf32>
    %48 = vector.shape_cast %44 : vector<8x128xf32> to vector<1x1x8x128xf32>
    tpu.vector_store %arg12[%c0_29, %45, %c0_30, %c0_31], %48 {strides = array<i32>} : memref<2x4x8x128xf32, #tpu.memory_space<vmem>>, vector<1x1x8x128xf32>,
    %c4_i32 = arith.constant 4 : i32
    %cst_32 = arith.constant 0.000000e+00 : f32
    %49 = vector.broadcast %cst_32 : f32 to vector<8x32xf32>
    %cst_33 = arith.constant 0.000000e+00 : f32
    %50 = vector.broadcast %cst_33 : f32 to vector<8x32xf32>
    %c0_i32_34 = arith.constant 0 : i32
    %c4_i32_35 = arith.constant 4 : i32
    %51 = arith.addi %c4_i32_35, %c0_i32_34 : i32
    %52 = arith.index_cast %51 : i32 to index
    %c0_36 = arith.constant 0 : index
    %c0_37 = arith.constant 0 : index
    %53 = vector.load %arg1[%52, %c0_36, %c0_37] : memref<8x8x16xf32, #tpu.memory_space<vmem>>, vector<1x8x16xf32>
    %54 = vector.shape_cast %53 : vector<1x8x16xf32> to vector<8x16xf32>
    %cst_38 = arith.constant dense<0.000000e+00> : vector<8x128xf32>
    %55 = tpu.matmul %54, %6, %cst_38 {dimension_numbers = #tpu.dot_dimension_numbers<[1], [0], [0], [1], [0, 0, 1, 1], [], []>} : vector<8x16xf32>, vector<16x128xf32>, vector<8x128xf32> -> vector<8x128xf32>
    %56 = vector.broadcast %8 : vector<1x128xf32> to vector<8x128xf32>
    %57 = arith.addf %55, %56 : vector<8x128xf32>
    %c1 = arith.constant 1 : index
    %58 = arith.index_cast %c0_i32_34 : i32 to index
    %c0_39 = arith.constant 0 : index
    %c0_40 = arith.constant 0 : index
    %59 = vector.load %arg12[%c1, %58, %c0_39, %c0_40] : memref<2x4x8x128xf32, #tpu.memory_space<vmem>>, vector<1x1x8x128xf32>
    %60 = vector.shape_cast %59 : vector<1x1x8x128xf32> to vector<8x128xf32>
    %61 = vector.shape_cast %57 : vector<8x128xf32> to vector<1x1x8x128xf32>
    tpu.vector_store %arg12[%c1, %58, %c0_39, %c0_40], %61 {strides = array<i32>} : memref<2x4x8x128xf32, #tpu.memory_space<vmem>>, vector<1x1x8x128xf32>,
    %c0_41 = arith.constant 0 : index
    %62 = arith.index_cast %c0_i32_34 : i32 to index
    %c0_42 = arith.constant 0 : index
    %c0_43 = arith.constant 0 : index
    %63 = vector.load %arg12[%c0_41, %62, %c0_42, %c0_43] : memref<2x4x8x128xf32, #tpu.memory_space<vmem>>, vector<1x1x8x128xf32>
    %64 = vector.shape_cast %63 : vector<1x1x8x128xf32> to vector<8x128xf32>
    %cst_44 = arith.constant dense<0.000000e+00> : vector<8x128xf32>
    %65 = tpu.matmul %49, %7, %cst_44 {dimension_numbers = #tpu.dot_dimension_numbers<[1], [0], [0], [1], [0, 0, 1, 1], [], []>} : vector<8x32xf32>, vector<32x128xf32>, vector<8x128xf32> -> vector<8x128xf32>
    %66 = arith.addf %64, %65 : vector<8x128xf32>
    %67 = vector.extract_strided_slice %66 {offsets = [0, 0], sizes = [8, 96], strides = [1, 1]} : vector<8x128xf32> to vector<8x96xf32>
    %68 = arith.negf %67 : vector<8x96xf32>
    %69 = math.exp %68 : vector<8x96xf32>
    %cst_45 = arith.constant 1.000000e+00 : f32
    %70 = vector.broadcast %cst_45 : f32 to vector<8x96xf32>
    %71 = arith.addf %70, %69 : vector<8x96xf32>
    %72 = arith.divf %70, %71 : vector<8x96xf32>
    %73 = vector.extract_strided_slice %72 {offsets = [0, 0], sizes = [8, 32], strides = [1, 1]} : vector<8x96xf32> to vector<8x32xf32>
    %74 = vector.extract_strided_slice %72 {offsets = [0, 32], sizes = [8, 32], strides = [1, 1]} : vector<8x96xf32> to vector<8x32xf32>
    %75 = vector.extract_strided_slice %72 {offsets = [0, 64], sizes = [8, 32], strides = [1, 1]} : vector<8x96xf32> to vector<8x32xf32>
    %76 = vector.extract_strided_slice %66 {offsets = [0, 96], sizes = [8, 32], strides = [1, 1]} : vector<8x128xf32> to vector<8x32xf32>
    %77 = math.tanh %76 : vector<8x32xf32>
    %78 = arith.mulf %74, %50 : vector<8x32xf32>
    %79 = arith.mulf %73, %77 : vector<8x32xf32>
    %80 = arith.addf %78, %79 : vector<8x32xf32>
    %81 = math.tanh %80 : vector<8x32xf32>
    %82 = arith.mulf %75, %81 : vector<8x32xf32>
    %c0_i32_46 = arith.constant 0 : i32
    %83 = arith.addi %c0_i32_46, %c0_i32_34 : i32
    %84 = arith.index_cast %83 : i32 to index
    %c0_47 = arith.constant 0 : index
    %c0_48 = arith.constant 0 : index
    %85 = vector.load %arg13[%84, %c0_47, %c0_48] : memref<8x8x32xf32, #tpu.memory_space<vmem>>, vector<1x8x32xf32>
    %86 = vector.shape_cast %85 : vector<1x8x32xf32> to vector<8x32xf32>
    %87 = vector.shape_cast %82 : vector<8x32xf32> to vector<1x8x32xf32>
    tpu.vector_store %arg13[%84, %c0_47, %c0_48], %87 {strides = array<i32>} : memref<8x8x32xf32, #tpu.memory_space<vmem>>, vector<1x8x32xf32>,
    %c1_i32_49 = arith.constant 1 : i32
    %c4_i32_50 = arith.constant 4 : i32
    %88 = arith.addi %c4_i32_50, %c1_i32_49 : i32
    %89 = arith.index_cast %88 : i32 to index
    %c0_51 = arith.constant 0 : index
    %c0_52 = arith.constant 0 : index
    %90 = vector.load %arg1[%89, %c0_51, %c0_52] : memref<8x8x16xf32, #tpu.memory_space<vmem>>, vector<1x8x16xf32>
    %91 = vector.shape_cast %90 : vector<1x8x16xf32> to vector<8x16xf32>
    %cst_53 = arith.constant dense<0.000000e+00> : vector<8x128xf32>
    %92 = tpu.matmul %91, %6, %cst_53 {dimension_numbers = #tpu.dot_dimension_numbers<[1], [0], [0], [1], [0, 0, 1, 1], [], []>} : vector<8x16xf32>, vector<16x128xf32>, vector<8x128xf32> -> vector<8x128xf32>
    %93 = vector.broadcast %8 : vector<1x128xf32> to vector<8x128xf32>
    %94 = arith.addf %92, %93 : vector<8x128xf32>
    %c1_54 = arith.constant 1 : index
    %95 = arith.index_cast %c1_i32_49 : i32 to index
    %c0_55 = arith.constant 0 : index
    %c0_56 = arith.constant 0 : index
    %96 = vector.load %arg12[%c1_54, %95, %c0_55, %c0_56] : memref<2x4x8x128xf32, #tpu.memory_space<vmem>>, vector<1x1x8x128xf32>
    %97 = vector.shape_cast %96 : vector<1x1x8x128xf32> to vector<8x128xf32>
    %98 = vector.shape_cast %94 : vector<8x128xf32> to vector<1x1x8x128xf32>
    tpu.vector_store %arg12[%c1_54, %95, %c0_55, %c0_56], %98 {strides = array<i32>} : memref<2x4x8x128xf32, #tpu.memory_space<vmem>>, vector<1x1x8x128xf32>,
    %c0_57 = arith.constant 0 : index
    %99 = arith.index_cast %c1_i32_49 : i32 to index
    %c0_58 = arith.constant 0 : index
    %c0_59 = arith.constant 0 : index
    %100 = vector.load %arg12[%c0_57, %99, %c0_58, %c0_59] : memref<2x4x8x128xf32, #tpu.memory_space<vmem>>, vector<1x1x8x128xf32>
    %101 = vector.shape_cast %100 : vector<1x1x8x128xf32> to vector<8x128xf32>
    %cst_60 = arith.constant dense<0.000000e+00> : vector<8x128xf32>
    %102 = tpu.matmul %82, %7, %cst_60 {dimension_numbers = #tpu.dot_dimension_numbers<[1], [0], [0], [1], [0, 0, 1, 1], [], []>} : vector<8x32xf32>, vector<32x128xf32>, vector<8x128xf32> -> vector<8x128xf32>
    %103 = arith.addf %101, %102 : vector<8x128xf32>
    %104 = vector.extract_strided_slice %103 {offsets = [0, 0], sizes = [8, 96], strides = [1, 1]} : vector<8x128xf32> to vector<8x96xf32>
    %105 = arith.negf %104 : vector<8x96xf32>
    %106 = math.exp %105 : vector<8x96xf32>
    %cst_61 = arith.constant 1.000000e+00 : f32
    %107 = vector.broadcast %cst_61 : f32 to vector<8x96xf32>
    %108 = arith.addf %107, %106 : vector<8x96xf32>
    %109 = arith.divf %107, %108 : vector<8x96xf32>
    %110 = vector.extract_strided_slice %109 {offsets = [0, 0], sizes = [8, 32], strides = [1, 1]} : vector<8x96xf32> to vector<8x32xf32>
    %111 = vector.extract_strided_slice %109 {offsets = [0, 32], sizes = [8, 32], strides = [1, 1]} : vector<8x96xf32> to vector<8x32xf32>
    %112 = vector.extract_strided_slice %109 {offsets = [0, 64], sizes = [8, 32], strides = [1, 1]} : vector<8x96xf32> to vector<8x32xf32>
    %113 = vector.extract_strided_slice %103 {offsets = [0, 96], sizes = [8, 32], strides = [1, 1]} : vector<8x128xf32> to vector<8x32xf32>
    %114 = math.tanh %113 : vector<8x32xf32>
    %115 = arith.mulf %111, %80 : vector<8x32xf32>
    %116 = arith.mulf %110, %114 : vector<8x32xf32>
    %117 = arith.addf %115, %116 : vector<8x32xf32>
    %118 = math.tanh %117 : vector<8x32xf32>
    %119 = arith.mulf %112, %118 : vector<8x32xf32>
    %c0_i32_62 = arith.constant 0 : i32
    %120 = arith.addi %c0_i32_62, %c1_i32_49 : i32
    %121 = arith.index_cast %120 : i32 to index
    %c0_63 = arith.constant 0 : index
    %c0_64 = arith.constant 0 : index
    %122 = vector.load %arg13[%121, %c0_63, %c0_64] : memref<8x8x32xf32, #tpu.memory_space<vmem>>, vector<1x8x32xf32>
    %123 = vector.shape_cast %122 : vector<1x8x32xf32> to vector<8x32xf32>
    %124 = vector.shape_cast %119 : vector<8x32xf32> to vector<1x8x32xf32>
    tpu.vector_store %arg13[%121, %c0_63, %c0_64], %124 {strides = array<i32>} : memref<8x8x32xf32, #tpu.memory_space<vmem>>, vector<1x8x32xf32>,
    %c2_i32_65 = arith.constant 2 : i32
    %c4_i32_66 = arith.constant 4 : i32
    %125 = arith.addi %c4_i32_66, %c2_i32_65 : i32
    %126 = arith.index_cast %125 : i32 to index
    %c0_67 = arith.constant 0 : index
    %c0_68 = arith.constant 0 : index
    %127 = vector.load %arg1[%126, %c0_67, %c0_68] : memref<8x8x16xf32, #tpu.memory_space<vmem>>, vector<1x8x16xf32>
    %128 = vector.shape_cast %127 : vector<1x8x16xf32> to vector<8x16xf32>
    %cst_69 = arith.constant dense<0.000000e+00> : vector<8x128xf32>
    %129 = tpu.matmul %128, %6, %cst_69 {dimension_numbers = #tpu.dot_dimension_numbers<[1], [0], [0], [1], [0, 0, 1, 1], [], []>} : vector<8x16xf32>, vector<16x128xf32>, vector<8x128xf32> -> vector<8x128xf32>
    %130 = vector.broadcast %8 : vector<1x128xf32> to vector<8x128xf32>
    %131 = arith.addf %129, %130 : vector<8x128xf32>
    %c1_70 = arith.constant 1 : index
    %132 = arith.index_cast %c2_i32_65 : i32 to index
    %c0_71 = arith.constant 0 : index
    %c0_72 = arith.constant 0 : index
    %133 = vector.load %arg12[%c1_70, %132, %c0_71, %c0_72] : memref<2x4x8x128xf32, #tpu.memory_space<vmem>>, vector<1x1x8x128xf32>
    %134 = vector.shape_cast %133 : vector<1x1x8x128xf32> to vector<8x128xf32>
    %135 = vector.shape_cast %131 : vector<8x128xf32> to vector<1x1x8x128xf32>
    tpu.vector_store %arg12[%c1_70, %132, %c0_71, %c0_72], %135 {strides = array<i32>} : memref<2x4x8x128xf32, #tpu.memory_space<vmem>>, vector<1x1x8x128xf32>,
    %c0_73 = arith.constant 0 : index
    %136 = arith.index_cast %c2_i32_65 : i32 to index
    %c0_74 = arith.constant 0 : index
    %c0_75 = arith.constant 0 : index
    %137 = vector.load %arg12[%c0_73, %136, %c0_74, %c0_75] : memref<2x4x8x128xf32, #tpu.memory_space<vmem>>, vector<1x1x8x128xf32>
    %138 = vector.shape_cast %137 : vector<1x1x8x128xf32> to vector<8x128xf32>
    %cst_76 = arith.constant dense<0.000000e+00> : vector<8x128xf32>
    %139 = tpu.matmul %119, %7, %cst_76 {dimension_numbers = #tpu.dot_dimension_numbers<[1], [0], [0], [1], [0, 0, 1, 1], [], []>} : vector<8x32xf32>, vector<32x128xf32>, vector<8x128xf32> -> vector<8x128xf32>
    %140 = arith.addf %138, %139 : vector<8x128xf32>
    %141 = vector.extract_strided_slice %140 {offsets = [0, 0], sizes = [8, 96], strides = [1, 1]} : vector<8x128xf32> to vector<8x96xf32>
    %142 = arith.negf %141 : vector<8x96xf32>
    %143 = math.exp %142 : vector<8x96xf32>
    %cst_77 = arith.constant 1.000000e+00 : f32
    %144 = vector.broadcast %cst_77 : f32 to vector<8x96xf32>
    %145 = arith.addf %144, %143 : vector<8x96xf32>
    %146 = arith.divf %144, %145 : vector<8x96xf32>
    %147 = vector.extract_strided_slice %146 {offsets = [0, 0], sizes = [8, 32], strides = [1, 1]} : vector<8x96xf32> to vector<8x32xf32>
    %148 = vector.extract_strided_slice %146 {offsets = [0, 32], sizes = [8, 32], strides = [1, 1]} : vector<8x96xf32> to vector<8x32xf32>
    %149 = vector.extract_strided_slice %146 {offsets = [0, 64], sizes = [8, 32], strides = [1, 1]} : vector<8x96xf32> to vector<8x32xf32>
    %150 = vector.extract_strided_slice %140 {offsets = [0, 96], sizes = [8, 32], strides = [1, 1]} : vector<8x128xf32> to vector<8x32xf32>
    %151 = math.tanh %150 : vector<8x32xf32>
    %152 = arith.mulf %148, %117 : vector<8x32xf32>
    %153 = arith.mulf %147, %151 : vector<8x32xf32>
    %154 = arith.addf %152, %153 : vector<8x32xf32>
    %155 = math.tanh %154 : vector<8x32xf32>
    %156 = arith.mulf %149, %155 : vector<8x32xf32>
    %c0_i32_78 = arith.constant 0 : i32
    %157 = arith.addi %c0_i32_78, %c2_i32_65 : i32
    %158 = arith.index_cast %157 : i32 to index
    %c0_79 = arith.constant 0 : index
    %c0_80 = arith.constant 0 : index
    %159 = vector.load %arg13[%158, %c0_79, %c0_80] : memref<8x8x32xf32, #tpu.memory_space<vmem>>, vector<1x8x32xf32>
    %160 = vector.shape_cast %159 : vector<1x8x32xf32> to vector<8x32xf32>
    %161 = vector.shape_cast %156 : vector<8x32xf32> to vector<1x8x32xf32>
    tpu.vector_store %arg13[%158, %c0_79, %c0_80], %161 {strides = array<i32>} : memref<8x8x32xf32, #tpu.memory_space<vmem>>, vector<1x8x32xf32>,
    %c3_i32_81 = arith.constant 3 : i32
    %c4_i32_82 = arith.constant 4 : i32
    %162 = arith.addi %c4_i32_82, %c3_i32_81 : i32
    %163 = arith.index_cast %162 : i32 to index
    %c0_83 = arith.constant 0 : index
    %c0_84 = arith.constant 0 : index
    %164 = vector.load %arg1[%163, %c0_83, %c0_84] : memref<8x8x16xf32, #tpu.memory_space<vmem>>, vector<1x8x16xf32>
    %165 = vector.shape_cast %164 : vector<1x8x16xf32> to vector<8x16xf32>
    %cst_85 = arith.constant dense<0.000000e+00> : vector<8x128xf32>
    %166 = tpu.matmul %165, %6, %cst_85 {dimension_numbers = #tpu.dot_dimension_numbers<[1], [0], [0], [1], [0, 0, 1, 1], [], []>} : vector<8x16xf32>, vector<16x128xf32>, vector<8x128xf32> -> vector<8x128xf32>
    %167 = vector.broadcast %8 : vector<1x128xf32> to vector<8x128xf32>
    %168 = arith.addf %166, %167 : vector<8x128xf32>
    %c1_86 = arith.constant 1 : index
    %169 = arith.index_cast %c3_i32_81 : i32 to index
    %c0_87 = arith.constant 0 : index
    %c0_88 = arith.constant 0 : index
    %170 = vector.load %arg12[%c1_86, %169, %c0_87, %c0_88] : memref<2x4x8x128xf32, #tpu.memory_space<vmem>>, vector<1x1x8x128xf32>
    %171 = vector.shape_cast %170 : vector<1x1x8x128xf32> to vector<8x128xf32>
    %172 = vector.shape_cast %168 : vector<8x128xf32> to vector<1x1x8x128xf32>
    tpu.vector_store %arg12[%c1_86, %169, %c0_87, %c0_88], %172 {strides = array<i32>} : memref<2x4x8x128xf32, #tpu.memory_space<vmem>>, vector<1x1x8x128xf32>,
    %c0_89 = arith.constant 0 : index
    %173 = arith.index_cast %c3_i32_81 : i32 to index
    %c0_90 = arith.constant 0 : index
    %c0_91 = arith.constant 0 : index
    %174 = vector.load %arg12[%c0_89, %173, %c0_90, %c0_91] : memref<2x4x8x128xf32, #tpu.memory_space<vmem>>, vector<1x1x8x128xf32>
    %175 = vector.shape_cast %174 : vector<1x1x8x128xf32> to vector<8x128xf32>
    %cst_92 = arith.constant dense<0.000000e+00> : vector<8x128xf32>
    %176 = tpu.matmul %156, %7, %cst_92 {dimension_numbers = #tpu.dot_dimension_numbers<[1], [0], [0], [1], [0, 0, 1, 1], [], []>} : vector<8x32xf32>, vector<32x128xf32>, vector<8x128xf32> -> vector<8x128xf32>
    %177 = arith.addf %175, %176 : vector<8x128xf32>
    %178 = vector.extract_strided_slice %177 {offsets = [0, 0], sizes = [8, 96], strides = [1, 1]} : vector<8x128xf32> to vector<8x96xf32>
    %179 = arith.negf %178 : vector<8x96xf32>
    %180 = math.exp %179 : vector<8x96xf32>
    %cst_93 = arith.constant 1.000000e+00 : f32
    %181 = vector.broadcast %cst_93 : f32 to vector<8x96xf32>
    %182 = arith.addf %181, %180 : vector<8x96xf32>
    %183 = arith.divf %181, %182 : vector<8x96xf32>
    %184 = vector.extract_strided_slice %183 {offsets = [0, 0], sizes = [8, 32], strides = [1, 1]} : vector<8x96xf32> to vector<8x32xf32>
    %185 = vector.extract_strided_slice %183 {offsets = [0, 32], sizes = [8, 32], strides = [1, 1]} : vector<8x96xf32> to vector<8x32xf32>
    %186 = vector.extract_strided_slice %183 {offsets = [0, 64], sizes = [8, 32], strides = [1, 1]} : vector<8x96xf32> to vector<8x32xf32>
    %187 = vector.extract_strided_slice %177 {offsets = [0, 96], sizes = [8, 32], strides = [1, 1]} : vector<8x128xf32> to vector<8x32xf32>
    %188 = math.tanh %187 : vector<8x32xf32>
    %189 = arith.mulf %185, %154 : vector<8x32xf32>
    %190 = arith.mulf %184, %188 : vector<8x32xf32>
    %191 = arith.addf %189, %190 : vector<8x32xf32>
    %192 = math.tanh %191 : vector<8x32xf32>
    %193 = arith.mulf %186, %192 : vector<8x32xf32>
    %c0_i32_94 = arith.constant 0 : i32
    %194 = arith.addi %c0_i32_94, %c3_i32_81 : i32
    %195 = arith.index_cast %194 : i32 to index
    %c0_95 = arith.constant 0 : index
    %c0_96 = arith.constant 0 : index
    %196 = vector.load %arg13[%195, %c0_95, %c0_96] : memref<8x8x32xf32, #tpu.memory_space<vmem>>, vector<1x8x32xf32>
    %197 = vector.shape_cast %196 : vector<1x8x32xf32> to vector<8x32xf32>
    %198 = vector.shape_cast %193 : vector<8x32xf32> to vector<1x8x32xf32>
    tpu.vector_store %arg13[%195, %c0_95, %c0_96], %198 {strides = array<i32>} : memref<8x8x32xf32, #tpu.memory_space<vmem>>, vector<1x8x32xf32>,
    %c4_i32_97 = arith.constant 4 : i32
    %c0_i32_98 = arith.constant 0 : i32
    %c1_99 = arith.constant 1 : index
    %199 = arith.index_cast %c0_i32_98 : i32 to index
    %c0_100 = arith.constant 0 : index
    %c0_101 = arith.constant 0 : index
    %200 = vector.load %arg12[%c1_99, %199, %c0_100, %c0_101] : memref<2x4x8x128xf32, #tpu.memory_space<vmem>>, vector<1x1x8x128xf32>
    %201 = vector.shape_cast %200 : vector<1x1x8x128xf32> to vector<8x128xf32>
    %cst_102 = arith.constant dense<0.000000e+00> : vector<8x128xf32>
    %202 = tpu.matmul %193, %7, %cst_102 {dimension_numbers = #tpu.dot_dimension_numbers<[1], [0], [0], [1], [0, 0, 1, 1], [], []>} : vector<8x32xf32>, vector<32x128xf32>, vector<8x128xf32> -> vector<8x128xf32>
    %203 = arith.addf %201, %202 : vector<8x128xf32>
    %204 = vector.extract_strided_slice %203 {offsets = [0, 0], sizes = [8, 96], strides = [1, 1]} : vector<8x128xf32> to vector<8x96xf32>
    %205 = arith.negf %204 : vector<8x96xf32>
    %206 = math.exp %205 : vector<8x96xf32>
    %cst_103 = arith.constant 1.000000e+00 : f32
    %207 = vector.broadcast %cst_103 : f32 to vector<8x96xf32>
    %208 = arith.addf %207, %206 : vector<8x96xf32>
    %209 = arith.divf %207, %208 : vector<8x96xf32>
    %210 = vector.extract_strided_slice %209 {offsets = [0, 0], sizes = [8, 32], strides = [1, 1]} : vector<8x96xf32> to vector<8x32xf32>
    %211 = vector.extract_strided_slice %209 {offsets = [0, 32], sizes = [8, 32], strides = [1, 1]} : vector<8x96xf32> to vector<8x32xf32>
    %212 = vector.extract_strided_slice %209 {offsets = [0, 64], sizes = [8, 32], strides = [1, 1]} : vector<8x96xf32> to vector<8x32xf32>
    %213 = vector.extract_strided_slice %203 {offsets = [0, 96], sizes = [8, 32], strides = [1, 1]} : vector<8x128xf32> to vector<8x32xf32>
    %214 = math.tanh %213 : vector<8x32xf32>
    %215 = arith.mulf %211, %191 : vector<8x32xf32>
    %216 = arith.mulf %210, %214 : vector<8x32xf32>
    %217 = arith.addf %215, %216 : vector<8x32xf32>
    %218 = math.tanh %217 : vector<8x32xf32>
    %219 = arith.mulf %212, %218 : vector<8x32xf32>
    %c4_i32_104 = arith.constant 4 : i32
    %220 = arith.addi %c4_i32_104, %c0_i32_98 : i32
    %221 = arith.index_cast %220 : i32 to index
    %c0_105 = arith.constant 0 : index
    %c0_106 = arith.constant 0 : index
    %222 = vector.load %arg13[%221, %c0_105, %c0_106] : memref<8x8x32xf32, #tpu.memory_space<vmem>>, vector<1x8x32xf32>
    %223 = vector.shape_cast %222 : vector<1x8x32xf32> to vector<8x32xf32>
    %224 = vector.shape_cast %219 : vector<8x32xf32> to vector<1x8x32xf32>
    tpu.vector_store %arg13[%221, %c0_105, %c0_106], %224 {strides = array<i32>} : memref<8x8x32xf32, #tpu.memory_space<vmem>>, vector<1x8x32xf32>,
    %c1_i32_107 = arith.constant 1 : i32
    %c1_108 = arith.constant 1 : index
    %225 = arith.index_cast %c1_i32_107 : i32 to index
    %c0_109 = arith.constant 0 : index
    %c0_110 = arith.constant 0 : index
    %226 = vector.load %arg12[%c1_108, %225, %c0_109, %c0_110] : memref<2x4x8x128xf32, #tpu.memory_space<vmem>>, vector<1x1x8x128xf32>
    %227 = vector.shape_cast %226 : vector<1x1x8x128xf32> to vector<8x128xf32>
    %cst_111 = arith.constant dense<0.000000e+00> : vector<8x128xf32>
    %228 = tpu.matmul %219, %7, %cst_111 {dimension_numbers = #tpu.dot_dimension_numbers<[1], [0], [0], [1], [0, 0, 1, 1], [], []>} : vector<8x32xf32>, vector<32x128xf32>, vector<8x128xf32> -> vector<8x128xf32>
    %229 = arith.addf %227, %228 : vector<8x128xf32>
    %230 = vector.extract_strided_slice %229 {offsets = [0, 0], sizes = [8, 96], strides = [1, 1]} : vector<8x128xf32> to vector<8x96xf32>
    %231 = arith.negf %230 : vector<8x96xf32>
    %232 = math.exp %231 : vector<8x96xf32>
    %cst_112 = arith.constant 1.000000e+00 : f32
    %233 = vector.broadcast %cst_112 : f32 to vector<8x96xf32>
    %234 = arith.addf %233, %232 : vector<8x96xf32>
    %235 = arith.divf %233, %234 : vector<8x96xf32>
    %236 = vector.extract_strided_slice %235 {offsets = [0, 0], sizes = [8, 32], strides = [1, 1]} : vector<8x96xf32> to vector<8x32xf32>
    %237 = vector.extract_strided_slice %235 {offsets = [0, 32], sizes = [8, 32], strides = [1, 1]} : vector<8x96xf32> to vector<8x32xf32>
    %238 = vector.extract_strided_slice %235 {offsets = [0, 64], sizes = [8, 32], strides = [1, 1]} : vector<8x96xf32> to vector<8x32xf32>
    %239 = vector.extract_strided_slice %229 {offsets = [0, 96], sizes = [8, 32], strides = [1, 1]} : vector<8x128xf32> to vector<8x32xf32>
    %240 = math.tanh %239 : vector<8x32xf32>
    %241 = arith.mulf %237, %217 : vector<8x32xf32>
    %242 = arith.mulf %236, %240 : vector<8x32xf32>
    %243 = arith.addf %241, %242 : vector<8x32xf32>
    %244 = math.tanh %243 : vector<8x32xf32>
    %245 = arith.mulf %238, %244 : vector<8x32xf32>
    %c4_i32_113 = arith.constant 4 : i32
    %246 = arith.addi %c4_i32_113, %c1_i32_107 : i32
    %247 = arith.index_cast %246 : i32 to index
    %c0_114 = arith.constant 0 : index
    %c0_115 = arith.constant 0 : index
    %248 = vector.load %arg13[%247, %c0_114, %c0_115] : memref<8x8x32xf32, #tpu.memory_space<vmem>>, vector<1x8x32xf32>
    %249 = vector.shape_cast %248 : vector<1x8x32xf32> to vector<8x32xf32>
    %250 = vector.shape_cast %245 : vector<8x32xf32> to vector<1x8x32xf32>
    tpu.vector_store %arg13[%247, %c0_114, %c0_115], %250 {strides = array<i32>} : memref<8x8x32xf32, #tpu.memory_space<vmem>>, vector<1x8x32xf32>,
    %c2_i32_116 = arith.constant 2 : i32
    %c1_117 = arith.constant 1 : index
    %251 = arith.index_cast %c2_i32_116 : i32 to index
    %c0_118 = arith.constant 0 : index
    %c0_119 = arith.constant 0 : index
    %252 = vector.load %arg12[%c1_117, %251, %c0_118, %c0_119] : memref<2x4x8x128xf32, #tpu.memory_space<vmem>>, vector<1x1x8x128xf32>
    %253 = vector.shape_cast %252 : vector<1x1x8x128xf32> to vector<8x128xf32>
    %cst_120 = arith.constant dense<0.000000e+00> : vector<8x128xf32>
    %254 = tpu.matmul %245, %7, %cst_120 {dimension_numbers = #tpu.dot_dimension_numbers<[1], [0], [0], [1], [0, 0, 1, 1], [], []>} : vector<8x32xf32>, vector<32x128xf32>, vector<8x128xf32> -> vector<8x128xf32>
    %255 = arith.addf %253, %254 : vector<8x128xf32>
    %256 = vector.extract_strided_slice %255 {offsets = [0, 0], sizes = [8, 96], strides = [1, 1]} : vector<8x128xf32> to vector<8x96xf32>
    %257 = arith.negf %256 : vector<8x96xf32>
    %258 = math.exp %257 : vector<8x96xf32>
    %cst_121 = arith.constant 1.000000e+00 : f32
    %259 = vector.broadcast %cst_121 : f32 to vector<8x96xf32>
    %260 = arith.addf %259, %258 : vector<8x96xf32>
    %261 = arith.divf %259, %260 : vector<8x96xf32>
    %262 = vector.extract_strided_slice %261 {offsets = [0, 0], sizes = [8, 32], strides = [1, 1]} : vector<8x96xf32> to vector<8x32xf32>
    %263 = vector.extract_strided_slice %261 {offsets = [0, 32], sizes = [8, 32], strides = [1, 1]} : vector<8x96xf32> to vector<8x32xf32>
    %264 = vector.extract_strided_slice %261 {offsets = [0, 64], sizes = [8, 32], strides = [1, 1]} : vector<8x96xf32> to vector<8x32xf32>
    %265 = vector.extract_strided_slice %255 {offsets = [0, 96], sizes = [8, 32], strides = [1, 1]} : vector<8x128xf32> to vector<8x32xf32>
    %266 = math.tanh %265 : vector<8x32xf32>
    %267 = arith.mulf %263, %243 : vector<8x32xf32>
    %268 = arith.mulf %262, %266 : vector<8x32xf32>
    %269 = arith.addf %267, %268 : vector<8x32xf32>
    %270 = math.tanh %269 : vector<8x32xf32>
    %271 = arith.mulf %264, %270 : vector<8x32xf32>
    %c4_i32_122 = arith.constant 4 : i32
    %272 = arith.addi %c4_i32_122, %c2_i32_116 : i32
    %273 = arith.index_cast %272 : i32 to index
    %c0_123 = arith.constant 0 : index
    %c0_124 = arith.constant 0 : index
    %274 = vector.load %arg13[%273, %c0_123, %c0_124] : memref<8x8x32xf32, #tpu.memory_space<vmem>>, vector<1x8x32xf32>
    %275 = vector.shape_cast %274 : vector<1x8x32xf32> to vector<8x32xf32>
    %276 = vector.shape_cast %271 : vector<8x32xf32> to vector<1x8x32xf32>
    tpu.vector_store %arg13[%273, %c0_123, %c0_124], %276 {strides = array<i32>} : memref<8x8x32xf32, #tpu.memory_space<vmem>>, vector<1x8x32xf32>,
    %c3_i32_125 = arith.constant 3 : i32
    %c1_126 = arith.constant 1 : index
    %277 = arith.index_cast %c3_i32_125 : i32 to index
    %c0_127 = arith.constant 0 : index
    %c0_128 = arith.constant 0 : index
    %278 = vector.load %arg12[%c1_126, %277, %c0_127, %c0_128] : memref<2x4x8x128xf32, #tpu.memory_space<vmem>>, vector<1x1x8x128xf32>
    %279 = vector.shape_cast %278 : vector<1x1x8x128xf32> to vector<8x128xf32>
    %cst_129 = arith.constant dense<0.000000e+00> : vector<8x128xf32>
    %280 = tpu.matmul %271, %7, %cst_129 {dimension_numbers = #tpu.dot_dimension_numbers<[1], [0], [0], [1], [0, 0, 1, 1], [], []>} : vector<8x32xf32>, vector<32x128xf32>, vector<8x128xf32> -> vector<8x128xf32>
    %281 = arith.addf %279, %280 : vector<8x128xf32>
    %282 = vector.extract_strided_slice %281 {offsets = [0, 0], sizes = [8, 96], strides = [1, 1]} : vector<8x128xf32> to vector<8x96xf32>
    %283 = arith.negf %282 : vector<8x96xf32>
    %284 = math.exp %283 : vector<8x96xf32>
    %cst_130 = arith.constant 1.000000e+00 : f32
    %285 = vector.broadcast %cst_130 : f32 to vector<8x96xf32>
    %286 = arith.addf %285, %284 : vector<8x96xf32>
    %287 = arith.divf %285, %286 : vector<8x96xf32>
    %288 = vector.extract_strided_slice %287 {offsets = [0, 0], sizes = [8, 32], strides = [1, 1]} : vector<8x96xf32> to vector<8x32xf32>
    %289 = vector.extract_strided_slice %287 {offsets = [0, 32], sizes = [8, 32], strides = [1, 1]} : vector<8x96xf32> to vector<8x32xf32>
    %290 = vector.extract_strided_slice %287 {offsets = [0, 64], sizes = [8, 32], strides = [1, 1]} : vector<8x96xf32> to vector<8x32xf32>
    %291 = vector.extract_strided_slice %281 {offsets = [0, 96], sizes = [8, 32], strides = [1, 1]} : vector<8x128xf32> to vector<8x32xf32>
    %292 = math.tanh %291 : vector<8x32xf32>
    %293 = arith.mulf %289, %269 : vector<8x32xf32>
    %294 = arith.mulf %288, %292 : vector<8x32xf32>
    %295 = arith.addf %293, %294 : vector<8x32xf32>
    %296 = math.tanh %295 : vector<8x32xf32>
    %297 = arith.mulf %290, %296 : vector<8x32xf32>
    %c4_i32_131 = arith.constant 4 : i32
    %298 = arith.addi %c4_i32_131, %c3_i32_125 : i32
    %299 = arith.index_cast %298 : i32 to index
    %c0_132 = arith.constant 0 : index
    %c0_133 = arith.constant 0 : index
    %300 = vector.load %arg13[%299, %c0_132, %c0_133] : memref<8x8x32xf32, #tpu.memory_space<vmem>>, vector<1x8x32xf32>
    %301 = vector.shape_cast %300 : vector<1x8x32xf32> to vector<8x32xf32>
    %302 = vector.shape_cast %297 : vector<8x32xf32> to vector<1x8x32xf32>
    tpu.vector_store %arg13[%299, %c0_132, %c0_133], %302 {strides = array<i32>} : memref<8x8x32xf32, #tpu.memory_space<vmem>>, vector<1x8x32xf32>,
    %c4_i32_134 = arith.constant 4 : i32
    %c0_135 = arith.constant 0 : index
    %c0_136 = arith.constant 0 : index
    %303 = vector.load %arg6[%c0_135, %c0_136] : memref<32x128xf32, #tpu.memory_space<vmem>>, vector<32x128xf32>
    %c0_137 = arith.constant 0 : index
    %c0_138 = arith.constant 0 : index
    %304 = vector.load %arg7[%c0_137, %c0_138] : memref<32x128xf32, #tpu.memory_space<vmem>>, vector<32x128xf32>
    %c0_139 = arith.constant 0 : index
    %c0_140 = arith.constant 0 : index
    %305 = vector.load %arg8[%c0_139, %c0_140] : memref<1x128xf32, #tpu.memory_space<vmem>>, vector<1x128xf32>
    %c0_i32_141 = arith.constant 0 : i32
    %306 = arith.index_cast %c0_i32_141 : i32 to index
    %c0_142 = arith.constant 0 : index
    %c0_143 = arith.constant 0 : index
    %307 = vector.load %arg13[%306, %c0_142, %c0_143] : memref<8x8x32xf32, #tpu.memory_space<vmem>>, vector<1x8x32xf32>
    %308 = vector.shape_cast %307 : vector<1x8x32xf32> to vector<8x32xf32>
    %cst_144 = arith.constant dense<0.000000e+00> : vector<8x128xf32>
    %309 = tpu.matmul %308, %303, %cst_144 {dimension_numbers = #tpu.dot_dimension_numbers<[1], [0], [0], [1], [0, 0, 1, 1], [], []>} : vector<8x32xf32>, vector<32x128xf32>, vector<8x128xf32> -> vector<8x128xf32>
    %310 = vector.broadcast %305 : vector<1x128xf32> to vector<8x128xf32>
    %311 = arith.addf %309, %310 : vector<8x128xf32>
    %c0_145 = arith.constant 0 : index
    %312 = arith.index_cast %c0_i32_141 : i32 to index
    %c0_146 = arith.constant 0 : index
    %c0_147 = arith.constant 0 : index
    %313 = vector.load %arg12[%c0_145, %312, %c0_146, %c0_147] : memref<2x4x8x128xf32, #tpu.memory_space<vmem>>, vector<1x1x8x128xf32>
    %314 = vector.shape_cast %313 : vector<1x1x8x128xf32> to vector<8x128xf32>
    %315 = vector.shape_cast %311 : vector<8x128xf32> to vector<1x1x8x128xf32>
    tpu.vector_store %arg12[%c0_145, %312, %c0_146, %c0_147], %315 {strides = array<i32>} : memref<2x4x8x128xf32, #tpu.memory_space<vmem>>, vector<1x1x8x128xf32>,
    %c1_i32_148 = arith.constant 1 : i32
    %316 = arith.index_cast %c1_i32_148 : i32 to index
    %c0_149 = arith.constant 0 : index
    %c0_150 = arith.constant 0 : index
    %317 = vector.load %arg13[%316, %c0_149, %c0_150] : memref<8x8x32xf32, #tpu.memory_space<vmem>>, vector<1x8x32xf32>
    %318 = vector.shape_cast %317 : vector<1x8x32xf32> to vector<8x32xf32>
    %cst_151 = arith.constant dense<0.000000e+00> : vector<8x128xf32>
    %319 = tpu.matmul %318, %303, %cst_151 {dimension_numbers = #tpu.dot_dimension_numbers<[1], [0], [0], [1], [0, 0, 1, 1], [], []>} : vector<8x32xf32>, vector<32x128xf32>, vector<8x128xf32> -> vector<8x128xf32>
    %320 = vector.broadcast %305 : vector<1x128xf32> to vector<8x128xf32>
    %321 = arith.addf %319, %320 : vector<8x128xf32>
    %c0_152 = arith.constant 0 : index
    %322 = arith.index_cast %c1_i32_148 : i32 to index
    %c0_153 = arith.constant 0 : index
    %c0_154 = arith.constant 0 : index
    %323 = vector.load %arg12[%c0_152, %322, %c0_153, %c0_154] : memref<2x4x8x128xf32, #tpu.memory_space<vmem>>, vector<1x1x8x128xf32>
    %324 = vector.shape_cast %323 : vector<1x1x8x128xf32> to vector<8x128xf32>
    %325 = vector.shape_cast %321 : vector<8x128xf32> to vector<1x1x8x128xf32>
    tpu.vector_store %arg12[%c0_152, %322, %c0_153, %c0_154], %325 {strides = array<i32>} : memref<2x4x8x128xf32, #tpu.memory_space<vmem>>, vector<1x1x8x128xf32>,
    %c2_i32_155 = arith.constant 2 : i32
    %326 = arith.index_cast %c2_i32_155 : i32 to index
    %c0_156 = arith.constant 0 : index
    %c0_157 = arith.constant 0 : index
    %327 = vector.load %arg13[%326, %c0_156, %c0_157] : memref<8x8x32xf32, #tpu.memory_space<vmem>>, vector<1x8x32xf32>
    %328 = vector.shape_cast %327 : vector<1x8x32xf32> to vector<8x32xf32>
    %cst_158 = arith.constant dense<0.000000e+00> : vector<8x128xf32>
    %329 = tpu.matmul %328, %303, %cst_158 {dimension_numbers = #tpu.dot_dimension_numbers<[1], [0], [0], [1], [0, 0, 1, 1], [], []>} : vector<8x32xf32>, vector<32x128xf32>, vector<8x128xf32> -> vector<8x128xf32>
    %330 = vector.broadcast %305 : vector<1x128xf32> to vector<8x128xf32>
    %331 = arith.addf %329, %330 : vector<8x128xf32>
    %c0_159 = arith.constant 0 : index
    %332 = arith.index_cast %c2_i32_155 : i32 to index
    %c0_160 = arith.constant 0 : index
    %c0_161 = arith.constant 0 : index
    %333 = vector.load %arg12[%c0_159, %332, %c0_160, %c0_161] : memref<2x4x8x128xf32, #tpu.memory_space<vmem>>, vector<1x1x8x128xf32>
    %334 = vector.shape_cast %333 : vector<1x1x8x128xf32> to vector<8x128xf32>
    %335 = vector.shape_cast %331 : vector<8x128xf32> to vector<1x1x8x128xf32>
    tpu.vector_store %arg12[%c0_159, %332, %c0_160, %c0_161], %335 {strides = array<i32>} : memref<2x4x8x128xf32, #tpu.memory_space<vmem>>, vector<1x1x8x128xf32>,
    %c3_i32_162 = arith.constant 3 : i32
    %336 = arith.index_cast %c3_i32_162 : i32 to index
    %c0_163 = arith.constant 0 : index
    %c0_164 = arith.constant 0 : index
    %337 = vector.load %arg13[%336, %c0_163, %c0_164] : memref<8x8x32xf32, #tpu.memory_space<vmem>>, vector<1x8x32xf32>
    %338 = vector.shape_cast %337 : vector<1x8x32xf32> to vector<8x32xf32>
    %cst_165 = arith.constant dense<0.000000e+00> : vector<8x128xf32>
    %339 = tpu.matmul %338, %303, %cst_165 {dimension_numbers = #tpu.dot_dimension_numbers<[1], [0], [0], [1], [0, 0, 1, 1], [], []>} : vector<8x32xf32>, vector<32x128xf32>, vector<8x128xf32> -> vector<8x128xf32>
    %340 = vector.broadcast %305 : vector<1x128xf32> to vector<8x128xf32>
    %341 = arith.addf %339, %340 : vector<8x128xf32>
    %c0_166 = arith.constant 0 : index
    %342 = arith.index_cast %c3_i32_162 : i32 to index
    %c0_167 = arith.constant 0 : index
    %c0_168 = arith.constant 0 : index
    %343 = vector.load %arg12[%c0_166, %342, %c0_167, %c0_168] : memref<2x4x8x128xf32, #tpu.memory_space<vmem>>, vector<1x1x8x128xf32>
    %344 = vector.shape_cast %343 : vector<1x1x8x128xf32> to vector<8x128xf32>
    %345 = vector.shape_cast %341 : vector<8x128xf32> to vector<1x1x8x128xf32>
    tpu.vector_store %arg12[%c0_166, %342, %c0_167, %c0_168], %345 {strides = array<i32>} : memref<2x4x8x128xf32, #tpu.memory_space<vmem>>, vector<1x1x8x128xf32>,
    %c4_i32_169 = arith.constant 4 : i32
    %cst_170 = arith.constant 0.000000e+00 : f32
    %346 = vector.broadcast %cst_170 : f32 to vector<8x32xf32>
    %cst_171 = arith.constant 0.000000e+00 : f32
    %347 = vector.broadcast %cst_171 : f32 to vector<8x32xf32>
    %c0_i32_172 = arith.constant 0 : i32
    %c4_i32_173 = arith.constant 4 : i32
    %348 = arith.addi %c4_i32_173, %c0_i32_172 : i32
    %349 = arith.index_cast %348 : i32 to index
    %c0_174 = arith.constant 0 : index
    %c0_175 = arith.constant 0 : index
    %350 = vector.load %arg13[%349, %c0_174, %c0_175] : memref<8x8x32xf32, #tpu.memory_space<vmem>>, vector<1x8x32xf32>
    %351 = vector.shape_cast %350 : vector<1x8x32xf32> to vector<8x32xf32>
    %cst_176 = arith.constant dense<0.000000e+00> : vector<8x128xf32>
    %352 = tpu.matmul %351, %303, %cst_176 {dimension_numbers = #tpu.dot_dimension_numbers<[1], [0], [0], [1], [0, 0, 1, 1], [], []>} : vector<8x32xf32>, vector<32x128xf32>, vector<8x128xf32> -> vector<8x128xf32>
    %353 = vector.broadcast %305 : vector<1x128xf32> to vector<8x128xf32>
    %354 = arith.addf %352, %353 : vector<8x128xf32>
    %c1_177 = arith.constant 1 : index
    %355 = arith.index_cast %c0_i32_172 : i32 to index
    %c0_178 = arith.constant 0 : index
    %c0_179 = arith.constant 0 : index
    %356 = vector.load %arg12[%c1_177, %355, %c0_178, %c0_179] : memref<2x4x8x128xf32, #tpu.memory_space<vmem>>, vector<1x1x8x128xf32>
    %357 = vector.shape_cast %356 : vector<1x1x8x128xf32> to vector<8x128xf32>
    %358 = vector.shape_cast %354 : vector<8x128xf32> to vector<1x1x8x128xf32>
    tpu.vector_store %arg12[%c1_177, %355, %c0_178, %c0_179], %358 {strides = array<i32>} : memref<2x4x8x128xf32, #tpu.memory_space<vmem>>, vector<1x1x8x128xf32>,
    %c0_180 = arith.constant 0 : index
    %359 = arith.index_cast %c0_i32_172 : i32 to index
    %c0_181 = arith.constant 0 : index
    %c0_182 = arith.constant 0 : index
    %360 = vector.load %arg12[%c0_180, %359, %c0_181, %c0_182] : memref<2x4x8x128xf32, #tpu.memory_space<vmem>>, vector<1x1x8x128xf32>
    %361 = vector.shape_cast %360 : vector<1x1x8x128xf32> to vector<8x128xf32>
    %cst_183 = arith.constant dense<0.000000e+00> : vector<8x128xf32>
    %362 = tpu.matmul %346, %304, %cst_183 {dimension_numbers = #tpu.dot_dimension_numbers<[1], [0], [0], [1], [0, 0, 1, 1], [], []>} : vector<8x32xf32>, vector<32x128xf32>, vector<8x128xf32> -> vector<8x128xf32>
    %363 = arith.addf %361, %362 : vector<8x128xf32>
    %364 = vector.extract_strided_slice %363 {offsets = [0, 0], sizes = [8, 96], strides = [1, 1]} : vector<8x128xf32> to vector<8x96xf32>
    %365 = arith.negf %364 : vector<8x96xf32>
    %366 = math.exp %365 : vector<8x96xf32>
    %cst_184 = arith.constant 1.000000e+00 : f32
    %367 = vector.broadcast %cst_184 : f32 to vector<8x96xf32>
    %368 = arith.addf %367, %366 : vector<8x96xf32>
    %369 = arith.divf %367, %368 : vector<8x96xf32>
    %370 = vector.extract_strided_slice %369 {offsets = [0, 0], sizes = [8, 32], strides = [1, 1]} : vector<8x96xf32> to vector<8x32xf32>
    %371 = vector.extract_strided_slice %369 {offsets = [0, 32], sizes = [8, 32], strides = [1, 1]} : vector<8x96xf32> to vector<8x32xf32>
    %372 = vector.extract_strided_slice %369 {offsets = [0, 64], sizes = [8, 32], strides = [1, 1]} : vector<8x96xf32> to vector<8x32xf32>
    %373 = vector.extract_strided_slice %363 {offsets = [0, 96], sizes = [8, 32], strides = [1, 1]} : vector<8x128xf32> to vector<8x32xf32>
    %374 = math.tanh %373 : vector<8x32xf32>
    %375 = arith.mulf %371, %347 : vector<8x32xf32>
    %376 = arith.mulf %370, %374 : vector<8x32xf32>
    %377 = arith.addf %375, %376 : vector<8x32xf32>
    %378 = math.tanh %377 : vector<8x32xf32>
    %379 = arith.mulf %372, %378 : vector<8x32xf32>
    %c0_i32_185 = arith.constant 0 : i32
    %380 = arith.addi %c0_i32_185, %c0_i32_172 : i32
    %381 = vector.broadcast %380 : i32 to vector<8x32xi32>
    %382 = arith.cmpi eq, %4, %381 : vector<8x32xi32>
    %383 = arith.select %382, %379, %5 : vector<8x32xi1>, vector<8x32xf32>
    %c1_i32_186 = arith.constant 1 : i32
    %c4_i32_187 = arith.constant 4 : i32
    %384 = arith.addi %c4_i32_187, %c1_i32_186 : i32
    %385 = arith.index_cast %384 : i32 to index
    %c0_188 = arith.constant 0 : index
    %c0_189 = arith.constant 0 : index
    %386 = vector.load %arg13[%385, %c0_188, %c0_189] : memref<8x8x32xf32, #tpu.memory_space<vmem>>, vector<1x8x32xf32>
    %387 = vector.shape_cast %386 : vector<1x8x32xf32> to vector<8x32xf32>
    %cst_190 = arith.constant dense<0.000000e+00> : vector<8x128xf32>
    %388 = tpu.matmul %387, %303, %cst_190 {dimension_numbers = #tpu.dot_dimension_numbers<[1], [0], [0], [1], [0, 0, 1, 1], [], []>} : vector<8x32xf32>, vector<32x128xf32>, vector<8x128xf32> -> vector<8x128xf32>
    %389 = vector.broadcast %305 : vector<1x128xf32> to vector<8x128xf32>
    %390 = arith.addf %388, %389 : vector<8x128xf32>
    %c1_191 = arith.constant 1 : index
    %391 = arith.index_cast %c1_i32_186 : i32 to index
    %c0_192 = arith.constant 0 : index
    %c0_193 = arith.constant 0 : index
    %392 = vector.load %arg12[%c1_191, %391, %c0_192, %c0_193] : memref<2x4x8x128xf32, #tpu.memory_space<vmem>>, vector<1x1x8x128xf32>
    %393 = vector.shape_cast %392 : vector<1x1x8x128xf32> to vector<8x128xf32>
    %394 = vector.shape_cast %390 : vector<8x128xf32> to vector<1x1x8x128xf32>
    tpu.vector_store %arg12[%c1_191, %391, %c0_192, %c0_193], %394 {strides = array<i32>} : memref<2x4x8x128xf32, #tpu.memory_space<vmem>>, vector<1x1x8x128xf32>,
    %c0_194 = arith.constant 0 : index
    %395 = arith.index_cast %c1_i32_186 : i32 to index
    %c0_195 = arith.constant 0 : index
    %c0_196 = arith.constant 0 : index
    %396 = vector.load %arg12[%c0_194, %395, %c0_195, %c0_196] : memref<2x4x8x128xf32, #tpu.memory_space<vmem>>, vector<1x1x8x128xf32>
    %397 = vector.shape_cast %396 : vector<1x1x8x128xf32> to vector<8x128xf32>
    %cst_197 = arith.constant dense<0.000000e+00> : vector<8x128xf32>
    %398 = tpu.matmul %379, %304, %cst_197 {dimension_numbers = #tpu.dot_dimension_numbers<[1], [0], [0], [1], [0, 0, 1, 1], [], []>} : vector<8x32xf32>, vector<32x128xf32>, vector<8x128xf32> -> vector<8x128xf32>
    %399 = arith.addf %397, %398 : vector<8x128xf32>
    %400 = vector.extract_strided_slice %399 {offsets = [0, 0], sizes = [8, 96], strides = [1, 1]} : vector<8x128xf32> to vector<8x96xf32>
    %401 = arith.negf %400 : vector<8x96xf32>
    %402 = math.exp %401 : vector<8x96xf32>
    %cst_198 = arith.constant 1.000000e+00 : f32
    %403 = vector.broadcast %cst_198 : f32 to vector<8x96xf32>
    %404 = arith.addf %403, %402 : vector<8x96xf32>
    %405 = arith.divf %403, %404 : vector<8x96xf32>
    %406 = vector.extract_strided_slice %405 {offsets = [0, 0], sizes = [8, 32], strides = [1, 1]} : vector<8x96xf32> to vector<8x32xf32>
    %407 = vector.extract_strided_slice %405 {offsets = [0, 32], sizes = [8, 32], strides = [1, 1]} : vector<8x96xf32> to vector<8x32xf32>
    %408 = vector.extract_strided_slice %405 {offsets = [0, 64], sizes = [8, 32], strides = [1, 1]} : vector<8x96xf32> to vector<8x32xf32>
    %409 = vector.extract_strided_slice %399 {offsets = [0, 96], sizes = [8, 32], strides = [1, 1]} : vector<8x128xf32> to vector<8x32xf32>
    %410 = math.tanh %409 : vector<8x32xf32>
    %411 = arith.mulf %407, %377 : vector<8x32xf32>
    %412 = arith.mulf %406, %410 : vector<8x32xf32>
    %413 = arith.addf %411, %412 : vector<8x32xf32>
    %414 = math.tanh %413 : vector<8x32xf32>
    %415 = arith.mulf %408, %414 : vector<8x32xf32>
    %c0_i32_199 = arith.constant 0 : i32
    %416 = arith.addi %c0_i32_199, %c1_i32_186 : i32
    %417 = vector.broadcast %416 : i32 to vector<8x32xi32>
    %418 = arith.cmpi eq, %4, %417 : vector<8x32xi32>
    %419 = arith.select %418, %415, %383 : vector<8x32xi1>, vector<8x32xf32>
    %c2_i32_200 = arith.constant 2 : i32
    %c4_i32_201 = arith.constant 4 : i32
    %420 = arith.addi %c4_i32_201, %c2_i32_200 : i32
    %421 = arith.index_cast %420 : i32 to index
    %c0_202 = arith.constant 0 : index
    %c0_203 = arith.constant 0 : index
    %422 = vector.load %arg13[%421, %c0_202, %c0_203] : memref<8x8x32xf32, #tpu.memory_space<vmem>>, vector<1x8x32xf32>
    %423 = vector.shape_cast %422 : vector<1x8x32xf32> to vector<8x32xf32>
    %cst_204 = arith.constant dense<0.000000e+00> : vector<8x128xf32>
    %424 = tpu.matmul %423, %303, %cst_204 {dimension_numbers = #tpu.dot_dimension_numbers<[1], [0], [0], [1], [0, 0, 1, 1], [], []>} : vector<8x32xf32>, vector<32x128xf32>, vector<8x128xf32> -> vector<8x128xf32>
    %425 = vector.broadcast %305 : vector<1x128xf32> to vector<8x128xf32>
    %426 = arith.addf %424, %425 : vector<8x128xf32>
    %c1_205 = arith.constant 1 : index
    %427 = arith.index_cast %c2_i32_200 : i32 to index
    %c0_206 = arith.constant 0 : index
    %c0_207 = arith.constant 0 : index
    %428 = vector.load %arg12[%c1_205, %427, %c0_206, %c0_207] : memref<2x4x8x128xf32, #tpu.memory_space<vmem>>, vector<1x1x8x128xf32>
    %429 = vector.shape_cast %428 : vector<1x1x8x128xf32> to vector<8x128xf32>
    %430 = vector.shape_cast %426 : vector<8x128xf32> to vector<1x1x8x128xf32>
    tpu.vector_store %arg12[%c1_205, %427, %c0_206, %c0_207], %430 {strides = array<i32>} : memref<2x4x8x128xf32, #tpu.memory_space<vmem>>, vector<1x1x8x128xf32>,
    %c0_208 = arith.constant 0 : index
    %431 = arith.index_cast %c2_i32_200 : i32 to index
    %c0_209 = arith.constant 0 : index
    %c0_210 = arith.constant 0 : index
    %432 = vector.load %arg12[%c0_208, %431, %c0_209, %c0_210] : memref<2x4x8x128xf32, #tpu.memory_space<vmem>>, vector<1x1x8x128xf32>
    %433 = vector.shape_cast %432 : vector<1x1x8x128xf32> to vector<8x128xf32>
    %cst_211 = arith.constant dense<0.000000e+00> : vector<8x128xf32>
    %434 = tpu.matmul %415, %304, %cst_211 {dimension_numbers = #tpu.dot_dimension_numbers<[1], [0], [0], [1], [0, 0, 1, 1], [], []>} : vector<8x32xf32>, vector<32x128xf32>, vector<8x128xf32> -> vector<8x128xf32>
    %435 = arith.addf %433, %434 : vector<8x128xf32>
    %436 = vector.extract_strided_slice %435 {offsets = [0, 0], sizes = [8, 96], strides = [1, 1]} : vector<8x128xf32> to vector<8x96xf32>
    %437 = arith.negf %436 : vector<8x96xf32>
    %438 = math.exp %437 : vector<8x96xf32>
    %cst_212 = arith.constant 1.000000e+00 : f32
    %439 = vector.broadcast %cst_212 : f32 to vector<8x96xf32>
    %440 = arith.addf %439, %438 : vector<8x96xf32>
    %441 = arith.divf %439, %440 : vector<8x96xf32>
    %442 = vector.extract_strided_slice %441 {offsets = [0, 0], sizes = [8, 32], strides = [1, 1]} : vector<8x96xf32> to vector<8x32xf32>
    %443 = vector.extract_strided_slice %441 {offsets = [0, 32], sizes = [8, 32], strides = [1, 1]} : vector<8x96xf32> to vector<8x32xf32>
    %444 = vector.extract_strided_slice %441 {offsets = [0, 64], sizes = [8, 32], strides = [1, 1]} : vector<8x96xf32> to vector<8x32xf32>
    %445 = vector.extract_strided_slice %435 {offsets = [0, 96], sizes = [8, 32], strides = [1, 1]} : vector<8x128xf32> to vector<8x32xf32>
    %446 = math.tanh %445 : vector<8x32xf32>
    %447 = arith.mulf %443, %413 : vector<8x32xf32>
    %448 = arith.mulf %442, %446 : vector<8x32xf32>
    %449 = arith.addf %447, %448 : vector<8x32xf32>
    %450 = math.tanh %449 : vector<8x32xf32>
    %451 = arith.mulf %444, %450 : vector<8x32xf32>
    %c0_i32_213 = arith.constant 0 : i32
    %452 = arith.addi %c0_i32_213, %c2_i32_200 : i32
    %453 = vector.broadcast %452 : i32 to vector<8x32xi32>
    %454 = arith.cmpi eq, %4, %453 : vector<8x32xi32>
    %455 = arith.select %454, %451, %419 : vector<8x32xi1>, vector<8x32xf32>
    %c3_i32_214 = arith.constant 3 : i32
    %c4_i32_215 = arith.constant 4 : i32
    %456 = arith.addi %c4_i32_215, %c3_i32_214 : i32
    %457 = arith.index_cast %456 : i32 to index
    %c0_216 = arith.constant 0 : index
    %c0_217 = arith.constant 0 : index
    %458 = vector.load %arg13[%457, %c0_216, %c0_217] : memref<8x8x32xf32, #tpu.memory_space<vmem>>, vector<1x8x32xf32>
    %459 = vector.shape_cast %458 : vector<1x8x32xf32> to vector<8x32xf32>
    %cst_218 = arith.constant dense<0.000000e+00> : vector<8x128xf32>
    %460 = tpu.matmul %459, %303, %cst_218 {dimension_numbers = #tpu.dot_dimension_numbers<[1], [0], [0], [1], [0, 0, 1, 1], [], []>} : vector<8x32xf32>, vector<32x128xf32>, vector<8x128xf32> -> vector<8x128xf32>
    %461 = vector.broadcast %305 : vector<1x128xf32> to vector<8x128xf32>
    %462 = arith.addf %460, %461 : vector<8x128xf32>
    %c1_219 = arith.constant 1 : index
    %463 = arith.index_cast %c3_i32_214 : i32 to index
    %c0_220 = arith.constant 0 : index
    %c0_221 = arith.constant 0 : index
    %464 = vector.load %arg12[%c1_219, %463, %c0_220, %c0_221] : memref<2x4x8x128xf32, #tpu.memory_space<vmem>>, vector<1x1x8x128xf32>
    %465 = vector.shape_cast %464 : vector<1x1x8x128xf32> to vector<8x128xf32>
    %466 = vector.shape_cast %462 : vector<8x128xf32> to vector<1x1x8x128xf32>
    tpu.vector_store %arg12[%c1_219, %463, %c0_220, %c0_221], %466 {strides = array<i32>} : memref<2x4x8x128xf32, #tpu.memory_space<vmem>>, vector<1x1x8x128xf32>,
    %c0_222 = arith.constant 0 : index
    %467 = arith.index_cast %c3_i32_214 : i32 to index
    %c0_223 = arith.constant 0 : index
    %c0_224 = arith.constant 0 : index
    %468 = vector.load %arg12[%c0_222, %467, %c0_223, %c0_224] : memref<2x4x8x128xf32, #tpu.memory_space<vmem>>, vector<1x1x8x128xf32>
    %469 = vector.shape_cast %468 : vector<1x1x8x128xf32> to vector<8x128xf32>
    %cst_225 = arith.constant dense<0.000000e+00> : vector<8x128xf32>
    %470 = tpu.matmul %451, %304, %cst_225 {dimension_numbers = #tpu.dot_dimension_numbers<[1], [0], [0], [1], [0, 0, 1, 1], [], []>} : vector<8x32xf32>, vector<32x128xf32>, vector<8x128xf32> -> vector<8x128xf32>
    %471 = arith.addf %469, %470 : vector<8x128xf32>
    %472 = vector.extract_strided_slice %471 {offsets = [0, 0], sizes = [8, 96], strides = [1, 1]} : vector<8x128xf32> to vector<8x96xf32>
    %473 = arith.negf %472 : vector<8x96xf32>
    %474 = math.exp %473 : vector<8x96xf32>
    %cst_226 = arith.constant 1.000000e+00 : f32
    %475 = vector.broadcast %cst_226 : f32 to vector<8x96xf32>
    %476 = arith.addf %475, %474 : vector<8x96xf32>
    %477 = arith.divf %475, %476 : vector<8x96xf32>
    %478 = vector.extract_strided_slice %477 {offsets = [0, 0], sizes = [8, 32], strides = [1, 1]} : vector<8x96xf32> to vector<8x32xf32>
    %479 = vector.extract_strided_slice %477 {offsets = [0, 32], sizes = [8, 32], strides = [1, 1]} : vector<8x96xf32> to vector<8x32xf32>
    %480 = vector.extract_strided_slice %477 {offsets = [0, 64], sizes = [8, 32], strides = [1, 1]} : vector<8x96xf32> to vector<8x32xf32>
    %481 = vector.extract_strided_slice %471 {offsets = [0, 96], sizes = [8, 32], strides = [1, 1]} : vector<8x128xf32> to vector<8x32xf32>
    %482 = math.tanh %481 : vector<8x32xf32>
    %483 = arith.mulf %479, %449 : vector<8x32xf32>
    %484 = arith.mulf %478, %482 : vector<8x32xf32>
    %485 = arith.addf %483, %484 : vector<8x32xf32>
    %486 = math.tanh %485 : vector<8x32xf32>
    %487 = arith.mulf %480, %486 : vector<8x32xf32>
    %c0_i32_227 = arith.constant 0 : i32
    %488 = arith.addi %c0_i32_227, %c3_i32_214 : i32
    %489 = vector.broadcast %488 : i32 to vector<8x32xi32>
    %490 = arith.cmpi eq, %4, %489 : vector<8x32xi32>
    %491 = arith.select %490, %487, %455 : vector<8x32xi1>, vector<8x32xf32>
    %c4_i32_228 = arith.constant 4 : i32
    %c0_i32_229 = arith.constant 0 : i32
    %c1_230 = arith.constant 1 : index
    %492 = arith.index_cast %c0_i32_229 : i32 to index
    %c0_231 = arith.constant 0 : index
    %c0_232 = arith.constant 0 : index
    %493 = vector.load %arg12[%c1_230, %492, %c0_231, %c0_232] : memref<2x4x8x128xf32, #tpu.memory_space<vmem>>, vector<1x1x8x128xf32>
    %494 = vector.shape_cast %493 : vector<1x1x8x128xf32> to vector<8x128xf32>
    %cst_233 = arith.constant dense<0.000000e+00> : vector<8x128xf32>
    %495 = tpu.matmul %487, %304, %cst_233 {dimension_numbers = #tpu.dot_dimension_numbers<[1], [0], [0], [1], [0, 0, 1, 1], [], []>} : vector<8x32xf32>, vector<32x128xf32>, vector<8x128xf32> -> vector<8x128xf32>
    %496 = arith.addf %494, %495 : vector<8x128xf32>
    %497 = vector.extract_strided_slice %496 {offsets = [0, 0], sizes = [8, 96], strides = [1, 1]} : vector<8x128xf32> to vector<8x96xf32>
    %498 = arith.negf %497 : vector<8x96xf32>
    %499 = math.exp %498 : vector<8x96xf32>
    %cst_234 = arith.constant 1.000000e+00 : f32
    %500 = vector.broadcast %cst_234 : f32 to vector<8x96xf32>
    %501 = arith.addf %500, %499 : vector<8x96xf32>
    %502 = arith.divf %500, %501 : vector<8x96xf32>
    %503 = vector.extract_strided_slice %502 {offsets = [0, 0], sizes = [8, 32], strides = [1, 1]} : vector<8x96xf32> to vector<8x32xf32>
    %504 = vector.extract_strided_slice %502 {offsets = [0, 32], sizes = [8, 32], strides = [1, 1]} : vector<8x96xf32> to vector<8x32xf32>
    %505 = vector.extract_strided_slice %502 {offsets = [0, 64], sizes = [8, 32], strides = [1, 1]} : vector<8x96xf32> to vector<8x32xf32>
    %506 = vector.extract_strided_slice %496 {offsets = [0, 96], sizes = [8, 32], strides = [1, 1]} : vector<8x128xf32> to vector<8x32xf32>
    %507 = math.tanh %506 : vector<8x32xf32>
    %508 = arith.mulf %504, %485 : vector<8x32xf32>
    %509 = arith.mulf %503, %507 : vector<8x32xf32>
    %510 = arith.addf %508, %509 : vector<8x32xf32>
    %511 = math.tanh %510 : vector<8x32xf32>
    %512 = arith.mulf %505, %511 : vector<8x32xf32>
    %c4_i32_235 = arith.constant 4 : i32
    %513 = arith.addi %c4_i32_235, %c0_i32_229 : i32
    %514 = vector.broadcast %513 : i32 to vector<8x32xi32>
    %515 = arith.cmpi eq, %4, %514 : vector<8x32xi32>
    %516 = arith.select %515, %512, %491 : vector<8x32xi1>, vector<8x32xf32>
    %c1_i32_236 = arith.constant 1 : i32
    %c1_237 = arith.constant 1 : index
    %517 = arith.index_cast %c1_i32_236 : i32 to index
    %c0_238 = arith.constant 0 : index
    %c0_239 = arith.constant 0 : index
    %518 = vector.load %arg12[%c1_237, %517, %c0_238, %c0_239] : memref<2x4x8x128xf32, #tpu.memory_space<vmem>>, vector<1x1x8x128xf32>
    %519 = vector.shape_cast %518 : vector<1x1x8x128xf32> to vector<8x128xf32>
    %cst_240 = arith.constant dense<0.000000e+00> : vector<8x128xf32>
    %520 = tpu.matmul %512, %304, %cst_240 {dimension_numbers = #tpu.dot_dimension_numbers<[1], [0], [0], [1], [0, 0, 1, 1], [], []>} : vector<8x32xf32>, vector<32x128xf32>, vector<8x128xf32> -> vector<8x128xf32>
    %521 = arith.addf %519, %520 : vector<8x128xf32>
    %522 = vector.extract_strided_slice %521 {offsets = [0, 0], sizes = [8, 96], strides = [1, 1]} : vector<8x128xf32> to vector<8x96xf32>
    %523 = arith.negf %522 : vector<8x96xf32>
    %524 = math.exp %523 : vector<8x96xf32>
    %cst_241 = arith.constant 1.000000e+00 : f32
    %525 = vector.broadcast %cst_241 : f32 to vector<8x96xf32>
    %526 = arith.addf %525, %524 : vector<8x96xf32>
    %527 = arith.divf %525, %526 : vector<8x96xf32>
    %528 = vector.extract_strided_slice %527 {offsets = [0, 0], sizes = [8, 32], strides = [1, 1]} : vector<8x96xf32> to vector<8x32xf32>
    %529 = vector.extract_strided_slice %527 {offsets = [0, 32], sizes = [8, 32], strides = [1, 1]} : vector<8x96xf32> to vector<8x32xf32>
    %530 = vector.extract_strided_slice %527 {offsets = [0, 64], sizes = [8, 32], strides = [1, 1]} : vector<8x96xf32> to vector<8x32xf32>
    %531 = vector.extract_strided_slice %521 {offsets = [0, 96], sizes = [8, 32], strides = [1, 1]} : vector<8x128xf32> to vector<8x32xf32>
    %532 = math.tanh %531 : vector<8x32xf32>
    %533 = arith.mulf %529, %510 : vector<8x32xf32>
    %534 = arith.mulf %528, %532 : vector<8x32xf32>
    %535 = arith.addf %533, %534 : vector<8x32xf32>
    %536 = math.tanh %535 : vector<8x32xf32>
    %537 = arith.mulf %530, %536 : vector<8x32xf32>
    %c4_i32_242 = arith.constant 4 : i32
    %538 = arith.addi %c4_i32_242, %c1_i32_236 : i32
    %539 = vector.broadcast %538 : i32 to vector<8x32xi32>
    %540 = arith.cmpi eq, %4, %539 : vector<8x32xi32>
    %541 = arith.select %540, %537, %516 : vector<8x32xi1>, vector<8x32xf32>
    %c2_i32_243 = arith.constant 2 : i32
    %c1_244 = arith.constant 1 : index
    %542 = arith.index_cast %c2_i32_243 : i32 to index
    %c0_245 = arith.constant 0 : index
    %c0_246 = arith.constant 0 : index
    %543 = vector.load %arg12[%c1_244, %542, %c0_245, %c0_246] : memref<2x4x8x128xf32, #tpu.memory_space<vmem>>, vector<1x1x8x128xf32>
    %544 = vector.shape_cast %543 : vector<1x1x8x128xf32> to vector<8x128xf32>
    %cst_247 = arith.constant dense<0.000000e+00> : vector<8x128xf32>
    %545 = tpu.matmul %537, %304, %cst_247 {dimension_numbers = #tpu.dot_dimension_numbers<[1], [0], [0], [1], [0, 0, 1, 1], [], []>} : vector<8x32xf32>, vector<32x128xf32>, vector<8x128xf32> -> vector<8x128xf32>
    %546 = arith.addf %544, %545 : vector<8x128xf32>
    %547 = vector.extract_strided_slice %546 {offsets = [0, 0], sizes = [8, 96], strides = [1, 1]} : vector<8x128xf32> to vector<8x96xf32>
    %548 = arith.negf %547 : vector<8x96xf32>
    %549 = math.exp %548 : vector<8x96xf32>
    %cst_248 = arith.constant 1.000000e+00 : f32
    %550 = vector.broadcast %cst_248 : f32 to vector<8x96xf32>
    %551 = arith.addf %550, %549 : vector<8x96xf32>
    %552 = arith.divf %550, %551 : vector<8x96xf32>
    %553 = vector.extract_strided_slice %552 {offsets = [0, 0], sizes = [8, 32], strides = [1, 1]} : vector<8x96xf32> to vector<8x32xf32>
    %554 = vector.extract_strided_slice %552 {offsets = [0, 32], sizes = [8, 32], strides = [1, 1]} : vector<8x96xf32> to vector<8x32xf32>
    %555 = vector.extract_strided_slice %552 {offsets = [0, 64], sizes = [8, 32], strides = [1, 1]} : vector<8x96xf32> to vector<8x32xf32>
    %556 = vector.extract_strided_slice %546 {offsets = [0, 96], sizes = [8, 32], strides = [1, 1]} : vector<8x128xf32> to vector<8x32xf32>
    %557 = math.tanh %556 : vector<8x32xf32>
    %558 = arith.mulf %554, %535 : vector<8x32xf32>
    %559 = arith.mulf %553, %557 : vector<8x32xf32>
    %560 = arith.addf %558, %559 : vector<8x32xf32>
    %561 = math.tanh %560 : vector<8x32xf32>
    %562 = arith.mulf %555, %561 : vector<8x32xf32>
    %c4_i32_249 = arith.constant 4 : i32
    %563 = arith.addi %c4_i32_249, %c2_i32_243 : i32
    %564 = vector.broadcast %563 : i32 to vector<8x32xi32>
    %565 = arith.cmpi eq, %4, %564 : vector<8x32xi32>
    %566 = arith.select %565, %562, %541 : vector<8x32xi1>, vector<8x32xf32>
    %c3_i32_250 = arith.constant 3 : i32
    %c1_251 = arith.constant 1 : index
    %567 = arith.index_cast %c3_i32_250 : i32 to index
    %c0_252 = arith.constant 0 : index
    %c0_253 = arith.constant 0 : index
    %568 = vector.load %arg12[%c1_251, %567, %c0_252, %c0_253] : memref<2x4x8x128xf32, #tpu.memory_space<vmem>>, vector<1x1x8x128xf32>
    %569 = vector.shape_cast %568 : vector<1x1x8x128xf32> to vector<8x128xf32>
    %cst_254 = arith.constant dense<0.000000e+00> : vector<8x128xf32>
    %570 = tpu.matmul %562, %304, %cst_254 {dimension_numbers = #tpu.dot_dimension_numbers<[1], [0], [0], [1], [0, 0, 1, 1], [], []>} : vector<8x32xf32>, vector<32x128xf32>, vector<8x128xf32> -> vector<8x128xf32>
    %571 = arith.addf %569, %570 : vector<8x128xf32>
    %572 = vector.extract_strided_slice %571 {offsets = [0, 0], sizes = [8, 96], strides = [1, 1]} : vector<8x128xf32> to vector<8x96xf32>
    %573 = arith.negf %572 : vector<8x96xf32>
    %574 = math.exp %573 : vector<8x96xf32>
    %cst_255 = arith.constant 1.000000e+00 : f32
    %575 = vector.broadcast %cst_255 : f32 to vector<8x96xf32>
    %576 = arith.addf %575, %574 : vector<8x96xf32>
    %577 = arith.divf %575, %576 : vector<8x96xf32>
    %578 = vector.extract_strided_slice %577 {offsets = [0, 0], sizes = [8, 32], strides = [1, 1]} : vector<8x96xf32> to vector<8x32xf32>
    %579 = vector.extract_strided_slice %577 {offsets = [0, 32], sizes = [8, 32], strides = [1, 1]} : vector<8x96xf32> to vector<8x32xf32>
    %580 = vector.extract_strided_slice %577 {offsets = [0, 64], sizes = [8, 32], strides = [1, 1]} : vector<8x96xf32> to vector<8x32xf32>
    %581 = vector.extract_strided_slice %571 {offsets = [0, 96], sizes = [8, 32], strides = [1, 1]} : vector<8x128xf32> to vector<8x32xf32>
    %582 = math.tanh %581 : vector<8x32xf32>
    %583 = arith.mulf %579, %560 : vector<8x32xf32>
    %584 = arith.mulf %578, %582 : vector<8x32xf32>
    %585 = arith.addf %583, %584 : vector<8x32xf32>
    %586 = math.tanh %585 : vector<8x32xf32>
    %587 = arith.mulf %580, %586 : vector<8x32xf32>
    %c4_i32_256 = arith.constant 4 : i32
    %588 = arith.addi %c4_i32_256, %c3_i32_250 : i32
    %589 = vector.broadcast %588 : i32 to vector<8x32xi32>
    %590 = arith.cmpi eq, %4, %589 : vector<8x32xi32>
    %591 = arith.select %590, %587, %566 : vector<8x32xi1>, vector<8x32xf32>
    %c4_i32_257 = arith.constant 4 : i32
    %c0_258 = arith.constant 0 : index
    %c0_259 = arith.constant 0 : index
    %592 = vector.load %arg9[%c0_258, %c0_259] : memref<32x128xf32, #tpu.memory_space<vmem>>, vector<32x128xf32>
    %cst_260 = arith.constant dense<0.000000e+00> : vector<8x128xf32>
    %593 = tpu.matmul %591, %592, %cst_260 {dimension_numbers = #tpu.dot_dimension_numbers<[1], [0], [0], [1], [0, 0, 1, 1], [], []>} : vector<8x32xf32>, vector<32x128xf32>, vector<8x128xf32> -> vector<8x128xf32>
    %c0_261 = arith.constant 0 : index
    %c0_262 = arith.constant 0 : index
    %594 = vector.load %arg10[%c0_261, %c0_262] : memref<1x128xf32, #tpu.memory_space<vmem>>, vector<1x128xf32>
    %595 = vector.broadcast %594 : vector<1x128xf32> to vector<8x128xf32>
    %596 = arith.addf %593, %595 : vector<8x128xf32>
    %c0_263 = arith.constant 0 : index
    %c0_264 = arith.constant 0 : index
    %597 = vector.load %arg11[%c0_263, %c0_264] : memref<8x128xf32, #tpu.memory_space<vmem>>, vector<8x128xf32>
    tpu.vector_store %arg11[%c0_263, %c0_264], %596 {strides = array<i32>} : memref<8x128xf32, #tpu.memory_space<vmem>>, vector<8x128xf32>,
    return
  }
  func.func @transform_0(%arg0: i32) -> (i32, i32, i32) {
    %c0_i32 = arith.constant 0 : i32
    %c0_i32_0 = arith.constant 0 : i32
    %c0_i32_1 = arith.constant 0 : i32
    return %c0_i32, %arg0, %c0_i32_0 : i32, i32, i32
  }
  func.func @transform_1(%arg0: i32) -> (i32, i32) {
    %c0_i32 = arith.constant 0 : i32
    %c0_i32_0 = arith.constant 0 : i32
    return %arg0, %c0_i32 : i32, i32
  }
  func.func @transform_2(%arg0: i32) -> (i32, i32) {
    %c0_i32 = arith.constant 0 : i32
    %c0_i32_0 = arith.constant 0 : i32
    %c0_i32_1 = arith.constant 0 : i32
    return %c0_i32, %c0_i32_0 : i32, i32
  }
  func.func @transform_3(%arg0: i32) -> (i32, i32) {
    %c0_i32 = arith.constant 0 : i32
    %c0_i32_0 = arith.constant 0 : i32
    %c0_i32_1 = arith.constant 0 : i32
    return %c0_i32, %c0_i32_0 : i32, i32
  }
  func.func @transform_4(%arg0: i32) -> (i32, i32) {
    %c0_i32 = arith.constant 0 : i32
    %c0_i32_0 = arith.constant 0 : i32
    %c0_i32_1 = arith.constant 0 : i32
    return %c0_i32, %c0_i32_0 : i32, i32
  }
  func.func @transform_5(%arg0: i32) -> (i32, i32) {
    %c0_i32 = arith.constant 0 : i32
    %c0_i32_0 = arith.constant 0 : i32
    %c0_i32_1 = arith.constant 0 : i32
    return %c0_i32, %c0_i32_0 : i32, i32
  }
  func.func @transform_6(%arg0: i32) -> (i32, i32) {
    %c0_i32 = arith.constant 0 : i32
    %c0_i32_0 = arith.constant 0 : i32
    %c0_i32_1 = arith.constant 0 : i32
    return %c0_i32, %c0_i32_0 : i32, i32
  }
  func.func @transform_7(%arg0: i32) -> (i32, i32) {
    %c0_i32 = arith.constant 0 : i32
    %c0_i32_0 = arith.constant 0 : i32
    %c0_i32_1 = arith.constant 0 : i32
    return %c0_i32, %c0_i32_0 : i32, i32
  }
  func.func @transform_8(%arg0: i32) -> (i32, i32) {
    %c0_i32 = arith.constant 0 : i32
    %c0_i32_0 = arith.constant 0 : i32
    %c0_i32_1 = arith.constant 0 : i32
    return %c0_i32, %c0_i32_0 : i32, i32
  }
  func.func @transform_9(%arg0: i32) -> (i32, i32) {
    %c0_i32 = arith.constant 0 : i32
    %c0_i32_0 = arith.constant 0 : i32
    %c0_i32_1 = arith.constant 0 : i32
    return %c0_i32, %c0_i32_0 : i32, i32
  }
  func.func @transform_10(%arg0: i32) -> (i32, i32) {
    %c0_i32 = arith.constant 0 : i32
    %c0_i32_0 = arith.constant 0 : i32
    return %arg0, %c0_i32 : i32, i32
  }
}

</mosaic_0001>

<llo_original>
// kernel: tpu_custom_call.1
$region0: #{tpu_custom_call.1}
  #allocation0 [shape = 'u32[]', space=smem, size = 0x4, offset = 0x4, fixed_abs, tag = 'smem constant byte address 0x4 - core index']
  #allocation1 [shape = 'u32[144,128]{1,0:T(1,128)}', space=vmem, size = 0x12000, scoped, tag = 'internal scratch']
  #allocation2 [shape = 'f32[2,4,8,128]{3,2,1,0:T(8,128)}', space=vmem, size = 0x8000, scoped, tag = 'scratch operand']
  #allocation3 [shape = 'f32[8,8,32]{2,1,0:T(8,128)}', space=vmem, size = 0x8000, scoped, tag = 'scratch operand']
  %s0 = inlined_call_operand.hbm [shape: f32[8,8,16], index: 0, kind: input, shape index: {}]
  %s1 = inlined_call_operand.vmem [shape: s32[8,1], index: 1, kind: input, shape index: {}]
  %s2 = inlined_call_operand.hbm [shape: f32[16,128], index: 2, kind: input, shape index: {}]
  %s3 = inlined_call_operand.hbm [shape: f32[32,128], index: 3, kind: input, shape index: {}]
  %s4 = inlined_call_operand.vmem [shape: f32[1,128], index: 4, kind: input, shape index: {}]
  %s5 = inlined_call_operand.hbm [shape: f32[32,128], index: 5, kind: input, shape index: {}]
  %s6 = inlined_call_operand.hbm [shape: f32[32,128], index: 6, kind: input, shape index: {}]
  %s7 = inlined_call_operand.vmem [shape: f32[1,128], index: 7, kind: input, shape index: {}]
  %s8 = inlined_call_operand.hbm [shape: f32[32,128], index: 8, kind: input, shape index: {}]
  %s9 = inlined_call_operand.vmem [shape: f32[1,128], index: 9, kind: input, shape index: {}]
  %s10 = inlined_call_operand.hbm [shape: f32[8,128], index: 10, kind: output, shape index: {}]
  %s11 = sld [smem:[#allocation0]]
  $region74: #{tpu_custom_call.1} parent=0
    _
  %s13 = ssub.s32 1, %s11
  %s14 = scalar_select 0, %s13, %s11
  $region1: #{tpu_custom_call.1} parent=0
    #allocation4 [shape = 'u8[32768]{0}', space=vmem, size = 0x8000, scoped, tag = 'input window, operand 0, single buffered']
    #allocation5 [shape = 's32[1]{0}', space=sflag, size = 0x4, scoped, tag = 'scoped memory for tpu_custom_call.1']
    #allocation6 [shape = 's32[1]{0}', space=sflag, size = 0x4, scoped, tag = 'scoped memory for tpu_custom_call.1']
    #allocation7 [shape = 'u8[8192]{0}', space=vmem, size = 0x2000, scoped, tag = 'input window, operand 2, single buffered']
    #allocation8 [shape = 's32[1]{0}', space=sflag, size = 0x4, scoped, tag = 'scoped memory for tpu_custom_call.1']
    #allocation9 [shape = 'u8[16384]{0}', space=vmem, size = 0x4000, scoped, tag = 'input window, operand 3, single buffered']
    #allocation10 [shape = 'u8[16384]{0}', space=vmem, size = 0x4000, scoped, tag = 'input window, operand 5, single buffered']
    #allocation11 [shape = 's32[1]{0}', space=sflag, size = 0x4, scoped, tag = 'scoped memory for tpu_custom_call.1']
    #allocation12 [shape = 'u8[16384]{0}', space=vmem, size = 0x4000, scoped, tag = 'input window, operand 6, single buffered']
    #allocation13 [shape = 'u8[16384]{0}', space=vmem, size = 0x4000, scoped, tag = 'input window, operand 8, single buffered']
    #allocation14 [shape = 's32[1]{0}', space=sflag, size = 0x4, scoped, tag = 'scoped memory for tpu_custom_call.1']
    #allocation15 [shape = 'u8[4096]{0}', space=vmem, size = 0x1000, scoped, tag = 'output window, operand 0, single buffered']
    %15 = vsyncpa [#allocation5], 0
    %16 = vsyncpa [#allocation8], 0
    %17 = vsyncpa [#allocation11], 0
    %18 = vsyncpa [#allocation14], 0
    %19 = vsyncpa [#allocation6], 0
    // Predicated region
    $region2: #{tpu_custom_call.1} parent=1 // pred_check
      _
    $region3: #{tpu_custom_call.1} parent=1 // pred_check_branch
      %21 = sbr.rel (0) target = $region5
    $region4: #{tpu_custom_call.1} parent=1 // pred_region
      %s23 = ssub.s32 1024, 1024
      %24 = vsyncadd [#allocation5], %s23
      %s25 = sshll.u32 [#allocation4], 4
      %s26 = int_to_ptr.vmem [resolvable:$true] %s25
      %31 = dma.hbm_to_vmem [thread:$0]  %s0, 1024, %s26, [#allocation5], 128, 128, 8
    $region5: #{tpu_custom_call.1} parent=1 // pred_fallthru
      _
    // Predicated region
    $region6: #{tpu_custom_call.1} parent=1 // pred_check
      _
    $region7: #{tpu_custom_call.1} parent=1 // pred_check_branch
      %33 = sbr.rel (0) target = $region9
    $region8: #{tpu_custom_call.1} parent=1 // pred_region
      _
    $region9: #{tpu_custom_call.1} parent=1 // pred_fallthru
      _
    // Predicated region
    $region10: #{tpu_custom_call.1} parent=1 // pred_check
      _
    $region11: #{tpu_custom_call.1} parent=1 // pred_check_branch
      %35 = sbr.rel (0) target = $region13
    $region12: #{tpu_custom_call.1} parent=1 // pred_region
      %s37 = ssub.s32 256, 256
      %38 = vsyncadd [#allocation8], %s37
      %s39 = sshll.u32 [#allocation7], 4
      %s40 = int_to_ptr.vmem [resolvable:$true] %s39
      %45 = dma.hbm_to_vmem [thread:$0]  %s2, 256, %s40, [#allocation8], 128, 128, 8
    $region13: #{tpu_custom_call.1} parent=1 // pred_fallthru
      _
    // Predicated region
    $region14: #{tpu_custom_call.1} parent=1 // pred_check
      _
    $region15: #{tpu_custom_call.1} parent=1 // pred_check_branch
      %47 = sbr.rel (0) target = $region17
    $region16: #{tpu_custom_call.1} parent=1 // pred_region
      %s49 = ssub.s32 512, 512
      %50 = vsyncadd [#allocation8], %s49
      %s51 = sshll.u32 [#allocation9], 4
      %s52 = int_to_ptr.vmem [resolvable:$true] %s51
      %57 = dma.hbm_to_vmem [thread:$0]  %s3, 512, %s52, [#allocation8], 128, 128, 8
    $region17: #{tpu_custom_call.1} parent=1 // pred_fallthru
      _
    // Predicated region
    $region18: #{tpu_custom_call.1} parent=1 // pred_check
      _
    $region19: #{tpu_custom_call.1} parent=1 // pred_check_branch
      %59 = sbr.rel (0) target = $region21
    $region20: #{tpu_custom_call.1} parent=1 // pred_region
      _
    $region21: #{tpu_custom_call.1} parent=1 // pred_fallthru
      _
    // Predicated region
    $region22: #{tpu_custom_call.1} parent=1 // pred_check
      _
    $region23: #{tpu_custom_call.1} parent=1 // pred_check_branch
      %61 = sbr.rel (0) target = $region25
    $region24: #{tpu_custom_call.1} parent=1 // pred_region
      %s63 = ssub.s32 512, 512
      %64 = vsyncadd [#allocation11], %s63
      %s65 = sshll.u32 [#allocation10], 4
      %s66 = int_to_ptr.vmem [resolvable:$true] %s65
      %71 = dma.hbm_to_vmem [thread:$0]  %s5, 512, %s66, [#allocation11], 128, 128, 8
    $region25: #{tpu_custom_call.1} parent=1 // pred_fallthru
      _
    // Predicated region
    $region26: #{tpu_custom_call.1} parent=1 // pred_check
      _
    $region27: #{tpu_custom_call.1} parent=1 // pred_check_branch
      %73 = sbr.rel (0) target = $region29
    $region28: #{tpu_custom_call.1} parent=1 // pred_region
      %s75 = ssub.s32 512, 512
      %76 = vsyncadd [#allocation11], %s75
      %s77 = sshll.u32 [#allocation12], 4
      %s78 = int_to_ptr.vmem [resolvable:$true] %s77
      %83 = dma.hbm_to_vmem [thread:$0]  %s6, 512, %s78, [#allocation11], 128, 128, 8
    $region29: #{tpu_custom_call.1} parent=1 // pred_fallthru
      _
    // Predicated region
    $region30: #{tpu_custom_call.1} parent=1 // pred_check
      _
    $region31: #{tpu_custom_call.1} parent=1 // pred_check_branch
      %85 = sbr.rel (0) target = $region33
    $region32: #{tpu_custom_call.1} parent=1 // pred_region
      _
    $region33: #{tpu_custom_call.1} parent=1 // pred_fallthru
      _
    // Predicated region
    $region34: #{tpu_custom_call.1} parent=1 // pred_check
      _
    $region35: #{tpu_custom_call.1} parent=1 // pred_check_branch
      %87 = sbr.rel (0) target = $region37
    $region36: #{tpu_custom_call.1} parent=1 // pred_region
      %s89 = ssub.s32 512, 512
      %90 = vsyncadd [#allocation14], %s89
      %s91 = sshll.u32 [#allocation13], 4
      %s92 = int_to_ptr.vmem [resolvable:$true] %s91
      %97 = dma.hbm_to_vmem [thread:$0]  %s8, 512, %s92, [#allocation14], 128, 128, 8
    $region37: #{tpu_custom_call.1} parent=1 // pred_fallthru
      _
    // Predicated region
    $region38: #{tpu_custom_call.1} parent=1 // pred_check
      _
    $region39: #{tpu_custom_call.1} parent=1 // pred_check_branch
      %99 = sbr.rel (0) target = $region41
    $region40: #{tpu_custom_call.1} parent=1 // pred_region
      _
    $region41: #{tpu_custom_call.1} parent=1 // pred_fallthru
      _
    // Predicated region
    $region42: #{tpu_custom_call.1} parent=1 // pred_check
      _
    $region43: #{tpu_custom_call.1} parent=1 // pred_check_branch
      %101 = sbr.rel (0) target = $region45
    $region44: #{tpu_custom_call.1} parent=1 // pred_region
      %102 = dma.done [#allocation5], 1024
    $region45: #{tpu_custom_call.1} parent=1 // pred_fallthru
      _
    // Predicated region
    $region46: #{tpu_custom_call.1} parent=1 // pred_check
      _
    $region47: #{tpu_custom_call.1} parent=1 // pred_check_branch
      %104 = sbr.rel (0) target = $region49
    $region48: #{tpu_custom_call.1} parent=1 // pred_region
      %105 = dma.done [#allocation8], 256
    $region49: #{tpu_custom_call.1} parent=1 // pred_fallthru
      _
    // Predicated region
    $region50: #{tpu_custom_call.1} parent=1 // pred_check
      _
    $region51: #{tpu_custom_call.1} parent=1 // pred_check_branch
      %107 = sbr.rel (0) target = $region53
    $region52: #{tpu_custom_call.1} parent=1 // pred_region
      %108 = dma.done [#allocation8], 512
    $region53: #{tpu_custom_call.1} parent=1 // pred_fallthru
      _
    // Predicated region
    $region54: #{tpu_custom_call.1} parent=1 // pred_check
      _
    $region55: #{tpu_custom_call.1} parent=1 // pred_check_branch
      %110 = sbr.rel (0) target = $region57
    $region56: #{tpu_custom_call.1} parent=1 // pred_region
      %111 = dma.done [#allocation11], 512
    $region57: #{tpu_custom_call.1} parent=1 // pred_fallthru
      _
    // Predicated region
    $region58: #{tpu_custom_call.1} parent=1 // pred_check
      _
    $region59: #{tpu_custom_call.1} parent=1 // pred_check_branch
      %113 = sbr.rel (0) target = $region61
    $region60: #{tpu_custom_call.1} parent=1 // pred_region
      %114 = dma.done [#allocation11], 512
    $region61: #{tpu_custom_call.1} parent=1 // pred_fallthru
      _
    // Predicated region
    $region62: #{tpu_custom_call.1} parent=1 // pred_check
      _
    $region63: #{tpu_custom_call.1} parent=1 // pred_check_branch
      %116 = sbr.rel (0) target = $region65
    $region64: #{tpu_custom_call.1} parent=1 // pred_region
      %117 = dma.done [#allocation14], 512
    $region65: #{tpu_custom_call.1} parent=1 // pred_fallthru
      _
    %v118 = vld [vmem:[%s1] sm:$0xff]
    %v119 = vsub.s32 %v118, 1
    %120 = vset.pattern.permute.xlu0 0
    %121 = vperm.xlu0 %120, %v119
    %v122 = vpop.permute.xlu0 %121
    %v123 = vld [vmem:[#allocation7] sm:$0xff]
    %v124 = vld [vmem:[#allocation7 + $0x8] sm:$0xff]
    %v125 = vld [vmem:[#allocation9] sm:$0xff]
    %v126 = vld [vmem:[#allocation9 + $0x8] sm:$0xff]
    %v127 = vld [vmem:[#allocation9 + $0x10] sm:$0xff]
    %v128 = vld [vmem:[#allocation9 + $0x18] sm:$0xff]
    %v129 = vld [vmem:[%s4] sm:$0x1]
    %v130 = vld [vmem:[#allocation4] sm:$0xff]
    %v132 = vlaneseq
    %v133 = vshrl.u32 %v132, 7
    %v134 = vsub.s32 0, %v133
    %v135 = vrot.slane %v129, %v134
    %vm137 = vcmask 130048
    %v139 = vsel %vm137, %v130, 0
    %141 = vmatprep.subr.mxu0 0.0
    %142 = vmatpush1.msra.mxu0 0.0
    %143 = vmatprep.subr.mxu0 0.0
    %144 = vmatpush1.msra.mxu0 0.0
    %145 = vmatprep.subr.mxu0 0.0
    %146 = vmatpush1.msra.mxu0 0.0
    %147 = vmatprep.subr.mxu0 0.0
    %148 = vmatpush1.msra.mxu0 0.0
    %149 = vmatprep.subr.mxu0 0.0
    %150 = vmatpush1.msra.mxu0 0.0
    %151 = vmatprep.subr.mxu0 0.0
    %152 = vmatpush1.msra.mxu0 0.0
    %153 = vmatprep.subr.mxu0 0.0
    %154 = vmatpush1.msra.mxu0 0.0
    %155 = vmatprep.subr.mxu0 0.0
    %156 = vmatpush1.msra.mxu0 0.0
    %157 = vmatprep.subr.mxu0 0.0
    %158 = vmatpush1.msra.mxu0 0.0
    %159 = vmatprep.subr.mxu0 0.0
    %160 = vmatpush1.msra.mxu0 0.0
    %161 = vmatprep.subr.mxu0 0.0
    %162 = vmatpush1.msra.mxu0 0.0
    %163 = vmatprep.subr.mxu0 0.0
    %164 = vmatpush1.msra.mxu0 0.0
    %165 = vmatprep.subr.mxu0 0.0
    %166 = vmatpush1.msra.mxu0 0.0
    %167 = vmatprep.subr.mxu0 0.0
    %168 = vmatpush1.msra.mxu0 0.0
    %169 = vmatprep.subr.mxu0 0.0
    %170 = vmatpush1.msra.mxu0 %v124
    %171 = vmatprep.subr.mxu0 0.0
    %172 = vmatpush1.msra.mxu0 %v123
    %173 = vmatprep.subr.mxu0 0.0
    %174 = vmatpush2.msra.mxu0 0.0
    %175 = vmatprep.subr.mxu0 0.0
    %176 = vmatpush2.msra.mxu0 0.0
    %177 = vmatprep.subr.mxu0 0.0
    %178 = vmatpush2.msra.mxu0 0.0
    %179 = vmatprep.subr.mxu0 0.0
    %180 = vmatpush2.msra.mxu0 0.0
    %181 = vmatprep.subr.mxu0 0.0
    %182 = vmatpush2.msra.mxu0 0.0
    %183 = vmatprep.subr.mxu0 0.0
    %184 = vmatpush2.msra.mxu0 0.0
    %185 = vmatprep.subr.mxu0 0.0
    %186 = vmatpush2.msra.mxu0 0.0
    %187 = vmatprep.subr.mxu0 0.0
    %188 = vmatpush2.msra.mxu0 0.0
    %189 = vmatprep.subr.mxu0 0.0
    %190 = vmatpush2.msra.mxu0 0.0
    %191 = vmatprep.subr.mxu0 0.0
    %192 = vmatpush2.msra.mxu0 0.0
    %193 = vmatprep.subr.mxu0 0.0
    %194 = vmatpush2.msra.mxu0 0.0
    %195 = vmatprep.subr.mxu0 0.0
    %196 = vmatpush2.msra.mxu0 0.0
    %197 = vmatprep.subr.mxu0 0.0
    %198 = vmatpush2.msra.mxu0 0.0
    %199 = vmatprep.subr.mxu0 0.0
    %200 = vmatpush2.msra.mxu0 0.0
    %201 = vmatprep.subr.mxu0 0.0
    %202 = vmatpush2.msra.mxu0 0.0
    %203 = vmatprep.subr.mxu0 0.0
    %204 = vmatpush2.msra.mxu0 0.0
    %205 = vmatprep.mubr.f32.mxu0 0.0
    %206 = vmatmul.mubr.f32.gmra.mxu0 %v139
    %v207 = vpop.f32.mrf.mxu0
    %v208 = vadd.f32 %v135, %v207
    %v209 = vpop.f32.mrf.mxu0
    %210 = vdwg.mxu0
    %211 = vst [vmem:[#allocation2] sm:$0xff] %v208
    %s212 = scalar_lea.vmem [#allocation4], 8
    %v213 = vld [vmem:[%s212] sm:$0xff]
    %v215 = vsel %vm137, %v213, 0
    %217 = vmatprep.subr.mxu0 0.0
    %218 = vmatpush1.msra.mxu0 0.0
    %219 = vmatprep.subr.mxu0 0.0
    %220 = vmatpush1.msra.mxu0 0.0
    %221 = vmatprep.subr.mxu0 0.0
    %222 = vmatpush1.msra.mxu0 0.0
    %223 = vmatprep.subr.mxu0 0.0
    %224 = vmatpush1.msra.mxu0 0.0
    %225 = vmatprep.subr.mxu0 0.0
    %226 = vmatpush1.msra.mxu0 0.0
    %227 = vmatprep.subr.mxu0 0.0
    %228 = vmatpush1.msra.mxu0 0.0
    %229 = vmatprep.subr.mxu0 0.0
    %230 = vmatpush1.msra.mxu0 0.0
    %231 = vmatprep.subr.mxu0 0.0
    %232 = vmatpush1.msra.mxu0 0.0
    %233 = vmatprep.subr.mxu0 0.0
    %234 = vmatpush1.msra.mxu0 0.0
    %235 = vmatprep.subr.mxu0 0.0
    %236 = vmatpush1.msra.mxu0 0.0
    %237 = vmatprep.subr.mxu0 0.0
    %238 = vmatpush1.msra.mxu0 0.0
    %239 = vmatprep.subr.mxu0 0.0
    %240 = vmatpush1.msra.mxu0 0.0
    %241 = vmatprep.subr.mxu0 0.0
    %242 = vmatpush1.msra.mxu0 0.0
    %243 = vmatprep.subr.mxu0 0.0
    %244 = vmatpush1.msra.mxu0 0.0
    %245 = vmatprep.subr.mxu0 0.0
    %246 = vmatpush1.msra.mxu0 %v124
    %247 = vmatprep.subr.mxu0 0.0
    %248 = vmatpush1.msra.mxu0 %v123
    %249 = vmatprep.subr.mxu0 0.0
    %250 = vmatpush2.msra.mxu0 0.0
    %251 = vmatprep.subr.mxu0 0.0
    %252 = vmatpush2.msra.mxu0 0.0
    %253 = vmatprep.subr.mxu0 0.0
    %254 = vmatpush2.msra.mxu0 0.0
    %255 = vmatprep.subr.mxu0 0.0
    %256 = vmatpush2.msra.mxu0 0.0
    %257 = vmatprep.subr.mxu0 0.0
    %258 = vmatpush2.msra.mxu0 0.0
    %259 = vmatprep.subr.mxu0 0.0
    %260 = vmatpush2.msra.mxu0 0.0
    %261 = vmatprep.subr.mxu0 0.0
    %262 = vmatpush2.msra.mxu0 0.0
    %263 = vmatprep.subr.mxu0 0.0
    %264 = vmatpush2.msra.mxu0 0.0
    %265 = vmatprep.subr.mxu0 0.0
    %266 = vmatpush2.msra.mxu0 0.0
    %267 = vmatprep.subr.mxu0 0.0
    %268 = vmatpush2.msra.mxu0 0.0
    %269 = vmatprep.subr.mxu0 0.0
    %270 = vmatpush2.msra.mxu0 0.0
    %271 = vmatprep.subr.mxu0 0.0
    %272 = vmatpush2.msra.mxu0 0.0
    %273 = vmatprep.subr.mxu0 0.0
    %274 = vmatpush2.msra.mxu0 0.0
    %275 = vmatprep.subr.mxu0 0.0
    %276 = vmatpush2.msra.mxu0 0.0
    %277 = vmatprep.subr.mxu0 0.0
    %278 = vmatpush2.msra.mxu0 0.0
    %279 = vmatprep.subr.mxu0 0.0
    %280 = vmatpush2.msra.mxu0 0.0
    %281 = vmatprep.mubr.f32.mxu0 0.0
    %282 = vmatmul.mubr.f32.gmra.mxu0 %v215
    %v283 = vpop.f32.mrf.mxu0
    %v284 = vadd.f32 %v135, %v283
    %v285 = vpop.f32.mrf.mxu0
    %286 = vdwg.mxu0
    %s287 = scalar_lea.vmem [#allocation2], 8
    %288 = vst [vmem:[%s287] sm:$0xff] %v284
    %s289 = scalar_lea.vmem [#allocation4], 16
    %v290 = vld [vmem:[%s289] sm:$0xff]
    %v292 = vsel %vm137, %v290, 0
    %294 = vmatprep.subr.mxu0 0.0
    %295 = vmatpush1.msra.mxu0 0.0
    %296 = vmatprep.subr.mxu0 0.0
    %297 = vmatpush1.msra.mxu0 0.0
    %298 = vmatprep.subr.mxu0 0.0
    %299 = vmatpush1.msra.mxu0 0.0
    %300 = vmatprep.subr.mxu0 0.0
    %301 = vmatpush1.msra.mxu0 0.0
    %302 = vmatprep.subr.mxu0 0.0
    %303 = vmatpush1.msra.mxu0 0.0
    %304 = vmatprep.subr.mxu0 0.0
    %305 = vmatpush1.msra.mxu0 0.0
    %306 = vmatprep.subr.mxu0 0.0
    %307 = vmatpush1.msra.mxu0 0.0
    %308 = vmatprep.subr.mxu0 0.0
    %309 = vmatpush1.msra.mxu0 0.0
    %310 = vmatprep.subr.mxu0 0.0
    %311 = vmatpush1.msra.mxu0 0.0
    %312 = vmatprep.subr.mxu0 0.0
    %313 = vmatpush1.msra.mxu0 0.0
    %314 = vmatprep.subr.mxu0 0.0
    %315 = vmatpush1.msra.mxu0 0.0
    %316 = vmatprep.subr.mxu0 0.0
    %317 = vmatpush1.msra.mxu0 0.0
    %318 = vmatprep.subr.mxu0 0.0
    %319 = vmatpush1.msra.mxu0 0.0
    %320 = vmatprep.subr.mxu0 0.0
    %321 = vmatpush1.msra.mxu0 0.0
    %322 = vmatprep.subr.mxu0 0.0
    %323 = vmatpush1.msra.mxu0 %v124
    %324 = vmatprep.subr.mxu0 0.0
    %325 = vmatpush1.msra.mxu0 %v123
    %326 = vmatprep.subr.mxu0 0.0
    %327 = vmatpush2.msra.mxu0 0.0
    %328 = vmatprep.subr.mxu0 0.0
    %329 = vmatpush2.msra.mxu0 0.0
    %330 = vmatprep.subr.mxu0 0.0
    %331 = vmatpush2.msra.mxu0 0.0
    %332 = vmatprep.subr.mxu0 0.0
    %333 = vmatpush2.msra.mxu0 0.0
    %334 = vmatprep.subr.mxu0 0.0
    %335 = vmatpush2.msra.mxu0 0.0
    %336 = vmatprep.subr.mxu0 0.0
    %337 = vmatpush2.msra.mxu0 0.0
    %338 = vmatprep.subr.mxu0 0.0
    %339 = vmatpush2.msra.mxu0 0.0
    %340 = vmatprep.subr.mxu0 0.0
    %341 = vmatpush2.msra.mxu0 0.0
    %342 = vmatprep.subr.mxu0 0.0
    %343 = vmatpush2.msra.mxu0 0.0
    %344 = vmatprep.subr.mxu0 0.0
    %345 = vmatpush2.msra.mxu0 0.0
    %346 = vmatprep.subr.mxu0 0.0
    %347 = vmatpush2.msra.mxu0 0.0
    %348 = vmatprep.subr.mxu0 0.0
    %349 = vmatpush2.msra.mxu0 0.0
    %350 = vmatprep.subr.mxu0 0.0
    %351 = vmatpush2.msra.mxu0 0.0
    %352 = vmatprep.subr.mxu0 0.0
    %353 = vmatpush2.msra.mxu0 0.0
    %354 = vmatprep.subr.mxu0 0.0
    %355 = vmatpush2.msra.mxu0 0.0
    %356 = vmatprep.subr.mxu0 0.0
    %357 = vmatpush2.msra.mxu0 0.0
    %358 = vmatprep.mubr.f32.mxu0 0.0
    %359 = vmatmul.mubr.f32.gmra.mxu0 %v292
    %v360 = vpop.f32.mrf.mxu0
    %v361 = vadd.f32 %v135, %v360
    %v362 = vpop.f32.mrf.mxu0
    %363 = vdwg.mxu0
    %s364 = scalar_lea.vmem [#allocation2], 16
    %365 = vst [vmem:[%s364] sm:$0xff] %v361
    %s366 = scalar_lea.vmem [#allocation4], 24
    %v367 = vld [vmem:[%s366] sm:$0xff]
    %v369 = vsel %vm137, %v367, 0
    %371 = vmatprep.subr.mxu0 0.0
    %372 = vmatpush1.msra.mxu0 0.0
    %373 = vmatprep.subr.mxu0 0.0
    %374 = vmatpush1.msra.mxu0 0.0
    %375 = vmatprep.subr.mxu0 0.0
    %376 = vmatpush1.msra.mxu0 0.0
    %377 = vmatprep.subr.mxu0 0.0
    %378 = vmatpush1.msra.mxu0 0.0
    %379 = vmatprep.subr.mxu0 0.0
    %380 = vmatpush1.msra.mxu0 0.0
    %381 = vmatprep.subr.mxu0 0.0
    %382 = vmatpush1.msra.mxu0 0.0
    %383 = vmatprep.subr.mxu0 0.0
    %384 = vmatpush1.msra.mxu0 0.0
    %385 = vmatprep.subr.mxu0 0.0
    %386 = vmatpush1.msra.mxu0 0.0
    %387 = vmatprep.subr.mxu0 0.0
    %388 = vmatpush1.msra.mxu0 0.0
    %389 = vmatprep.subr.mxu0 0.0
    %390 = vmatpush1.msra.mxu0 0.0
    %391 = vmatprep.subr.mxu0 0.0
    %392 = vmatpush1.msra.mxu0 0.0
    %393 = vmatprep.subr.mxu0 0.0
    %394 = vmatpush1.msra.mxu0 0.0
    %395 = vmatprep.subr.mxu0 0.0
    %396 = vmatpush1.msra.mxu0 0.0
    %397 = vmatprep.subr.mxu0 0.0
    %398 = vmatpush1.msra.mxu0 0.0
    %399 = vmatprep.subr.mxu0 0.0
    %400 = vmatpush1.msra.mxu0 %v124
    %401 = vmatprep.subr.mxu0 0.0
    %402 = vmatpush1.msra.mxu0 %v123
    %403 = vmatprep.subr.mxu0 0.0
    %404 = vmatpush2.msra.mxu0 0.0
    %405 = vmatprep.subr.mxu0 0.0
    %406 = vmatpush2.msra.mxu0 0.0
    %407 = vmatprep.subr.mxu0 0.0
    %408 = vmatpush2.msra.mxu0 0.0
    %409 = vmatprep.subr.mxu0 0.0
    %410 = vmatpush2.msra.mxu0 0.0
    %411 = vmatprep.subr.mxu0 0.0
    %412 = vmatpush2.msra.mxu0 0.0
    %413 = vmatprep.subr.mxu0 0.0
    %414 = vmatpush2.msra.mxu0 0.0
    %415 = vmatprep.subr.mxu0 0.0
    %416 = vmatpush2.msra.mxu0 0.0
    %417 = vmatprep.subr.mxu0 0.0
    %418 = vmatpush2.msra.mxu0 0.0
    %419 = vmatprep.subr.mxu0 0.0
    %420 = vmatpush2.msra.mxu0 0.0
    %421 = vmatprep.subr.mxu0 0.0
    %422 = vmatpush2.msra.mxu0 0.0
    %423 = vmatprep.subr.mxu0 0.0
    %424 = vmatpush2.msra.mxu0 0.0
    %425 = vmatprep.subr.mxu0 0.0
    %426 = vmatpush2.msra.mxu0 0.0
    %427 = vmatprep.subr.mxu0 0.0
    %428 = vmatpush2.msra.mxu0 0.0
    %429 = vmatprep.subr.mxu0 0.0
    %430 = vmatpush2.msra.mxu0 0.0
    %431 = vmatprep.subr.mxu0 0.0
    %432 = vmatpush2.msra.mxu0 0.0
    %433 = vmatprep.subr.mxu0 0.0
    %434 = vmatpush2.msra.mxu0 0.0
    %435 = vmatprep.mubr.f32.mxu0 0.0
    %436 = vmatmul.mubr.f32.gmra.mxu0 %v369
    %v437 = vpop.f32.mrf.mxu0
    %v438 = vadd.f32 %v135, %v437
    %v439 = vpop.f32.mrf.mxu0
    %440 = vdwg.mxu0
    %s441 = scalar_lea.vmem [#allocation2], 24
    %442 = vst [vmem:[%s441] sm:$0xff] %v438
    %s443 = scalar_lea.vmem [#allocation4], 32
    %v444 = vld [vmem:[%s443] sm:$0xff]
    %v446 = vsel %vm137, %v444, 0
    %448 = vmatprep.subr.mxu0 0.0
    %449 = vmatpush1.msra.mxu0 0.0
    %450 = vmatprep.subr.mxu0 0.0
    %451 = vmatpush1.msra.mxu0 0.0
    %452 = vmatprep.subr.mxu0 0.0
    %453 = vmatpush1.msra.mxu0 0.0
    %454 = vmatprep.subr.mxu0 0.0
    %455 = vmatpush1.msra.mxu0 0.0
    %456 = vmatprep.subr.mxu0 0.0
    %457 = vmatpush1.msra.mxu0 0.0
    %458 = vmatprep.subr.mxu0 0.0
    %459 = vmatpush1.msra.mxu0 0.0
    %460 = vmatprep.subr.mxu0 0.0
    %461 = vmatpush1.msra.mxu0 0.0
    %462 = vmatprep.subr.mxu0 0.0
    %463 = vmatpush1.msra.mxu0 0.0
    %464 = vmatprep.subr.mxu0 0.0
    %465 = vmatpush1.msra.mxu0 0.0
    %466 = vmatprep.subr.mxu0 0.0
    %467 = vmatpush1.msra.mxu0 0.0
    %468 = vmatprep.subr.mxu0 0.0
    %469 = vmatpush1.msra.mxu0 0.0
    %470 = vmatprep.subr.mxu0 0.0
    %471 = vmatpush1.msra.mxu0 0.0
    %472 = vmatprep.subr.mxu0 0.0
    %473 = vmatpush1.msra.mxu0 0.0
    %474 = vmatprep.subr.mxu0 0.0
    %475 = vmatpush1.msra.mxu0 0.0
    %476 = vmatprep.subr.mxu0 0.0
    %477 = vmatpush1.msra.mxu0 %v124
    %478 = vmatprep.subr.mxu0 0.0
    %479 = vmatpush1.msra.mxu0 %v123
    %480 = vmatprep.subr.mxu0 0.0
    %481 = vmatpush2.msra.mxu0 0.0
    %482 = vmatprep.subr.mxu0 0.0
    %483 = vmatpush2.msra.mxu0 0.0
    %484 = vmatprep.subr.mxu0 0.0
    %485 = vmatpush2.msra.mxu0 0.0
    %486 = vmatprep.subr.mxu0 0.0
    %487 = vmatpush2.msra.mxu0 0.0
    %488 = vmatprep.subr.mxu0 0.0
    %489 = vmatpush2.msra.mxu0 0.0
    %490 = vmatprep.subr.mxu0 0.0
    %491 = vmatpush2.msra.mxu0 0.0
    %492 = vmatprep.subr.mxu0 0.0
    %493 = vmatpush2.msra.mxu0 0.0
    %494 = vmatprep.subr.mxu0 0.0
    %495 = vmatpush2.msra.mxu0 0.0
    %496 = vmatprep.subr.mxu0 0.0
    %497 = vmatpush2.msra.mxu0 0.0
    %498 = vmatprep.subr.mxu0 0.0
    %499 = vmatpush2.msra.mxu0 0.0
    %500 = vmatprep.subr.mxu0 0.0
    %501 = vmatpush2.msra.mxu0 0.0
    %502 = vmatprep.subr.mxu0 0.0
    %503 = vmatpush2.msra.mxu0 0.0
    %504 = vmatprep.subr.mxu0 0.0
    %505 = vmatpush2.msra.mxu0 0.0
    %506 = vmatprep.subr.mxu0 0.0
    %507 = vmatpush2.msra.mxu0 0.0
    %508 = vmatprep.subr.mxu0 0.0
    %509 = vmatpush2.msra.mxu0 0.0
    %510 = vmatprep.subr.mxu0 0.0
    %511 = vmatpush2.msra.mxu0 0.0
    %512 = vmatprep.mubr.f32.mxu0 0.0
    %513 = vmatmul.mubr.f32.gmra.mxu0 %v446
    %v514 = vpop.f32.mrf.mxu0
    %v515 = vadd.f32 %v135, %v514
    %v516 = vpop.f32.mrf.mxu0
    %517 = vdwg.mxu0
    %s518 = scalar_lea.vmem [#allocation2], 32
    %519 = vst [vmem:[%s518] sm:$0xff] %v515
    %v520 = vld [vmem:[#allocation2] sm:$0xff]
    %vm521 = vcmask 261120
    %v523 = vsel %vm521, 0.0, 0
    %525 = vmatprep.subr.mxu0 0.0
    %526 = vmatpush1.msra.mxu0 0.0
    %527 = vmatprep.subr.mxu0 0.0
    %528 = vmatpush1.msra.mxu0 0.0
    %529 = vmatprep.subr.mxu0 0.0
    %530 = vmatpush1.msra.mxu0 0.0
    %531 = vmatprep.subr.mxu0 0.0
    %532 = vmatpush1.msra.mxu0 0.0
    %533 = vmatprep.subr.mxu0 0.0
    %534 = vmatpush1.msra.mxu0 0.0
    %535 = vmatprep.subr.mxu0 0.0
    %536 = vmatpush1.msra.mxu0 0.0
    %537 = vmatprep.subr.mxu0 0.0
    %538 = vmatpush1.msra.mxu0 0.0
    %539 = vmatprep.subr.mxu0 0.0
    %540 = vmatpush1.msra.mxu0 0.0
    %541 = vmatprep.subr.mxu0 0.0
    %542 = vmatpush1.msra.mxu0 0.0
    %543 = vmatprep.subr.mxu0 0.0
    %544 = vmatpush1.msra.mxu0 0.0
    %545 = vmatprep.subr.mxu0 0.0
    %546 = vmatpush1.msra.mxu0 0.0
    %547 = vmatprep.subr.mxu0 0.0
    %548 = vmatpush1.msra.mxu0 0.0
    %549 = vmatprep.subr.mxu0 0.0
    %550 = vmatpush1.msra.mxu0 %v128
    %551 = vmatprep.subr.mxu0 0.0
    %552 = vmatpush1.msra.mxu0 %v127
    %553 = vmatprep.subr.mxu0 0.0
    %554 = vmatpush1.msra.mxu0 %v126
    %555 = vmatprep.subr.mxu0 0.0
    %556 = vmatpush1.msra.mxu0 %v125
    %557 = vmatprep.subr.mxu0 0.0
    %558 = vmatpush2.msra.mxu0 0.0
    %559 = vmatprep.subr.mxu0 0.0
    %560 = vmatpush2.msra.mxu0 0.0
    %561 = vmatprep.subr.mxu0 0.0
    %562 = vmatpush2.msra.mxu0 0.0
    %563 = vmatprep.subr.mxu0 0.0
    %564 = vmatpush2.msra.mxu0 0.0
    %565 = vmatprep.subr.mxu0 0.0
    %566 = vmatpush2.msra.mxu0 0.0
    %567 = vmatprep.subr.mxu0 0.0
    %568 = vmatpush2.msra.mxu0 0.0
    %569 = vmatprep.subr.mxu0 0.0
    %570 = vmatpush2.msra.mxu0 0.0
    %571 = vmatprep.subr.mxu0 0.0
    %572 = vmatpush2.msra.mxu0 0.0
    %573 = vmatprep.subr.mxu0 0.0
    %574 = vmatpush2.msra.mxu0 0.0
    %575 = vmatprep.subr.mxu0 0.0
    %576 = vmatpush2.msra.mxu0 0.0
    %577 = vmatprep.subr.mxu0 0.0
    %578 = vmatpush2.msra.mxu0 0.0
    %579 = vmatprep.subr.mxu0 0.0
    %580 = vmatpush2.msra.mxu0 0.0
    %581 = vmatprep.subr.mxu0 0.0
    %582 = vmatpush2.msra.mxu0 0.0
    %583 = vmatprep.subr.mxu0 0.0
    %584 = vmatpush2.msra.mxu0 0.0
    %585 = vmatprep.subr.mxu0 0.0
    %586 = vmatpush2.msra.mxu0 0.0
    %587 = vmatprep.subr.mxu0 0.0
    %588 = vmatpush2.msra.mxu0 0.0
    %589 = vmatprep.mubr.f32.mxu0 0.0
    %590 = vmatmul.mubr.f32.gmra.mxu0 %v523
    %v591 = vpop.f32.mrf.mxu0
    %v592 = vadd.f32 0.0, %v591
    %v593 = vpop.f32.mrf.mxu0
    %594 = vdwg.mxu0
    %v595 = vadd.f32 %v520, %v592
    %v596 = vxor.u32 %v595, 2147483648
    %v597 = vmul.f32 %v596, 1.442695
    %v598 = vpow.pop %v597
    %v599 = vadd.f32 %v598, 1.0
    %v600 = vrcp.pop %v599
    %v601 = vmul.f32 1.0, %v600
    %v602 = vtanh.pop %v595
    %v603 = vmul.f32 %v601, 0.0
    %605 = vrot.lane.b32.xlu0 %v602, 32
    %v606 = vpop.permute.xlu0 %605
    %v608 = vmul.f32 %v601, %v606
    %610 = vrot.lane.b32.xlu0 %v608, 32
    %v611 = vpop.permute.xlu0 %610
    %v613 = vadd.f32 %v603, %v611
    %v614 = vtanh.pop %v613
    %616 = vrot.lane.b32.xlu0 %v614, 32
    %v617 = vpop.permute.xlu0 %616
    %v619 = vmul.f32 %v601, %v617
    %621 = vrot.lane.b32.xlu0 %v619, 64
    %v622 = vpop.permute.xlu0 %621
    %624 = vst.msk [vmem:[#allocation3] sm:$0xff] %vm521, %v622
    %s625 = scalar_lea.vmem [#allocation4], 40
    %v626 = vld [vmem:[%s625] sm:$0xff]
    %v628 = vsel %vm137, %v626, 0
    %630 = vmatprep.subr.mxu0 0.0
    %631 = vmatpush1.msra.mxu0 0.0
    %632 = vmatprep.subr.mxu0 0.0
    %633 = vmatpush1.msra.mxu0 0.0
    %634 = vmatprep.subr.mxu0 0.0
    %635 = vmatpush1.msra.mxu0 0.0
    %636 = vmatprep.subr.mxu0 0.0
    %637 = vmatpush1.msra.mxu0 0.0
    %638 = vmatprep.subr.mxu0 0.0
    %639 = vmatpush1.msra.mxu0 0.0
    %640 = vmatprep.subr.mxu0 0.0
    %641 = vmatpush1.msra.mxu0 0.0
    %642 = vmatprep.subr.mxu0 0.0
    %643 = vmatpush1.msra.mxu0 0.0
    %644 = vmatprep.subr.mxu0 0.0
    %645 = vmatpush1.msra.mxu0 0.0
    %646 = vmatprep.subr.mxu0 0.0
    %647 = vmatpush1.msra.mxu0 0.0
    %648 = vmatprep.subr.mxu0 0.0
    %649 = vmatpush1.msra.mxu0 0.0
    %650 = vmatprep.subr.mxu0 0.0
    %651 = vmatpush1.msra.mxu0 0.0
    %652 = vmatprep.subr.mxu0 0.0
    %653 = vmatpush1.msra.mxu0 0.0
    %654 = vmatprep.subr.mxu0 0.0
    %655 = vmatpush1.msra.mxu0 0.0
    %656 = vmatprep.subr.mxu0 0.0
    %657 = vmatpush1.msra.mxu0 0.0
    %658 = vmatprep.subr.mxu0 0.0
    %659 = vmatpush1.msra.mxu0 %v124
    %660 = vmatprep.subr.mxu0 0.0
    %661 = vmatpush1.msra.mxu0 %v123
    %662 = vmatprep.subr.mxu0 0.0
    %663 = vmatpush2.msra.mxu0 0.0
    %664 = vmatprep.subr.mxu0 0.0
    %665 = vmatpush2.msra.mxu0 0.0
    %666 = vmatprep.subr.mxu0 0.0
    %667 = vmatpush2.msra.mxu0 0.0
    %668 = vmatprep.subr.mxu0 0.0
    %669 = vmatpush2.msra.mxu0 0.0
    %670 = vmatprep.subr.mxu0 0.0
    %671 = vmatpush2.msra.mxu0 0.0
    %672 = vmatprep.subr.mxu0 0.0
    %673 = vmatpush2.msra.mxu0 0.0
    %674 = vmatprep.subr.mxu0 0.0
    %675 = vmatpush2.msra.mxu0 0.0
    %676 = vmatprep.subr.mxu0 0.0
    %677 = vmatpush2.msra.mxu0 0.0
    %678 = vmatprep.subr.mxu0 0.0
    %679 = vmatpush2.msra.mxu0 0.0
    %680 = vmatprep.subr.mxu0 0.0
    %681 = vmatpush2.msra.mxu0 0.0
    %682 = vmatprep.subr.mxu0 0.0
    %683 = vmatpush2.msra.mxu0 0.0
    %684 = vmatprep.subr.mxu0 0.0
    %685 = vmatpush2.msra.mxu0 0.0
    %686 = vmatprep.subr.mxu0 0.0
    %687 = vmatpush2.msra.mxu0 0.0
    %688 = vmatprep.subr.mxu0 0.0
    %689 = vmatpush2.msra.mxu0 0.0
    %690 = vmatprep.subr.mxu0 0.0
    %691 = vmatpush2.msra.mxu0 0.0
    %692 = vmatprep.subr.mxu0 0.0
    %693 = vmatpush2.msra.mxu0 0.0
    %694 = vmatprep.mubr.f32.mxu0 0.0
    %695 = vmatmul.mubr.f32.gmra.mxu0 %v628
    %v696 = vpop.f32.mrf.mxu0
    %v697 = vadd.f32 %v135, %v696
    %v698 = vpop.f32.mrf.mxu0
    %699 = vdwg.mxu0
    %s700 = scalar_lea.vmem [#allocation2], 40
    %701 = vst [vmem:[%s700] sm:$0xff] %v697
    %v702 = vld [vmem:[%s287] sm:$0xff]
    %v703 = vsel %vm521, %v622, 0
    %705 = vmatprep.subr.mxu0 0.0
    %706 = vmatpush1.msra.mxu0 0.0
    %707 = vmatprep.subr.mxu0 0.0
    %708 = vmatpush1.msra.mxu0 0.0
    %709 = vmatprep.subr.mxu0 0.0
    %710 = vmatpush1.msra.mxu0 0.0
    %711 = vmatprep.subr.mxu0 0.0
    %712 = vmatpush1.msra.mxu0 0.0
    %713 = vmatprep.subr.mxu0 0.0
    %714 = vmatpush1.msra.mxu0 0.0
    %715 = vmatprep.subr.mxu0 0.0
    %716 = vmatpush1.msra.mxu0 0.0
    %717 = vmatprep.subr.mxu0 0.0
    %718 = vmatpush1.msra.mxu0 0.0
    %719 = vmatprep.subr.mxu0 0.0
    %720 = vmatpush1.msra.mxu0 0.0
    %721 = vmatprep.subr.mxu0 0.0
    %722 = vmatpush1.msra.mxu0 0.0
    %723 = vmatprep.subr.mxu0 0.0
    %724 = vmatpush1.msra.mxu0 0.0
    %725 = vmatprep.subr.mxu0 0.0
    %726 = vmatpush1.msra.mxu0 0.0
    %727 = vmatprep.subr.mxu0 0.0
    %728 = vmatpush1.msra.mxu0 0.0
    %729 = vmatprep.subr.mxu0 0.0
    %730 = vmatpush1.msra.mxu0 %v128
    %731 = vmatprep.subr.mxu0 0.0
    %732 = vmatpush1.msra.mxu0 %v127
    %733 = vmatprep.subr.mxu0 0.0
    %734 = vmatpush1.msra.mxu0 %v126
    %735 = vmatprep.subr.mxu0 0.0
    %736 = vmatpush1.msra.mxu0 %v125
    %737 = vmatprep.subr.mxu0 0.0
    %738 = vmatpush2.msra.mxu0 0.0
    %739 = vmatprep.subr.mxu0 0.0
    %740 = vmatpush2.msra.mxu0 0.0
    %741 = vmatprep.subr.mxu0 0.0
    %742 = vmatpush2.msra.mxu0 0.0
    %743 = vmatprep.subr.mxu0 0.0
    %744 = vmatpush2.msra.mxu0 0.0
    %745 = vmatprep.subr.mxu0 0.0
    %746 = vmatpush2.msra.mxu0 0.0
    %747 = vmatprep.subr.mxu0 0.0
    %748 = vmatpush2.msra.mxu0 0.0
    %749 = vmatprep.subr.mxu0 0.0
    %750 = vmatpush2.msra.mxu0 0.0
    %751 = vmatprep.subr.mxu0 0.0
    %752 = vmatpush2.msra.mxu0 0.0
    %753 = vmatprep.subr.mxu0 0.0
    %754 = vmatpush2.msra.mxu0 0.0
    %755 = vmatprep.subr.mxu0 0.0
    %756 = vmatpush2.msra.mxu0 0.0
    %757 = vmatprep.subr.mxu0 0.0
    %758 = vmatpush2.msra.mxu0 0.0
    %759 = vmatprep.subr.mxu0 0.0
    %760 = vmatpush2.msra.mxu0 0.0
    %761 = vmatprep.subr.mxu0 0.0
    %762 = vmatpush2.msra.mxu0 0.0
    %763 = vmatprep.subr.mxu0 0.0
    %764 = vmatpush2.msra.mxu0 0.0
    %765 = vmatprep.subr.mxu0 0.0
    %766 = vmatpush2.msra.mxu0 0.0
    %767 = vmatprep.subr.mxu0 0.0
    %768 = vmatpush2.msra.mxu0 0.0
    %769 = vmatprep.mubr.f32.mxu0 0.0
    %770 = vmatmul.mubr.f32.gmra.mxu0 %v703
    %v771 = vpop.f32.mrf.mxu0
    %v772 = vadd.f32 0.0, %v771
    %v773 = vpop.f32.mrf.mxu0
    %774 = vdwg.mxu0
    %v775 = vadd.f32 %v702, %v772
    %v776 = vxor.u32 %v775, 2147483648
    %v777 = vmul.f32 %v776, 1.442695
    %v778 = vpow.pop %v777
    %v779 = vadd.f32 %v778, 1.0
    %v780 = vrcp.pop %v779
    %v781 = vmul.f32 1.0, %v780
    %v782 = vtanh.pop %v775
    %v783 = vmul.f32 %v781, %v613
    %785 = vrot.lane.b32.xlu0 %v782, 32
    %v786 = vpop.permute.xlu0 %785
    %v788 = vmul.f32 %v781, %v786
    %790 = vrot.lane.b32.xlu0 %v788, 32
    %v791 = vpop.permute.xlu0 %790
    %v793 = vadd.f32 %v783, %v791
    %v794 = vtanh.pop %v793
    %796 = vrot.lane.b32.xlu0 %v794, 32
    %v797 = vpop.permute.xlu0 %796
    %v799 = vmul.f32 %v781, %v797
    %801 = vrot.lane.b32.xlu0 %v799, 64
    %v802 = vpop.permute.xlu0 %801
    %s804 = scalar_lea.vmem [#allocation3], 8
    %805 = vst.msk [vmem:[%s804] sm:$0xff] %vm521, %v802
    %s806 = scalar_lea.vmem [#allocation4], 48
    %v807 = vld [vmem:[%s806] sm:$0xff]
    %v809 = vsel %vm137, %v807, 0
    %811 = vmatprep.subr.mxu0 0.0
    %812 = vmatpush1.msra.mxu0 0.0
    %813 = vmatprep.subr.mxu0 0.0
    %814 = vmatpush1.msra.mxu0 0.0
    %815 = vmatprep.subr.mxu0 0.0
    %816 = vmatpush1.msra.mxu0 0.0
    %817 = vmatprep.subr.mxu0 0.0
    %818 = vmatpush1.msra.mxu0 0.0
    %819 = vmatprep.subr.mxu0 0.0
    %820 = vmatpush1.msra.mxu0 0.0
    %821 = vmatprep.subr.mxu0 0.0
    %822 = vmatpush1.msra.mxu0 0.0
    %823 = vmatprep.subr.mxu0 0.0
    %824 = vmatpush1.msra.mxu0 0.0
    %825 = vmatprep.subr.mxu0 0.0
    %826 = vmatpush1.msra.mxu0 0.0
    %827 = vmatprep.subr.mxu0 0.0
    %828 = vmatpush1.msra.mxu0 0.0
    %829 = vmatprep.subr.mxu0 0.0
    %830 = vmatpush1.msra.mxu0 0.0
    %831 = vmatprep.subr.mxu0 0.0
    %832 = vmatpush1.msra.mxu0 0.0
    %833 = vmatprep.subr.mxu0 0.0
    %834 = vmatpush1.msra.mxu0 0.0
    %835 = vmatprep.subr.mxu0 0.0
    %836 = vmatpush1.msra.mxu0 0.0
    %837 = vmatprep.subr.mxu0 0.0
    %838 = vmatpush1.msra.mxu0 0.0
    %839 = vmatprep.subr.mxu0 0.0
    %840 = vmatpush1.msra.mxu0 %v124
    %841 = vmatprep.subr.mxu0 0.0
    %842 = vmatpush1.msra.mxu0 %v123
    %843 = vmatprep.subr.mxu0 0.0
    %844 = vmatpush2.msra.mxu0 0.0
    %845 = vmatprep.subr.mxu0 0.0
    %846 = vmatpush2.msra.mxu0 0.0
    %847 = vmatprep.subr.mxu0 0.0
    %848 = vmatpush2.msra.mxu0 0.0
    %849 = vmatprep.subr.mxu0 0.0
    %850 = vmatpush2.msra.mxu0 0.0
    %851 = vmatprep.subr.mxu0 0.0
    %852 = vmatpush2.msra.mxu0 0.0
    %853 = vmatprep.subr.mxu0 0.0
    %854 = vmatpush2.msra.mxu0 0.0
    %855 = vmatprep.subr.mxu0 0.0
    %856 = vmatpush2.msra.mxu0 0.0
    %857 = vmatprep.subr.mxu0 0.0
    %858 = vmatpush2.msra.mxu0 0.0
    %859 = vmatprep.subr.mxu0 0.0
    %860 = vmatpush2.msra.mxu0 0.0
    %861 = vmatprep.subr.mxu0 0.0
    %862 = vmatpush2.msra.mxu0 0.0
    %863 = vmatprep.subr.mxu0 0.0
    %864 = vmatpush2.msra.mxu0 0.0
    %865 = vmatprep.subr.mxu0 0.0
    %866 = vmatpush2.msra.mxu0 0.0
    %867 = vmatprep.subr.mxu0 0.0
    %868 = vmatpush2.msra.mxu0 0.0
    %869 = vmatprep.subr.mxu0 0.0
    %870 = vmatpush2.msra.mxu0 0.0
    %871 = vmatprep.subr.mxu0 0.0
    %872 = vmatpush2.msra.mxu0 0.0
    %873 = vmatprep.subr.mxu0 0.0
    %874 = vmatpush2.msra.mxu0 0.0
    %875 = vmatprep.mubr.f32.mxu0 0.0
    %876 = vmatmul.mubr.f32.gmra.mxu0 %v809
    %v877 = vpop.f32.mrf.mxu0
    %v878 = vadd.f32 %v135, %v877
    %v879 = vpop.f32.mrf.mxu0
    %880 = vdwg.mxu0
    %s881 = scalar_lea.vmem [#allocation2], 48
    %882 = vst [vmem:[%s881] sm:$0xff] %v878
    %v883 = vld [vmem:[%s364] sm:$0xff]
    %v884 = vsel %vm521, %v802, 0
    %886 = vmatprep.subr.mxu0 0.0
    %887 = vmatpush1.msra.mxu0 0.0
    %888 = vmatprep.subr.mxu0 0.0
    %889 = vmatpush1.msra.mxu0 0.0
    %890 = vmatprep.subr.mxu0 0.0
    %891 = vmatpush1.msra.mxu0 0.0
    %892 = vmatprep.subr.mxu0 0.0
    %893 = vmatpush1.msra.mxu0 0.0
    %894 = vmatprep.subr.mxu0 0.0
    %895 = vmatpush1.msra.mxu0 0.0
    %896 = vmatprep.subr.mxu0 0.0
    %897 = vmatpush1.msra.mxu0 0.0
    %898 = vmatprep.subr.mxu0 0.0
    %899 = vmatpush1.msra.mxu0 0.0
    %900 = vmatprep.subr.mxu0 0.0
    %901 = vmatpush1.msra.mxu0 0.0
    %902 = vmatprep.subr.mxu0 0.0
    %903 = vmatpush1.msra.mxu0 0.0
    %904 = vmatprep.subr.mxu0 0.0
    %905 = vmatpush1.msra.mxu0 0.0
    %906 = vmatprep.subr.mxu0 0.0
    %907 = vmatpush1.msra.mxu0 0.0
    %908 = vmatprep.subr.mxu0 0.0
    %909 = vmatpush1.msra.mxu0 0.0
    %910 = vmatprep.subr.mxu0 0.0
    %911 = vmatpush1.msra.mxu0 %v128
    %912 = vmatprep.subr.mxu0 0.0
    %913 = vmatpush1.msra.mxu0 %v127
    %914 = vmatprep.subr.mxu0 0.0
    %915 = vmatpush1.msra.mxu0 %v126
    %916 = vmatprep.subr.mxu0 0.0
    %917 = vmatpush1.msra.mxu0 %v125
    %918 = vmatprep.subr.mxu0 0.0
    %919 = vmatpush2.msra.mxu0 0.0
    %920 = vmatprep.subr.mxu0 0.0
    %921 = vmatpush2.msra.mxu0 0.0
    %922 = vmatprep.subr.mxu0 0.0
    %923 = vmatpush2.msra.mxu0 0.0
    %924 = vmatprep.subr.mxu0 0.0
    %925 = vmatpush2.msra.mxu0 0.0
    %926 = vmatprep.subr.mxu0 0.0
    %927 = vmatpush2.msra.mxu0 0.0
    %928 = vmatprep.subr.mxu0 0.0
    %929 = vmatpush2.msra.mxu0 0.0
    %930 = vmatprep.subr.mxu0 0.0
    %931 = vmatpush2.msra.mxu0 0.0
    %932 = vmatprep.subr.mxu0 0.0
    %933 = vmatpush2.msra.mxu0 0.0
    %934 = vmatprep.subr.mxu0 0.0
    %935 = vmatpush2.msra.mxu0 0.0
    %936 = vmatprep.subr.mxu0 0.0
    %937 = vmatpush2.msra.mxu0 0.0
    %938 = vmatprep.subr.mxu0 0.0
    %939 = vmatpush2.msra.mxu0 0.0
    %940 = vmatprep.subr.mxu0 0.0
    %941 = vmatpush2.msra.mxu0 0.0
    %942 = vmatprep.subr.mxu0 0.0
    %943 = vmatpush2.msra.mxu0 0.0
    %944 = vmatprep.subr.mxu0 0.0
    %945 = vmatpush2.msra.mxu0 0.0
    %946 = vmatprep.subr.mxu0 0.0
    %947 = vmatpush2.msra.mxu0 0.0
    %948 = vmatprep.subr.mxu0 0.0
    %949 = vmatpush2.msra.mxu0 0.0
    %950 = vmatprep.mubr.f32.mxu0 0.0
    %951 = vmatmul.mubr.f32.gmra.mxu0 %v884
    %v952 = vpop.f32.mrf.mxu0
    %v953 = vadd.f32 0.0, %v952
    %v954 = vpop.f32.mrf.mxu0
    %955 = vdwg.mxu0
    %v956 = vadd.f32 %v883, %v953
    %v957 = vxor.u32 %v956, 2147483648
    %v958 = vmul.f32 %v957, 1.442695
    %v959 = vpow.pop %v958
    %v960 = vadd.f32 %v959, 1.0
    %v961 = vrcp.pop %v960
    %v962 = vmul.f32 1.0, %v961
    %v963 = vtanh.pop %v956
    %v964 = vmul.f32 %v962, %v793
    %966 = vrot.lane.b32.xlu0 %v963, 32
    %v967 = vpop.permute.xlu0 %966
    %v969 = vmul.f32 %v962, %v967
    %971 = vrot.lane.b32.xlu0 %v969, 32
    %v972 = vpop.permute.xlu0 %971
    %v974 = vadd.f32 %v964, %v972
    %v975 = vtanh.pop %v974
    %977 = vrot.lane.b32.xlu0 %v975, 32
    %v978 = vpop.permute.xlu0 %977
    %v980 = vmul.f32 %v962, %v978
    %982 = vrot.lane.b32.xlu0 %v980, 64
    %v983 = vpop.permute.xlu0 %982
    %s985 = scalar_lea.vmem [#allocation3], 16
    %986 = vst.msk [vmem:[%s985] sm:$0xff] %vm521, %v983
    %s987 = scalar_lea.vmem [#allocation4], 56
    %v988 = vld [vmem:[%s987] sm:$0xff]
    %v990 = vsel %vm137, %v988, 0
    %992 = vmatprep.subr.mxu0 0.0
    %993 = vmatpush1.msra.mxu0 0.0
    %994 = vmatprep.subr.mxu0 0.0
    %995 = vmatpush1.msra.mxu0 0.0
    %996 = vmatprep.subr.mxu0 0.0
    %997 = vmatpush1.msra.mxu0 0.0
    %998 = vmatprep.subr.mxu0 0.0
    %999 = vmatpush1.msra.mxu0 0.0
    %1000 = vmatprep.subr.mxu0 0.0
    %1001 = vmatpush1.msra.mxu0 0.0
    %1002 = vmatprep.subr.mxu0 0.0
    %1003 = vmatpush1.msra.mxu0 0.0
    %1004 = vmatprep.subr.mxu0 0.0
    %1005 = vmatpush1.msra.mxu0 0.0
    %1006 = vmatprep.subr.mxu0 0.0
    %1007 = vmatpush1.msra.mxu0 0.0
    %1008 = vmatprep.subr.mxu0 0.0
    %1009 = vmatpush1.msra.mxu0 0.0
    %1010 = vmatprep.subr.mxu0 0.0
    %1011 = vmatpush1.msra.mxu0 0.0
    %1012 = vmatprep.subr.mxu0 0.0
    %1013 = vmatpush1.msra.mxu0 0.0
    %1014 = vmatprep.subr.mxu0 0.0
    %1015 = vmatpush1.msra.mxu0 0.0
    %1016 = vmatprep.subr.mxu0 0.0
    %1017 = vmatpush1.msra.mxu0 0.0
    %1018 = vmatprep.subr.mxu0 0.0
    %1019 = vmatpush1.msra.mxu0 0.0
    %1020 = vmatprep.subr.mxu0 0.0
    %1021 = vmatpush1.msra.mxu0 %v124
    %1022 = vmatprep.subr.mxu0 0.0
    %1023 = vmatpush1.msra.mxu0 %v123
    %1024 = vmatprep.subr.mxu0 0.0
    %1025 = vmatpush2.msra.mxu0 0.0
    %1026 = vmatprep.subr.mxu0 0.0
    %1027 = vmatpush2.msra.mxu0 0.0
    %1028 = vmatprep.subr.mxu0 0.0
    %1029 = vmatpush2.msra.mxu0 0.0
    %1030 = vmatprep.subr.mxu0 0.0
    %1031 = vmatpush2.msra.mxu0 0.0
    %1032 = vmatprep.subr.mxu0 0.0
    %1033 = vmatpush2.msra.mxu0 0.0
    %1034 = vmatprep.subr.mxu0 0.0
    %1035 = vmatpush2.msra.mxu0 0.0
    %1036 = vmatprep.subr.mxu0 0.0
    %1037 = vmatpush2.msra.mxu0 0.0
    %1038 = vmatprep.subr.mxu0 0.0
    %1039 = vmatpush2.msra.mxu0 0.0
    %1040 = vmatprep.subr.mxu0 0.0
    %1041 = vmatpush2.msra.mxu0 0.0
    %1042 = vmatprep.subr.mxu0 0.0
    %1043 = vmatpush2.msra.mxu0 0.0
    %1044 = vmatprep.subr.mxu0 0.0
    %1045 = vmatpush2.msra.mxu0 0.0
    %1046 = vmatprep.subr.mxu0 0.0
    %1047 = vmatpush2.msra.mxu0 0.0
    %1048 = vmatprep.subr.mxu0 0.0
    %1049 = vmatpush2.msra.mxu0 0.0
    %1050 = vmatprep.subr.mxu0 0.0
    %1051 = vmatpush2.msra.mxu0 0.0
    %1052 = vmatprep.subr.mxu0 0.0
    %1053 = vmatpush2.msra.mxu0 0.0
    %1054 = vmatprep.subr.mxu0 0.0
    %1055 = vmatpush2.msra.mxu0 0.0
    %1056 = vmatprep.mubr.f32.mxu0 0.0
    %1057 = vmatmul.mubr.f32.gmra.mxu0 %v990
    %v1058 = vpop.f32.mrf.mxu0
    %v1059 = vadd.f32 %v135, %v1058
    %v1060 = vpop.f32.mrf.mxu0
    %1061 = vdwg.mxu0
    %s1062 = scalar_lea.vmem [#allocation2], 56
    %1063 = vst [vmem:[%s1062] sm:$0xff] %v1059
    %v1064 = vld [vmem:[%s441] sm:$0xff]
    %v1065 = vsel %vm521, %v983, 0
    %1067 = vmatprep.subr.mxu0 0.0
    %1068 = vmatpush1.msra.mxu0 0.0
    %1069 = vmatprep.subr.mxu0 0.0
    %1070 = vmatpush1.msra.mxu0 0.0
    %1071 = vmatprep.subr.mxu0 0.0
    %1072 = vmatpush1.msra.mxu0 0.0
    %1073 = vmatprep.subr.mxu0 0.0
    %1074 = vmatpush1.msra.mxu0 0.0
    %1075 = vmatprep.subr.mxu0 0.0
    %1076 = vmatpush1.msra.mxu0 0.0
    %1077 = vmatprep.subr.mxu0 0.0
    %1078 = vmatpush1.msra.mxu0 0.0
    %1079 = vmatprep.subr.mxu0 0.0
    %1080 = vmatpush1.msra.mxu0 0.0
    %1081 = vmatprep.subr.mxu0 0.0
    %1082 = vmatpush1.msra.mxu0 0.0
    %1083 = vmatprep.subr.mxu0 0.0
    %1084 = vmatpush1.msra.mxu0 0.0
    %1085 = vmatprep.subr.mxu0 0.0
    %1086 = vmatpush1.msra.mxu0 0.0
    %1087 = vmatprep.subr.mxu0 0.0
    %1088 = vmatpush1.msra.mxu0 0.0
    %1089 = vmatprep.subr.mxu0 0.0
    %1090 = vmatpush1.msra.mxu0 0.0
    %1091 = vmatprep.subr.mxu0 0.0
    %1092 = vmatpush1.msra.mxu0 %v128
    %1093 = vmatprep.subr.mxu0 0.0
    %1094 = vmatpush1.msra.mxu0 %v127
    %1095 = vmatprep.subr.mxu0 0.0
    %1096 = vmatpush1.msra.mxu0 %v126
    %1097 = vmatprep.subr.mxu0 0.0
    %1098 = vmatpush1.msra.mxu0 %v125
    %1099 = vmatprep.subr.mxu0 0.0
    %1100 = vmatpush2.msra.mxu0 0.0
    %1101 = vmatprep.subr.mxu0 0.0
    %1102 = vmatpush2.msra.mxu0 0.0
    %1103 = vmatprep.subr.mxu0 0.0
    %1104 = vmatpush2.msra.mxu0 0.0
    %1105 = vmatprep.subr.mxu0 0.0
    %1106 = vmatpush2.msra.mxu0 0.0
    %1107 = vmatprep.subr.mxu0 0.0
    %1108 = vmatpush2.msra.mxu0 0.0
    %1109 = vmatprep.subr.mxu0 0.0
    %1110 = vmatpush2.msra.mxu0 0.0
    %1111 = vmatprep.subr.mxu0 0.0
    %1112 = vmatpush2.msra.mxu0 0.0
    %1113 = vmatprep.subr.mxu0 0.0
    %1114 = vmatpush2.msra.mxu0 0.0
    %1115 = vmatprep.subr.mxu0 0.0
    %1116 = vmatpush2.msra.mxu0 0.0
    %1117 = vmatprep.subr.mxu0 0.0
    %1118 = vmatpush2.msra.mxu0 0.0
    %1119 = vmatprep.subr.mxu0 0.0
    %1120 = vmatpush2.msra.mxu0 0.0
    %1121 = vmatprep.subr.mxu0 0.0
    %1122 = vmatpush2.msra.mxu0 0.0
    %1123 = vmatprep.subr.mxu0 0.0
    %1124 = vmatpush2.msra.mxu0 0.0
    %1125 = vmatprep.subr.mxu0 0.0
    %1126 = vmatpush2.msra.mxu0 0.0
    %1127 = vmatprep.subr.mxu0 0.0
    %1128 = vmatpush2.msra.mxu0 0.0
    %1129 = vmatprep.subr.mxu0 0.0
    %1130 = vmatpush2.msra.mxu0 0.0
    %1131 = vmatprep.mubr.f32.mxu0 0.0
    %1132 = vmatmul.mubr.f32.gmra.mxu0 %v1065
    %v1133 = vpop.f32.mrf.mxu0
    %v1134 = vadd.f32 0.0, %v1133
    %v1135 = vpop.f32.mrf.mxu0
    %1136 = vdwg.mxu0
    %v1137 = vadd.f32 %v1064, %v1134
    %v1138 = vxor.u32 %v1137, 2147483648
    %v1139 = vmul.f32 %v1138, 1.442695
    %v1140 = vpow.pop %v1139
    %v1141 = vadd.f32 %v1140, 1.0
    %v1142 = vrcp.pop %v1141
    %v1143 = vmul.f32 1.0, %v1142
    %v1144 = vtanh.pop %v1137
    %v1145 = vmul.f32 %v1143, %v974
    %1147 = vrot.lane.b32.xlu0 %v1144, 32
    %v1148 = vpop.permute.xlu0 %1147
    %v1150 = vmul.f32 %v1143, %v1148
    %1152 = vrot.lane.b32.xlu0 %v1150, 32
    %v1153 = vpop.permute.xlu0 %1152
    %v1155 = vadd.f32 %v1145, %v1153
    %v1156 = vtanh.pop %v1155
    %1158 = vrot.lane.b32.xlu0 %v1156, 32
    %v1159 = vpop.permute.xlu0 %1158
    %v1161 = vmul.f32 %v1143, %v1159
    %1163 = vrot.lane.b32.xlu0 %v1161, 64
    %v1164 = vpop.permute.xlu0 %1163
    %s1166 = scalar_lea.vmem [#allocation3], 24
    %1167 = vst.msk [vmem:[%s1166] sm:$0xff] %vm521, %v1164
    %v1168 = vld [vmem:[%s518] sm:$0xff]
    %v1169 = vsel %vm521, %v1164, 0
    %1171 = vmatprep.subr.mxu0 0.0
    %1172 = vmatpush1.msra.mxu0 0.0
    %1173 = vmatprep.subr.mxu0 0.0
    %1174 = vmatpush1.msra.mxu0 0.0
    %1175 = vmatprep.subr.mxu0 0.0
    %1176 = vmatpush1.msra.mxu0 0.0
    %1177 = vmatprep.subr.mxu0 0.0
    %1178 = vmatpush1.msra.mxu0 0.0
    %1179 = vmatprep.subr.mxu0 0.0
    %1180 = vmatpush1.msra.mxu0 0.0
    %1181 = vmatprep.subr.mxu0 0.0
    %1182 = vmatpush1.msra.mxu0 0.0
    %1183 = vmatprep.subr.mxu0 0.0
    %1184 = vmatpush1.msra.mxu0 0.0
    %1185 = vmatprep.subr.mxu0 0.0
    %1186 = vmatpush1.msra.mxu0 0.0
    %1187 = vmatprep.subr.mxu0 0.0
    %1188 = vmatpush1.msra.mxu0 0.0
    %1189 = vmatprep.subr.mxu0 0.0
    %1190 = vmatpush1.msra.mxu0 0.0
    %1191 = vmatprep.subr.mxu0 0.0
    %1192 = vmatpush1.msra.mxu0 0.0
    %1193 = vmatprep.subr.mxu0 0.0
    %1194 = vmatpush1.msra.mxu0 0.0
    %1195 = vmatprep.subr.mxu0 0.0
    %1196 = vmatpush1.msra.mxu0 %v128
    %1197 = vmatprep.subr.mxu0 0.0
    %1198 = vmatpush1.msra.mxu0 %v127
    %1199 = vmatprep.subr.mxu0 0.0
    %1200 = vmatpush1.msra.mxu0 %v126
    %1201 = vmatprep.subr.mxu0 0.0
    %1202 = vmatpush1.msra.mxu0 %v125
    %1203 = vmatprep.subr.mxu0 0.0
    %1204 = vmatpush2.msra.mxu0 0.0
    %1205 = vmatprep.subr.mxu0 0.0
    %1206 = vmatpush2.msra.mxu0 0.0
    %1207 = vmatprep.subr.mxu0 0.0
    %1208 = vmatpush2.msra.mxu0 0.0
    %1209 = vmatprep.subr.mxu0 0.0
    %1210 = vmatpush2.msra.mxu0 0.0
    %1211 = vmatprep.subr.mxu0 0.0
    %1212 = vmatpush2.msra.mxu0 0.0
    %1213 = vmatprep.subr.mxu0 0.0
    %1214 = vmatpush2.msra.mxu0 0.0
    %1215 = vmatprep.subr.mxu0 0.0
    %1216 = vmatpush2.msra.mxu0 0.0
    %1217 = vmatprep.subr.mxu0 0.0
    %1218 = vmatpush2.msra.mxu0 0.0
    %1219 = vmatprep.subr.mxu0 0.0
    %1220 = vmatpush2.msra.mxu0 0.0
    %1221 = vmatprep.subr.mxu0 0.0
    %1222 = vmatpush2.msra.mxu0 0.0
    %1223 = vmatprep.subr.mxu0 0.0
    %1224 = vmatpush2.msra.mxu0 0.0
    %1225 = vmatprep.subr.mxu0 0.0
    %1226 = vmatpush2.msra.mxu0 0.0
    %1227 = vmatprep.subr.mxu0 0.0
    %1228 = vmatpush2.msra.mxu0 0.0
    %1229 = vmatprep.subr.mxu0 0.0
    %1230 = vmatpush2.msra.mxu0 0.0
    %1231 = vmatprep.subr.mxu0 0.0
    %1232 = vmatpush2.msra.mxu0 0.0
    %1233 = vmatprep.subr.mxu0 0.0
    %1234 = vmatpush2.msra.mxu0 0.0
    %1235 = vmatprep.mubr.f32.mxu0 0.0
    %1236 = vmatmul.mubr.f32.gmra.mxu0 %v1169
    %v1237 = vpop.f32.mrf.mxu0
    %v1238 = vadd.f32 0.0, %v1237
    %v1239 = vpop.f32.mrf.mxu0
    %1240 = vdwg.mxu0
    %v1241 = vadd.f32 %v1168, %v1238
    %v1242 = vxor.u32 %v1241, 2147483648
    %v1243 = vmul.f32 %v1242, 1.442695
    %v1244 = vpow.pop %v1243
    %v1245 = vadd.f32 %v1244, 1.0
    %v1246 = vrcp.pop %v1245
    %v1247 = vmul.f32 1.0, %v1246
    %v1248 = vtanh.pop %v1241
    %v1249 = vmul.f32 %v1247, %v1155
    %1251 = vrot.lane.b32.xlu0 %v1248, 32
    %v1252 = vpop.permute.xlu0 %1251
    %v1254 = vmul.f32 %v1247, %v1252
    %1256 = vrot.lane.b32.xlu0 %v1254, 32
    %v1257 = vpop.permute.xlu0 %1256
    %v1259 = vadd.f32 %v1249, %v1257
    %v1260 = vtanh.pop %v1259
    %1262 = vrot.lane.b32.xlu0 %v1260, 32
    %v1263 = vpop.permute.xlu0 %1262
    %v1265 = vmul.f32 %v1247, %v1263
    %1267 = vrot.lane.b32.xlu0 %v1265, 64
    %v1268 = vpop.permute.xlu0 %1267
    %s1270 = scalar_lea.vmem [#allocation3], 32
    %1271 = vst.msk [vmem:[%s1270] sm:$0xff] %vm521, %v1268
    %v1272 = vld [vmem:[%s700] sm:$0xff]
    %v1273 = vsel %vm521, %v1268, 0
    %1275 = vmatprep.subr.mxu0 0.0
    %1276 = vmatpush1.msra.mxu0 0.0
    %1277 = vmatprep.subr.mxu0 0.0
    %1278 = vmatpush1.msra.mxu0 0.0
    %1279 = vmatprep.subr.mxu0 0.0
    %1280 = vmatpush1.msra.mxu0 0.0
    %1281 = vmatprep.subr.mxu0 0.0
    %1282 = vmatpush1.msra.mxu0 0.0
    %1283 = vmatprep.subr.mxu0 0.0
    %1284 = vmatpush1.msra.mxu0 0.0
    %1285 = vmatprep.subr.mxu0 0.0
    %1286 = vmatpush1.msra.mxu0 0.0
    %1287 = vmatprep.subr.mxu0 0.0
    %1288 = vmatpush1.msra.mxu0 0.0
    %1289 = vmatprep.subr.mxu0 0.0
    %1290 = vmatpush1.msra.mxu0 0.0
    %1291 = vmatprep.subr.mxu0 0.0
    %1292 = vmatpush1.msra.mxu0 0.0
    %1293 = vmatprep.subr.mxu0 0.0
    %1294 = vmatpush1.msra.mxu0 0.0
    %1295 = vmatprep.subr.mxu0 0.0
    %1296 = vmatpush1.msra.mxu0 0.0
    %1297 = vmatprep.subr.mxu0 0.0
    %1298 = vmatpush1.msra.mxu0 0.0
    %1299 = vmatprep.subr.mxu0 0.0
    %1300 = vmatpush1.msra.mxu0 %v128
    %1301 = vmatprep.subr.mxu0 0.0
    %1302 = vmatpush1.msra.mxu0 %v127
    %1303 = vmatprep.subr.mxu0 0.0
    %1304 = vmatpush1.msra.mxu0 %v126
    %1305 = vmatprep.subr.mxu0 0.0
    %1306 = vmatpush1.msra.mxu0 %v125
    %1307 = vmatprep.subr.mxu0 0.0
    %1308 = vmatpush2.msra.mxu0 0.0
    %1309 = vmatprep.subr.mxu0 0.0
    %1310 = vmatpush2.msra.mxu0 0.0
    %1311 = vmatprep.subr.mxu0 0.0
    %1312 = vmatpush2.msra.mxu0 0.0
    %1313 = vmatprep.subr.mxu0 0.0
    %1314 = vmatpush2.msra.mxu0 0.0
    %1315 = vmatprep.subr.mxu0 0.0
    %1316 = vmatpush2.msra.mxu0 0.0
    %1317 = vmatprep.subr.mxu0 0.0
    %1318 = vmatpush2.msra.mxu0 0.0
    %1319 = vmatprep.subr.mxu0 0.0
    %1320 = vmatpush2.msra.mxu0 0.0
    %1321 = vmatprep.subr.mxu0 0.0
    %1322 = vmatpush2.msra.mxu0 0.0
    %1323 = vmatprep.subr.mxu0 0.0
    %1324 = vmatpush2.msra.mxu0 0.0
    %1325 = vmatprep.subr.mxu0 0.0
    %1326 = vmatpush2.msra.mxu0 0.0
    %1327 = vmatprep.subr.mxu0 0.0
    %1328 = vmatpush2.msra.mxu0 0.0
    %1329 = vmatprep.subr.mxu0 0.0
    %1330 = vmatpush2.msra.mxu0 0.0
    %1331 = vmatprep.subr.mxu0 0.0
    %1332 = vmatpush2.msra.mxu0 0.0
    %1333 = vmatprep.subr.mxu0 0.0
    %1334 = vmatpush2.msra.mxu0 0.0
    %1335 = vmatprep.subr.mxu0 0.0
    %1336 = vmatpush2.msra.mxu0 0.0
    %1337 = vmatprep.subr.mxu0 0.0
    %1338 = vmatpush2.msra.mxu0 0.0
    %1339 = vmatprep.mubr.f32.mxu0 0.0
    %1340 = vmatmul.mubr.f32.gmra.mxu0 %v1273
    %v1341 = vpop.f32.mrf.mxu0
    %v1342 = vadd.f32 0.0, %v1341
    %v1343 = vpop.f32.mrf.mxu0
    %1344 = vdwg.mxu0
    %v1345 = vadd.f32 %v1272, %v1342
    %v1346 = vxor.u32 %v1345, 2147483648
    %v1347 = vmul.f32 %v1346, 1.442695
    %v1348 = vpow.pop %v1347
    %v1349 = vadd.f32 %v1348, 1.0
    %v1350 = vrcp.pop %v1349
    %v1351 = vmul.f32 1.0, %v1350
    %v1352 = vtanh.pop %v1345
    %v1353 = vmul.f32 %v1351, %v1259
    %1355 = vrot.lane.b32.xlu0 %v1352, 32
    %v1356 = vpop.permute.xlu0 %1355
    %v1358 = vmul.f32 %v1351, %v1356
    %1360 = vrot.lane.b32.xlu0 %v1358, 32
    %v1361 = vpop.permute.xlu0 %1360
    %v1363 = vadd.f32 %v1353, %v1361
    %v1364 = vtanh.pop %v1363
    %1366 = vrot.lane.b32.xlu0 %v1364, 32
    %v1367 = vpop.permute.xlu0 %1366
    %v1369 = vmul.f32 %v1351, %v1367
    %1371 = vrot.lane.b32.xlu0 %v1369, 64
    %v1372 = vpop.permute.xlu0 %1371
    %s1374 = scalar_lea.vmem [#allocation3], 40
    %1375 = vst.msk [vmem:[%s1374] sm:$0xff] %vm521, %v1372
    %v1376 = vld [vmem:[%s881] sm:$0xff]
    %v1377 = vsel %vm521, %v1372, 0
    %1379 = vmatprep.subr.mxu0 0.0
    %1380 = vmatpush1.msra.mxu0 0.0
    %1381 = vmatprep.subr.mxu0 0.0
    %1382 = vmatpush1.msra.mxu0 0.0
    %1383 = vmatprep.subr.mxu0 0.0
    %1384 = vmatpush1.msra.mxu0 0.0
    %1385 = vmatprep.subr.mxu0 0.0
    %1386 = vmatpush1.msra.mxu0 0.0
    %1387 = vmatprep.subr.mxu0 0.0
    %1388 = vmatpush1.msra.mxu0 0.0
    %1389 = vmatprep.subr.mxu0 0.0
    %1390 = vmatpush1.msra.mxu0 0.0
    %1391 = vmatprep.subr.mxu0 0.0
    %1392 = vmatpush1.msra.mxu0 0.0
    %1393 = vmatprep.subr.mxu0 0.0
    %1394 = vmatpush1.msra.mxu0 0.0
    %1395 = vmatprep.subr.mxu0 0.0
    %1396 = vmatpush1.msra.mxu0 0.0
    %1397 = vmatprep.subr.mxu0 0.0
    %1398 = vmatpush1.msra.mxu0 0.0
    %1399 = vmatprep.subr.mxu0 0.0
    %1400 = vmatpush1.msra.mxu0 0.0
    %1401 = vmatprep.subr.mxu0 0.0
    %1402 = vmatpush1.msra.mxu0 0.0
    %1403 = vmatprep.subr.mxu0 0.0
    %1404 = vmatpush1.msra.mxu0 %v128
    %1405 = vmatprep.subr.mxu0 0.0
    %1406 = vmatpush1.msra.mxu0 %v127
    %1407 = vmatprep.subr.mxu0 0.0
    %1408 = vmatpush1.msra.mxu0 %v126
    %1409 = vmatprep.subr.mxu0 0.0
    %1410 = vmatpush1.msra.mxu0 %v125
    %1411 = vmatprep.subr.mxu0 0.0
    %1412 = vmatpush2.msra.mxu0 0.0
    %1413 = vmatprep.subr.mxu0 0.0
    %1414 = vmatpush2.msra.mxu0 0.0
    %1415 = vmatprep.subr.mxu0 0.0
    %1416 = vmatpush2.msra.mxu0 0.0
    %1417 = vmatprep.subr.mxu0 0.0
    %1418 = vmatpush2.msra.mxu0 0.0
    %1419 = vmatprep.subr.mxu0 0.0
    %1420 = vmatpush2.msra.mxu0 0.0
    %1421 = vmatprep.subr.mxu0 0.0
    %1422 = vmatpush2.msra.mxu0 0.0
    %1423 = vmatprep.subr.mxu0 0.0
    %1424 = vmatpush2.msra.mxu0 0.0
    %1425 = vmatprep.subr.mxu0 0.0
    %1426 = vmatpush2.msra.mxu0 0.0
    %1427 = vmatprep.subr.mxu0 0.0
    %1428 = vmatpush2.msra.mxu0 0.0
    %1429 = vmatprep.subr.mxu0 0.0
    %1430 = vmatpush2.msra.mxu0 0.0
    %1431 = vmatprep.subr.mxu0 0.0
    %1432 = vmatpush2.msra.mxu0 0.0
    %1433 = vmatprep.subr.mxu0 0.0
    %1434 = vmatpush2.msra.mxu0 0.0
    %1435 = vmatprep.subr.mxu0 0.0
    %1436 = vmatpush2.msra.mxu0 0.0
    %1437 = vmatprep.subr.mxu0 0.0
    %1438 = vmatpush2.msra.mxu0 0.0
    %1439 = vmatprep.subr.mxu0 0.0
    %1440 = vmatpush2.msra.mxu0 0.0
    %1441 = vmatprep.subr.mxu0 0.0
    %1442 = vmatpush2.msra.mxu0 0.0
    %1443 = vmatprep.mubr.f32.mxu0 0.0
    %1444 = vmatmul.mubr.f32.gmra.mxu0 %v1377
    %v1445 = vpop.f32.mrf.mxu0
    %v1446 = vadd.f32 0.0, %v1445
    %v1447 = vpop.f32.mrf.mxu0
    %1448 = vdwg.mxu0
    %v1449 = vadd.f32 %v1376, %v1446
    %v1450 = vxor.u32 %v1449, 2147483648
    %v1451 = vmul.f32 %v1450, 1.442695
    %v1452 = vpow.pop %v1451
    %v1453 = vadd.f32 %v1452, 1.0
    %v1454 = vrcp.pop %v1453
    %v1455 = vmul.f32 1.0, %v1454
    %v1456 = vtanh.pop %v1449
    %v1457 = vmul.f32 %v1455, %v1363
    %1459 = vrot.lane.b32.xlu0 %v1456, 32
    %v1460 = vpop.permute.xlu0 %1459
    %v1462 = vmul.f32 %v1455, %v1460
    %1464 = vrot.lane.b32.xlu0 %v1462, 32
    %v1465 = vpop.permute.xlu0 %1464
    %v1467 = vadd.f32 %v1457, %v1465
    %v1468 = vtanh.pop %v1467
    %1470 = vrot.lane.b32.xlu0 %v1468, 32
    %v1471 = vpop.permute.xlu0 %1470
    %v1473 = vmul.f32 %v1455, %v1471
    %1475 = vrot.lane.b32.xlu0 %v1473, 64
    %v1476 = vpop.permute.xlu0 %1475
    %s1478 = scalar_lea.vmem [#allocation3], 48
    %1479 = vst.msk [vmem:[%s1478] sm:$0xff] %vm521, %v1476
    %v1480 = vld [vmem:[%s1062] sm:$0xff]
    %v1481 = vsel %vm521, %v1476, 0
    %1483 = vmatprep.subr.mxu0 0.0
    %1484 = vmatpush1.msra.mxu0 0.0
    %1485 = vmatprep.subr.mxu0 0.0
    %1486 = vmatpush1.msra.mxu0 0.0
    %1487 = vmatprep.subr.mxu0 0.0
    %1488 = vmatpush1.msra.mxu0 0.0
    %1489 = vmatprep.subr.mxu0 0.0
    %1490 = vmatpush1.msra.mxu0 0.0
    %1491 = vmatprep.subr.mxu0 0.0
    %1492 = vmatpush1.msra.mxu0 0.0
    %1493 = vmatprep.subr.mxu0 0.0
    %1494 = vmatpush1.msra.mxu0 0.0
    %1495 = vmatprep.subr.mxu0 0.0
    %1496 = vmatpush1.msra.mxu0 0.0
    %1497 = vmatprep.subr.mxu0 0.0
    %1498 = vmatpush1.msra.mxu0 0.0
    %1499 = vmatprep.subr.mxu0 0.0
    %1500 = vmatpush1.msra.mxu0 0.0
    %1501 = vmatprep.subr.mxu0 0.0
    %1502 = vmatpush1.msra.mxu0 0.0
    %1503 = vmatprep.subr.mxu0 0.0
    %1504 = vmatpush1.msra.mxu0 0.0
    %1505 = vmatprep.subr.mxu0 0.0
    %1506 = vmatpush1.msra.mxu0 0.0
    %1507 = vmatprep.subr.mxu0 0.0
    %1508 = vmatpush1.msra.mxu0 %v128
    %1509 = vmatprep.subr.mxu0 0.0
    %1510 = vmatpush1.msra.mxu0 %v127
    %1511 = vmatprep.subr.mxu0 0.0
    %1512 = vmatpush1.msra.mxu0 %v126
    %1513 = vmatprep.subr.mxu0 0.0
    %1514 = vmatpush1.msra.mxu0 %v125
    %1515 = vmatprep.subr.mxu0 0.0
    %1516 = vmatpush2.msra.mxu0 0.0
    %1517 = vmatprep.subr.mxu0 0.0
    %1518 = vmatpush2.msra.mxu0 0.0
    %1519 = vmatprep.subr.mxu0 0.0
    %1520 = vmatpush2.msra.mxu0 0.0
    %1521 = vmatprep.subr.mxu0 0.0
    %1522 = vmatpush2.msra.mxu0 0.0
    %1523 = vmatprep.subr.mxu0 0.0
    %1524 = vmatpush2.msra.mxu0 0.0
    %1525 = vmatprep.subr.mxu0 0.0
    %1526 = vmatpush2.msra.mxu0 0.0
    %1527 = vmatprep.subr.mxu0 0.0
    %1528 = vmatpush2.msra.mxu0 0.0
    %1529 = vmatprep.subr.mxu0 0.0
    %1530 = vmatpush2.msra.mxu0 0.0
    %1531 = vmatprep.subr.mxu0 0.0
    %1532 = vmatpush2.msra.mxu0 0.0
    %1533 = vmatprep.subr.mxu0 0.0
    %1534 = vmatpush2.msra.mxu0 0.0
    %1535 = vmatprep.subr.mxu0 0.0
    %1536 = vmatpush2.msra.mxu0 0.0
    %1537 = vmatprep.subr.mxu0 0.0
    %1538 = vmatpush2.msra.mxu0 0.0
    %1539 = vmatprep.subr.mxu0 0.0
    %1540 = vmatpush2.msra.mxu0 0.0
    %1541 = vmatprep.subr.mxu0 0.0
    %1542 = vmatpush2.msra.mxu0 0.0
    %1543 = vmatprep.subr.mxu0 0.0
    %1544 = vmatpush2.msra.mxu0 0.0
    %1545 = vmatprep.subr.mxu0 0.0
    %1546 = vmatpush2.msra.mxu0 0.0
    %1547 = vmatprep.mubr.f32.mxu0 0.0
    %1548 = vmatmul.mubr.f32.gmra.mxu0 %v1481
    %v1549 = vpop.f32.mrf.mxu0
    %v1550 = vadd.f32 0.0, %v1549
    %v1551 = vpop.f32.mrf.mxu0
    %1552 = vdwg.mxu0
    %v1553 = vadd.f32 %v1480, %v1550
    %v1554 = vxor.u32 %v1553, 2147483648
    %v1555 = vmul.f32 %v1554, 1.442695
    %v1556 = vpow.pop %v1555
    %v1557 = vadd.f32 %v1556, 1.0
    %v1558 = vrcp.pop %v1557
    %v1559 = vmul.f32 1.0, %v1558
    %v1560 = vtanh.pop %v1553
    %v1561 = vmul.f32 %v1559, %v1467
    %1563 = vrot.lane.b32.xlu0 %v1560, 32
    %v1564 = vpop.permute.xlu0 %1563
    %v1566 = vmul.f32 %v1559, %v1564
    %1568 = vrot.lane.b32.xlu0 %v1566, 32
    %v1569 = vpop.permute.xlu0 %1568
    %v1571 = vadd.f32 %v1561, %v1569
    %v1572 = vtanh.pop %v1571
    %1574 = vrot.lane.b32.xlu0 %v1572, 32
    %v1575 = vpop.permute.xlu0 %1574
    %v1577 = vmul.f32 %v1559, %v1575
    %1579 = vrot.lane.b32.xlu0 %v1577, 64
    %v1580 = vpop.permute.xlu0 %1579
    %s1582 = scalar_lea.vmem [#allocation3], 56
    %1583 = vst.msk [vmem:[%s1582] sm:$0xff] %vm521, %v1580
    %v1584 = vld [vmem:[#allocation10] sm:$0xff]
    %v1585 = vld [vmem:[#allocation10 + $0x8] sm:$0xff]
    %v1586 = vld [vmem:[#allocation10 + $0x10] sm:$0xff]
    %v1587 = vld [vmem:[#allocation10 + $0x18] sm:$0xff]
    %v1588 = vld [vmem:[#allocation12] sm:$0xff]
    %v1589 = vld [vmem:[#allocation12 + $0x8] sm:$0xff]
    %v1590 = vld [vmem:[#allocation12 + $0x10] sm:$0xff]
    %v1591 = vld [vmem:[#allocation12 + $0x18] sm:$0xff]
    %v1592 = vld [vmem:[%s7] sm:$0x1]
    %v1593 = vld [vmem:[#allocation3] sm:$0xff]
    %v1595 = vlaneseq
    %v1596 = vshrl.u32 %v1595, 7
    %v1597 = vsub.s32 0, %v1596
    %v1598 = vrot.slane %v1592, %v1597
    %v1601 = vsel %vm521, %v1593, 0
    %1603 = vmatprep.subr.mxu0 0.0
    %1604 = vmatpush1.msra.mxu0 0.0
    %1605 = vmatprep.subr.mxu0 0.0
    %1606 = vmatpush1.msra.mxu0 0.0
    %1607 = vmatprep.subr.mxu0 0.0
    %1608 = vmatpush1.msra.mxu0 0.0
    %1609 = vmatprep.subr.mxu0 0.0
    %1610 = vmatpush1.msra.mxu0 0.0
    %1611 = vmatprep.subr.mxu0 0.0
    %1612 = vmatpush1.msra.mxu0 0.0
    %1613 = vmatprep.subr.mxu0 0.0
    %1614 = vmatpush1.msra.mxu0 0.0
    %1615 = vmatprep.subr.mxu0 0.0
    %1616 = vmatpush1.msra.mxu0 0.0
    %1617 = vmatprep.subr.mxu0 0.0
    %1618 = vmatpush1.msra.mxu0 0.0
    %1619 = vmatprep.subr.mxu0 0.0
    %1620 = vmatpush1.msra.mxu0 0.0
    %1621 = vmatprep.subr.mxu0 0.0
    %1622 = vmatpush1.msra.mxu0 0.0
    %1623 = vmatprep.subr.mxu0 0.0
    %1624 = vmatpush1.msra.mxu0 0.0
    %1625 = vmatprep.subr.mxu0 0.0
    %1626 = vmatpush1.msra.mxu0 0.0
    %1627 = vmatprep.subr.mxu0 0.0
    %1628 = vmatpush1.msra.mxu0 %v1587
    %1629 = vmatprep.subr.mxu0 0.0
    %1630 = vmatpush1.msra.mxu0 %v1586
    %1631 = vmatprep.subr.mxu0 0.0
    %1632 = vmatpush1.msra.mxu0 %v1585
    %1633 = vmatprep.subr.mxu0 0.0
    %1634 = vmatpush1.msra.mxu0 %v1584
    %1635 = vmatprep.subr.mxu0 0.0
    %1636 = vmatpush2.msra.mxu0 0.0
    %1637 = vmatprep.subr.mxu0 0.0
    %1638 = vmatpush2.msra.mxu0 0.0
    %1639 = vmatprep.subr.mxu0 0.0
    %1640 = vmatpush2.msra.mxu0 0.0
    %1641 = vmatprep.subr.mxu0 0.0
    %1642 = vmatpush2.msra.mxu0 0.0
    %1643 = vmatprep.subr.mxu0 0.0
    %1644 = vmatpush2.msra.mxu0 0.0
    %1645 = vmatprep.subr.mxu0 0.0
    %1646 = vmatpush2.msra.mxu0 0.0
    %1647 = vmatprep.subr.mxu0 0.0
    %1648 = vmatpush2.msra.mxu0 0.0
    %1649 = vmatprep.subr.mxu0 0.0
    %1650 = vmatpush2.msra.mxu0 0.0
    %1651 = vmatprep.subr.mxu0 0.0
    %1652 = vmatpush2.msra.mxu0 0.0
    %1653 = vmatprep.subr.mxu0 0.0
    %1654 = vmatpush2.msra.mxu0 0.0
    %1655 = vmatprep.subr.mxu0 0.0
    %1656 = vmatpush2.msra.mxu0 0.0
    %1657 = vmatprep.subr.mxu0 0.0
    %1658 = vmatpush2.msra.mxu0 0.0
    %1659 = vmatprep.subr.mxu0 0.0
    %1660 = vmatpush2.msra.mxu0 0.0
    %1661 = vmatprep.subr.mxu0 0.0
    %1662 = vmatpush2.msra.mxu0 0.0
    %1663 = vmatprep.subr.mxu0 0.0
    %1664 = vmatpush2.msra.mxu0 0.0
    %1665 = vmatprep.subr.mxu0 0.0
    %1666 = vmatpush2.msra.mxu0 0.0
    %1667 = vmatprep.mubr.f32.mxu0 0.0
    %1668 = vmatmul.mubr.f32.gmra.mxu0 %v1601
    %v1669 = vpop.f32.mrf.mxu0
    %v1670 = vadd.f32 %v1598, %v1669
    %v1671 = vpop.f32.mrf.mxu0
    %1672 = vdwg.mxu0
    %1673 = vst [vmem:[#allocation2] sm:$0xff] %v1670
    %v1674 = vld [vmem:[%s804] sm:$0xff]
    %v1676 = vsel %vm521, %v1674, 0
    %1678 = vmatprep.subr.mxu0 0.0
    %1679 = vmatpush1.msra.mxu0 0.0
    %1680 = vmatprep.subr.mxu0 0.0
    %1681 = vmatpush1.msra.mxu0 0.0
    %1682 = vmatprep.subr.mxu0 0.0
    %1683 = vmatpush1.msra.mxu0 0.0
    %1684 = vmatprep.subr.mxu0 0.0
    %1685 = vmatpush1.msra.mxu0 0.0
    %1686 = vmatprep.subr.mxu0 0.0
    %1687 = vmatpush1.msra.mxu0 0.0
    %1688 = vmatprep.subr.mxu0 0.0
    %1689 = vmatpush1.msra.mxu0 0.0
    %1690 = vmatprep.subr.mxu0 0.0
    %1691 = vmatpush1.msra.mxu0 0.0
    %1692 = vmatprep.subr.mxu0 0.0
    %1693 = vmatpush1.msra.mxu0 0.0
    %1694 = vmatprep.subr.mxu0 0.0
    %1695 = vmatpush1.msra.mxu0 0.0
    %1696 = vmatprep.subr.mxu0 0.0
    %1697 = vmatpush1.msra.mxu0 0.0
    %1698 = vmatprep.subr.mxu0 0.0
    %1699 = vmatpush1.msra.mxu0 0.0
    %1700 = vmatprep.subr.mxu0 0.0
    %1701 = vmatpush1.msra.mxu0 0.0
    %1702 = vmatprep.subr.mxu0 0.0
    %1703 = vmatpush1.msra.mxu0 %v1587
    %1704 = vmatprep.subr.mxu0 0.0
    %1705 = vmatpush1.msra.mxu0 %v1586
    %1706 = vmatprep.subr.mxu0 0.0
    %1707 = vmatpush1.msra.mxu0 %v1585
    %1708 = vmatprep.subr.mxu0 0.0
    %1709 = vmatpush1.msra.mxu0 %v1584
    %1710 = vmatprep.subr.mxu0 0.0
    %1711 = vmatpush2.msra.mxu0 0.0
    %1712 = vmatprep.subr.mxu0 0.0
    %1713 = vmatpush2.msra.mxu0 0.0
    %1714 = vmatprep.subr.mxu0 0.0
    %1715 = vmatpush2.msra.mxu0 0.0
    %1716 = vmatprep.subr.mxu0 0.0
    %1717 = vmatpush2.msra.mxu0 0.0
    %1718 = vmatprep.subr.mxu0 0.0
    %1719 = vmatpush2.msra.mxu0 0.0
    %1720 = vmatprep.subr.mxu0 0.0
    %1721 = vmatpush2.msra.mxu0 0.0
    %1722 = vmatprep.subr.mxu0 0.0
    %1723 = vmatpush2.msra.mxu0 0.0
    %1724 = vmatprep.subr.mxu0 0.0
    %1725 = vmatpush2.msra.mxu0 0.0
    %1726 = vmatprep.subr.mxu0 0.0
    %1727 = vmatpush2.msra.mxu0 0.0
    %1728 = vmatprep.subr.mxu0 0.0
    %1729 = vmatpush2.msra.mxu0 0.0
    %1730 = vmatprep.subr.mxu0 0.0
    %1731 = vmatpush2.msra.mxu0 0.0
    %1732 = vmatprep.subr.mxu0 0.0
    %1733 = vmatpush2.msra.mxu0 0.0
    %1734 = vmatprep.subr.mxu0 0.0
    %1735 = vmatpush2.msra.mxu0 0.0
    %1736 = vmatprep.subr.mxu0 0.0
    %1737 = vmatpush2.msra.mxu0 0.0
    %1738 = vmatprep.subr.mxu0 0.0
    %1739 = vmatpush2.msra.mxu0 0.0
    %1740 = vmatprep.subr.mxu0 0.0
    %1741 = vmatpush2.msra.mxu0 0.0
    %1742 = vmatprep.mubr.f32.mxu0 0.0
    %1743 = vmatmul.mubr.f32.gmra.mxu0 %v1676
    %v1744 = vpop.f32.mrf.mxu0
    %v1745 = vadd.f32 %v1598, %v1744
    %v1746 = vpop.f32.mrf.mxu0
    %1747 = vdwg.mxu0
    %1748 = vst [vmem:[%s287] sm:$0xff] %v1745
    %v1749 = vld [vmem:[%s985] sm:$0xff]
    %v1751 = vsel %vm521, %v1749, 0
    %1753 = vmatprep.subr.mxu0 0.0
    %1754 = vmatpush1.msra.mxu0 0.0
    %1755 = vmatprep.subr.mxu0 0.0
    %1756 = vmatpush1.msra.mxu0 0.0
    %1757 = vmatprep.subr.mxu0 0.0
    %1758 = vmatpush1.msra.mxu0 0.0
    %1759 = vmatprep.subr.mxu0 0.0
    %1760 = vmatpush1.msra.mxu0 0.0
    %1761 = vmatprep.subr.mxu0 0.0
    %1762 = vmatpush1.msra.mxu0 0.0
    %1763 = vmatprep.subr.mxu0 0.0
    %1764 = vmatpush1.msra.mxu0 0.0
    %1765 = vmatprep.subr.mxu0 0.0
    %1766 = vmatpush1.msra.mxu0 0.0
    %1767 = vmatprep.subr.mxu0 0.0
    %1768 = vmatpush1.msra.mxu0 0.0
    %1769 = vmatprep.subr.mxu0 0.0
    %1770 = vmatpush1.msra.mxu0 0.0
    %1771 = vmatprep.subr.mxu0 0.0
    %1772 = vmatpush1.msra.mxu0 0.0
    %1773 = vmatprep.subr.mxu0 0.0
    %1774 = vmatpush1.msra.mxu0 0.0
    %1775 = vmatprep.subr.mxu0 0.0
    %1776 = vmatpush1.msra.mxu0 0.0
    %1777 = vmatprep.subr.mxu0 0.0
    %1778 = vmatpush1.msra.mxu0 %v1587
    %1779 = vmatprep.subr.mxu0 0.0
    %1780 = vmatpush1.msra.mxu0 %v1586
    %1781 = vmatprep.subr.mxu0 0.0
    %1782 = vmatpush1.msra.mxu0 %v1585
    %1783 = vmatprep.subr.mxu0 0.0
    %1784 = vmatpush1.msra.mxu0 %v1584
    %1785 = vmatprep.subr.mxu0 0.0
    %1786 = vmatpush2.msra.mxu0 0.0
    %1787 = vmatprep.subr.mxu0 0.0
    %1788 = vmatpush2.msra.mxu0 0.0
    %1789 = vmatprep.subr.mxu0 0.0
    %1790 = vmatpush2.msra.mxu0 0.0
    %1791 = vmatprep.subr.mxu0 0.0
    %1792 = vmatpush2.msra.mxu0 0.0
    %1793 = vmatprep.subr.mxu0 0.0
    %1794 = vmatpush2.msra.mxu0 0.0
    %1795 = vmatprep.subr.mxu0 0.0
    %1796 = vmatpush2.msra.mxu0 0.0
    %1797 = vmatprep.subr.mxu0 0.0
    %1798 = vmatpush2.msra.mxu0 0.0
    %1799 = vmatprep.subr.mxu0 0.0
    %1800 = vmatpush2.msra.mxu0 0.0
    %1801 = vmatprep.subr.mxu0 0.0
    %1802 = vmatpush2.msra.mxu0 0.0
    %1803 = vmatprep.subr.mxu0 0.0
    %1804 = vmatpush2.msra.mxu0 0.0
    %1805 = vmatprep.subr.mxu0 0.0
    %1806 = vmatpush2.msra.mxu0 0.0
    %1807 = vmatprep.subr.mxu0 0.0
    %1808 = vmatpush2.msra.mxu0 0.0
    %1809 = vmatprep.subr.mxu0 0.0
    %1810 = vmatpush2.msra.mxu0 0.0
    %1811 = vmatprep.subr.mxu0 0.0
    %1812 = vmatpush2.msra.mxu0 0.0
    %1813 = vmatprep.subr.mxu0 0.0
    %1814 = vmatpush2.msra.mxu0 0.0
    %1815 = vmatprep.subr.mxu0 0.0
    %1816 = vmatpush2.msra.mxu0 0.0
    %1817 = vmatprep.mubr.f32.mxu0 0.0
    %1818 = vmatmul.mubr.f32.gmra.mxu0 %v1751
    %v1819 = vpop.f32.mrf.mxu0
    %v1820 = vadd.f32 %v1598, %v1819
    %v1821 = vpop.f32.mrf.mxu0
    %1822 = vdwg.mxu0
    %1823 = vst [vmem:[%s364] sm:$0xff] %v1820
    %v1824 = vld [vmem:[%s1166] sm:$0xff]
    %v1826 = vsel %vm521, %v1824, 0
    %1828 = vmatprep.subr.mxu0 0.0
    %1829 = vmatpush1.msra.mxu0 0.0
    %1830 = vmatprep.subr.mxu0 0.0
    %1831 = vmatpush1.msra.mxu0 0.0
    %1832 = vmatprep.subr.mxu0 0.0
    %1833 = vmatpush1.msra.mxu0 0.0
    %1834 = vmatprep.subr.mxu0 0.0
    %1835 = vmatpush1.msra.mxu0 0.0
    %1836 = vmatprep.subr.mxu0 0.0
    %1837 = vmatpush1.msra.mxu0 0.0
    %1838 = vmatprep.subr.mxu0 0.0
    %1839 = vmatpush1.msra.mxu0 0.0
    %1840 = vmatprep.subr.mxu0 0.0
    %1841 = vmatpush1.msra.mxu0 0.0
    %1842 = vmatprep.subr.mxu0 0.0
    %1843 = vmatpush1.msra.mxu0 0.0
    %1844 = vmatprep.subr.mxu0 0.0
    %1845 = vmatpush1.msra.mxu0 0.0
    %1846 = vmatprep.subr.mxu0 0.0
    %1847 = vmatpush1.msra.mxu0 0.0
    %1848 = vmatprep.subr.mxu0 0.0
    %1849 = vmatpush1.msra.mxu0 0.0
    %1850 = vmatprep.subr.mxu0 0.0
    %1851 = vmatpush1.msra.mxu0 0.0
    %1852 = vmatprep.subr.mxu0 0.0
    %1853 = vmatpush1.msra.mxu0 %v1587
    %1854 = vmatprep.subr.mxu0 0.0
    %1855 = vmatpush1.msra.mxu0 %v1586
    %1856 = vmatprep.subr.mxu0 0.0
    %1857 = vmatpush1.msra.mxu0 %v1585
    %1858 = vmatprep.subr.mxu0 0.0
    %1859 = vmatpush1.msra.mxu0 %v1584
    %1860 = vmatprep.subr.mxu0 0.0
    %1861 = vmatpush2.msra.mxu0 0.0
    %1862 = vmatprep.subr.mxu0 0.0
    %1863 = vmatpush2.msra.mxu0 0.0
    %1864 = vmatprep.subr.mxu0 0.0
    %1865 = vmatpush2.msra.mxu0 0.0
    %1866 = vmatprep.subr.mxu0 0.0
    %1867 = vmatpush2.msra.mxu0 0.0
    %1868 = vmatprep.subr.mxu0 0.0
    %1869 = vmatpush2.msra.mxu0 0.0
    %1870 = vmatprep.subr.mxu0 0.0
    %1871 = vmatpush2.msra.mxu0 0.0
    %1872 = vmatprep.subr.mxu0 0.0
    %1873 = vmatpush2.msra.mxu0 0.0
    %1874 = vmatprep.subr.mxu0 0.0
    %1875 = vmatpush2.msra.mxu0 0.0
    %1876 = vmatprep.subr.mxu0 0.0
    %1877 = vmatpush2.msra.mxu0 0.0
    %1878 = vmatprep.subr.mxu0 0.0
    %1879 = vmatpush2.msra.mxu0 0.0
    %1880 = vmatprep.subr.mxu0 0.0
    %1881 = vmatpush2.msra.mxu0 0.0
    %1882 = vmatprep.subr.mxu0 0.0
    %1883 = vmatpush2.msra.mxu0 0.0
    %1884 = vmatprep.subr.mxu0 0.0
    %1885 = vmatpush2.msra.mxu0 0.0
    %1886 = vmatprep.subr.mxu0 0.0
    %1887 = vmatpush2.msra.mxu0 0.0
    %1888 = vmatprep.subr.mxu0 0.0
    %1889 = vmatpush2.msra.mxu0 0.0
    %1890 = vmatprep.subr.mxu0 0.0
    %1891 = vmatpush2.msra.mxu0 0.0
    %1892 = vmatprep.mubr.f32.mxu0 0.0
    %1893 = vmatmul.mubr.f32.gmra.mxu0 %v1826
    %v1894 = vpop.f32.mrf.mxu0
    %v1895 = vadd.f32 %v1598, %v1894
    %v1896 = vpop.f32.mrf.mxu0
    %1897 = vdwg.mxu0
    %1898 = vst [vmem:[%s441] sm:$0xff] %v1895
    %v1899 = vld [vmem:[%s1270] sm:$0xff]
    %v1901 = vsel %vm521, %v1899, 0
    %1903 = vmatprep.subr.mxu0 0.0
    %1904 = vmatpush1.msra.mxu0 0.0
    %1905 = vmatprep.subr.mxu0 0.0
    %1906 = vmatpush1.msra.mxu0 0.0
    %1907 = vmatprep.subr.mxu0 0.0
    %1908 = vmatpush1.msra.mxu0 0.0
    %1909 = vmatprep.subr.mxu0 0.0
    %1910 = vmatpush1.msra.mxu0 0.0
    %1911 = vmatprep.subr.mxu0 0.0
    %1912 = vmatpush1.msra.mxu0 0.0
    %1913 = vmatprep.subr.mxu0 0.0
    %1914 = vmatpush1.msra.mxu0 0.0
    %1915 = vmatprep.subr.mxu0 0.0
    %1916 = vmatpush1.msra.mxu0 0.0
    %1917 = vmatprep.subr.mxu0 0.0
    %1918 = vmatpush1.msra.mxu0 0.0
    %1919 = vmatprep.subr.mxu0 0.0
    %1920 = vmatpush1.msra.mxu0 0.0
    %1921 = vmatprep.subr.mxu0 0.0
    %1922 = vmatpush1.msra.mxu0 0.0
    %1923 = vmatprep.subr.mxu0 0.0
    %1924 = vmatpush1.msra.mxu0 0.0
    %1925 = vmatprep.subr.mxu0 0.0
    %1926 = vmatpush1.msra.mxu0 0.0
    %1927 = vmatprep.subr.mxu0 0.0
    %1928 = vmatpush1.msra.mxu0 %v1587
    %1929 = vmatprep.subr.mxu0 0.0
    %1930 = vmatpush1.msra.mxu0 %v1586
    %1931 = vmatprep.subr.mxu0 0.0
    %1932 = vmatpush1.msra.mxu0 %v1585
    %1933 = vmatprep.subr.mxu0 0.0
    %1934 = vmatpush1.msra.mxu0 %v1584
    %1935 = vmatprep.subr.mxu0 0.0
    %1936 = vmatpush2.msra.mxu0 0.0
    %1937 = vmatprep.subr.mxu0 0.0
    %1938 = vmatpush2.msra.mxu0 0.0
    %1939 = vmatprep.subr.mxu0 0.0
    %1940 = vmatpush2.msra.mxu0 0.0
    %1941 = vmatprep.subr.mxu0 0.0
    %1942 = vmatpush2.msra.mxu0 0.0
    %1943 = vmatprep.subr.mxu0 0.0
    %1944 = vmatpush2.msra.mxu0 0.0
    %1945 = vmatprep.subr.mxu0 0.0
    %1946 = vmatpush2.msra.mxu0 0.0
    %1947 = vmatprep.subr.mxu0 0.0
    %1948 = vmatpush2.msra.mxu0 0.0
    %1949 = vmatprep.subr.mxu0 0.0
    %1950 = vmatpush2.msra.mxu0 0.0
    %1951 = vmatprep.subr.mxu0 0.0
    %1952 = vmatpush2.msra.mxu0 0.0
    %1953 = vmatprep.subr.mxu0 0.0
    %1954 = vmatpush2.msra.mxu0 0.0
    %1955 = vmatprep.subr.mxu0 0.0
    %1956 = vmatpush2.msra.mxu0 0.0
    %1957 = vmatprep.subr.mxu0 0.0
    %1958 = vmatpush2.msra.mxu0 0.0
    %1959 = vmatprep.subr.mxu0 0.0
    %1960 = vmatpush2.msra.mxu0 0.0
    %1961 = vmatprep.subr.mxu0 0.0
    %1962 = vmatpush2.msra.mxu0 0.0
    %1963 = vmatprep.subr.mxu0 0.0
    %1964 = vmatpush2.msra.mxu0 0.0
    %1965 = vmatprep.subr.mxu0 0.0
    %1966 = vmatpush2.msra.mxu0 0.0
    %1967 = vmatprep.mubr.f32.mxu0 0.0
    %1968 = vmatmul.mubr.f32.gmra.mxu0 %v1901
    %v1969 = vpop.f32.mrf.mxu0
    %v1970 = vadd.f32 %v1598, %v1969
    %v1971 = vpop.f32.mrf.mxu0
    %1972 = vdwg.mxu0
    %1973 = vst [vmem:[%s518] sm:$0xff] %v1970
    %v1974 = vld [vmem:[#allocation2] sm:$0xff]
    %1975 = vmatprep.subr.mxu0 0.0
    %1976 = vmatpush1.msra.mxu0 0.0
    %1977 = vmatprep.subr.mxu0 0.0
    %1978 = vmatpush1.msra.mxu0 0.0
    %1979 = vmatprep.subr.mxu0 0.0
    %1980 = vmatpush1.msra.mxu0 0.0
    %1981 = vmatprep.subr.mxu0 0.0
    %1982 = vmatpush1.msra.mxu0 0.0
    %1983 = vmatprep.subr.mxu0 0.0
    %1984 = vmatpush1.msra.mxu0 0.0
    %1985 = vmatprep.subr.mxu0 0.0
    %1986 = vmatpush1.msra.mxu0 0.0
    %1987 = vmatprep.subr.mxu0 0.0
    %1988 = vmatpush1.msra.mxu0 0.0
    %1989 = vmatprep.subr.mxu0 0.0
    %1990 = vmatpush1.msra.mxu0 0.0
    %1991 = vmatprep.subr.mxu0 0.0
    %1992 = vmatpush1.msra.mxu0 0.0
    %1993 = vmatprep.subr.mxu0 0.0
    %1994 = vmatpush1.msra.mxu0 0.0
    %1995 = vmatprep.subr.mxu0 0.0
    %1996 = vmatpush1.msra.mxu0 0.0
    %1997 = vmatprep.subr.mxu0 0.0
    %1998 = vmatpush1.msra.mxu0 0.0
    %1999 = vmatprep.subr.mxu0 0.0
    %2000 = vmatpush1.msra.mxu0 %v1591
    %2001 = vmatprep.subr.mxu0 0.0
    %2002 = vmatpush1.msra.mxu0 %v1590
    %2003 = vmatprep.subr.mxu0 0.0
    %2004 = vmatpush1.msra.mxu0 %v1589
    %2005 = vmatprep.subr.mxu0 0.0
    %2006 = vmatpush1.msra.mxu0 %v1588
    %2007 = vmatprep.subr.mxu0 0.0
    %2008 = vmatpush2.msra.mxu0 0.0
    %2009 = vmatprep.subr.mxu0 0.0
    %2010 = vmatpush2.msra.mxu0 0.0
    %2011 = vmatprep.subr.mxu0 0.0
    %2012 = vmatpush2.msra.mxu0 0.0
    %2013 = vmatprep.subr.mxu0 0.0
    %2014 = vmatpush2.msra.mxu0 0.0
    %2015 = vmatprep.subr.mxu0 0.0
    %2016 = vmatpush2.msra.mxu0 0.0
    %2017 = vmatprep.subr.mxu0 0.0
    %2018 = vmatpush2.msra.mxu0 0.0
    %2019 = vmatprep.subr.mxu0 0.0
    %2020 = vmatpush2.msra.mxu0 0.0
    %2021 = vmatprep.subr.mxu0 0.0
    %2022 = vmatpush2.msra.mxu0 0.0
    %2023 = vmatprep.subr.mxu0 0.0
    %2024 = vmatpush2.msra.mxu0 0.0
    %2025 = vmatprep.subr.mxu0 0.0
    %2026 = vmatpush2.msra.mxu0 0.0
    %2027 = vmatprep.subr.mxu0 0.0
    %2028 = vmatpush2.msra.mxu0 0.0
    %2029 = vmatprep.subr.mxu0 0.0
    %2030 = vmatpush2.msra.mxu0 0.0
    %2031 = vmatprep.subr.mxu0 0.0
    %2032 = vmatpush2.msra.mxu0 0.0
    %2033 = vmatprep.subr.mxu0 0.0
    %2034 = vmatpush2.msra.mxu0 0.0
    %2035 = vmatprep.subr.mxu0 0.0
    %2036 = vmatpush2.msra.mxu0 0.0
    %2037 = vmatprep.subr.mxu0 0.0
    %2038 = vmatpush2.msra.mxu0 0.0
    %2039 = vmatprep.mubr.f32.mxu0 0.0
    %2040 = vmatmul.mubr.f32.gmra.mxu0 %v523
    %v2041 = vpop.f32.mrf.mxu0
    %v2042 = vadd.f32 0.0, %v2041
    %v2043 = vpop.f32.mrf.mxu0
    %2044 = vdwg.mxu0
    %v2045 = vadd.f32 %v1974, %v2042
    %v2046 = vxor.u32 %v2045, 2147483648
    %v2047 = vmul.f32 %v2046, 1.442695
    %v2048 = vpow.pop %v2047
    %v2049 = vadd.f32 %v2048, 1.0
    %v2050 = vrcp.pop %v2049
    %v2051 = vmul.f32 1.0, %v2050
    %v2052 = vtanh.pop %v2045
    %v2053 = vmul.f32 %v2051, 0.0
    %2055 = vrot.lane.b32.xlu0 %v2052, 32
    %v2056 = vpop.permute.xlu0 %2055
    %v2058 = vmul.f32 %v2051, %v2056
    %2060 = vrot.lane.b32.xlu0 %v2058, 32
    %v2061 = vpop.permute.xlu0 %2060
    %v2063 = vadd.f32 %v2053, %v2061
    %v2064 = vtanh.pop %v2063
    %2066 = vrot.lane.b32.xlu0 %v2064, 32
    %v2067 = vpop.permute.xlu0 %2066
    %v2069 = vmul.f32 %v2051, %v2067
    %vm2070 = vcmp.eq.s32.totalorder %v122, 0
    %v2071 = vsel %vm2070, %v2069, 0.0
    %v2072 = vld [vmem:[%s1374] sm:$0xff]
    %v2074 = vsel %vm521, %v2072, 0
    %2076 = vmatprep.subr.mxu0 0.0
    %2077 = vmatpush1.msra.mxu0 0.0
    %2078 = vmatprep.subr.mxu0 0.0
    %2079 = vmatpush1.msra.mxu0 0.0
    %2080 = vmatprep.subr.mxu0 0.0
    %2081 = vmatpush1.msra.mxu0 0.0
    %2082 = vmatprep.subr.mxu0 0.0
    %2083 = vmatpush1.msra.mxu0 0.0
    %2084 = vmatprep.subr.mxu0 0.0
    %2085 = vmatpush1.msra.mxu0 0.0
    %2086 = vmatprep.subr.mxu0 0.0
    %2087 = vmatpush1.msra.mxu0 0.0
    %2088 = vmatprep.subr.mxu0 0.0
    %2089 = vmatpush1.msra.mxu0 0.0
    %2090 = vmatprep.subr.mxu0 0.0
    %2091 = vmatpush1.msra.mxu0 0.0
    %2092 = vmatprep.subr.mxu0 0.0
    %2093 = vmatpush1.msra.mxu0 0.0
    %2094 = vmatprep.subr.mxu0 0.0
    %2095 = vmatpush1.msra.mxu0 0.0
    %2096 = vmatprep.subr.mxu0 0.0
    %2097 = vmatpush1.msra.mxu0 0.0
    %2098 = vmatprep.subr.mxu0 0.0
    %2099 = vmatpush1.msra.mxu0 0.0
    %2100 = vmatprep.subr.mxu0 0.0
    %2101 = vmatpush1.msra.mxu0 %v1587
    %2102 = vmatprep.subr.mxu0 0.0
    %2103 = vmatpush1.msra.mxu0 %v1586
    %2104 = vmatprep.subr.mxu0 0.0
    %2105 = vmatpush1.msra.mxu0 %v1585
    %2106 = vmatprep.subr.mxu0 0.0
    %2107 = vmatpush1.msra.mxu0 %v1584
    %2108 = vmatprep.subr.mxu0 0.0
    %2109 = vmatpush2.msra.mxu0 0.0
    %2110 = vmatprep.subr.mxu0 0.0
    %2111 = vmatpush2.msra.mxu0 0.0
    %2112 = vmatprep.subr.mxu0 0.0
    %2113 = vmatpush2.msra.mxu0 0.0
    %2114 = vmatprep.subr.mxu0 0.0
    %2115 = vmatpush2.msra.mxu0 0.0
    %2116 = vmatprep.subr.mxu0 0.0
    %2117 = vmatpush2.msra.mxu0 0.0
    %2118 = vmatprep.subr.mxu0 0.0
    %2119 = vmatpush2.msra.mxu0 0.0
    %2120 = vmatprep.subr.mxu0 0.0
    %2121 = vmatpush2.msra.mxu0 0.0
    %2122 = vmatprep.subr.mxu0 0.0
    %2123 = vmatpush2.msra.mxu0 0.0
    %2124 = vmatprep.subr.mxu0 0.0
    %2125 = vmatpush2.msra.mxu0 0.0
    %2126 = vmatprep.subr.mxu0 0.0
    %2127 = vmatpush2.msra.mxu0 0.0
    %2128 = vmatprep.subr.mxu0 0.0
    %2129 = vmatpush2.msra.mxu0 0.0
    %2130 = vmatprep.subr.mxu0 0.0
    %2131 = vmatpush2.msra.mxu0 0.0
    %2132 = vmatprep.subr.mxu0 0.0
    %2133 = vmatpush2.msra.mxu0 0.0
    %2134 = vmatprep.subr.mxu0 0.0
    %2135 = vmatpush2.msra.mxu0 0.0
    %2136 = vmatprep.subr.mxu0 0.0
    %2137 = vmatpush2.msra.mxu0 0.0
    %2138 = vmatprep.subr.mxu0 0.0
    %2139 = vmatpush2.msra.mxu0 0.0
    %2140 = vmatprep.mubr.f32.mxu0 0.0
    %2141 = vmatmul.mubr.f32.gmra.mxu0 %v2074
    %v2142 = vpop.f32.mrf.mxu0
    %v2143 = vadd.f32 %v1598, %v2142
    %v2144 = vpop.f32.mrf.mxu0
    %2145 = vdwg.mxu0
    %2146 = vst [vmem:[%s700] sm:$0xff] %v2143
    %v2147 = vld [vmem:[%s287] sm:$0xff]
    %2149 = vrot.lane.b32.xlu0 %v2069, 64
    %v2150 = vpop.permute.xlu0 %2149
    %v2151 = vsel %vm521, %v2150, 0
    %2153 = vmatprep.subr.mxu0 0.0
    %2154 = vmatpush1.msra.mxu0 0.0
    %2155 = vmatprep.subr.mxu0 0.0
    %2156 = vmatpush1.msra.mxu0 0.0
    %2157 = vmatprep.subr.mxu0 0.0
    %2158 = vmatpush1.msra.mxu0 0.0
    %2159 = vmatprep.subr.mxu0 0.0
    %2160 = vmatpush1.msra.mxu0 0.0
    %2161 = vmatprep.subr.mxu0 0.0
    %2162 = vmatpush1.msra.mxu0 0.0
    %2163 = vmatprep.subr.mxu0 0.0
    %2164 = vmatpush1.msra.mxu0 0.0
    %2165 = vmatprep.subr.mxu0 0.0
    %2166 = vmatpush1.msra.mxu0 0.0
    %2167 = vmatprep.subr.mxu0 0.0
    %2168 = vmatpush1.msra.mxu0 0.0
    %2169 = vmatprep.subr.mxu0 0.0
    %2170 = vmatpush1.msra.mxu0 0.0
    %2171 = vmatprep.subr.mxu0 0.0
    %2172 = vmatpush1.msra.mxu0 0.0
    %2173 = vmatprep.subr.mxu0 0.0
    %2174 = vmatpush1.msra.mxu0 0.0
    %2175 = vmatprep.subr.mxu0 0.0
    %2176 = vmatpush1.msra.mxu0 0.0
    %2177 = vmatprep.subr.mxu0 0.0
    %2178 = vmatpush1.msra.mxu0 %v1591
    %2179 = vmatprep.subr.mxu0 0.0
    %2180 = vmatpush1.msra.mxu0 %v1590
    %2181 = vmatprep.subr.mxu0 0.0
    %2182 = vmatpush1.msra.mxu0 %v1589
    %2183 = vmatprep.subr.mxu0 0.0
    %2184 = vmatpush1.msra.mxu0 %v1588
    %2185 = vmatprep.subr.mxu0 0.0
    %2186 = vmatpush2.msra.mxu0 0.0
    %2187 = vmatprep.subr.mxu0 0.0
    %2188 = vmatpush2.msra.mxu0 0.0
    %2189 = vmatprep.subr.mxu0 0.0
    %2190 = vmatpush2.msra.mxu0 0.0
    %2191 = vmatprep.subr.mxu0 0.0
    %2192 = vmatpush2.msra.mxu0 0.0
    %2193 = vmatprep.subr.mxu0 0.0
    %2194 = vmatpush2.msra.mxu0 0.0
    %2195 = vmatprep.subr.mxu0 0.0
    %2196 = vmatpush2.msra.mxu0 0.0
    %2197 = vmatprep.subr.mxu0 0.0
    %2198 = vmatpush2.msra.mxu0 0.0
    %2199 = vmatprep.subr.mxu0 0.0
    %2200 = vmatpush2.msra.mxu0 0.0
    %2201 = vmatprep.subr.mxu0 0.0
    %2202 = vmatpush2.msra.mxu0 0.0
    %2203 = vmatprep.subr.mxu0 0.0
    %2204 = vmatpush2.msra.mxu0 0.0
    %2205 = vmatprep.subr.mxu0 0.0
    %2206 = vmatpush2.msra.mxu0 0.0
    %2207 = vmatprep.subr.mxu0 0.0
    %2208 = vmatpush2.msra.mxu0 0.0
    %2209 = vmatprep.subr.mxu0 0.0
    %2210 = vmatpush2.msra.mxu0 0.0
    %2211 = vmatprep.subr.mxu0 0.0
    %2212 = vmatpush2.msra.mxu0 0.0
    %2213 = vmatprep.subr.mxu0 0.0
    %2214 = vmatpush2.msra.mxu0 0.0
    %2215 = vmatprep.subr.mxu0 0.0
    %2216 = vmatpush2.msra.mxu0 0.0
    %2217 = vmatprep.mubr.f32.mxu0 0.0
    %2218 = vmatmul.mubr.f32.gmra.mxu0 %v2151
    %v2219 = vpop.f32.mrf.mxu0
    %v2220 = vadd.f32 0.0, %v2219
    %v2221 = vpop.f32.mrf.mxu0
    %2222 = vdwg.mxu0
    %v2223 = vadd.f32 %v2147, %v2220
    %v2224 = vxor.u32 %v2223, 2147483648
    %v2225 = vmul.f32 %v2224, 1.442695
    %v2226 = vpow.pop %v2225
    %v2227 = vadd.f32 %v2226, 1.0
    %v2228 = vrcp.pop %v2227
    %v2229 = vmul.f32 1.0, %v2228
    %v2230 = vtanh.pop %v2223
    %v2231 = vmul.f32 %v2229, %v2063
    %2233 = vrot.lane.b32.xlu0 %v2230, 32
    %v2234 = vpop.permute.xlu0 %2233
    %v2236 = vmul.f32 %v2229, %v2234
    %2238 = vrot.lane.b32.xlu0 %v2236, 32
    %v2239 = vpop.permute.xlu0 %2238
    %v2241 = vadd.f32 %v2231, %v2239
    %v2242 = vtanh.pop %v2241
    %2244 = vrot.lane.b32.xlu0 %v2242, 32
    %v2245 = vpop.permute.xlu0 %2244
    %v2247 = vmul.f32 %v2229, %v2245
    %vm2248 = vcmp.eq.s32.totalorder %v122, 1
    %v2249 = vsel %vm2248, %v2247, %v2071
    %v2250 = vld [vmem:[%s1478] sm:$0xff]
    %v2252 = vsel %vm521, %v2250, 0
    %2254 = vmatprep.subr.mxu0 0.0
    %2255 = vmatpush1.msra.mxu0 0.0
    %2256 = vmatprep.subr.mxu0 0.0
    %2257 = vmatpush1.msra.mxu0 0.0
    %2258 = vmatprep.subr.mxu0 0.0
    %2259 = vmatpush1.msra.mxu0 0.0
    %2260 = vmatprep.subr.mxu0 0.0
    %2261 = vmatpush1.msra.mxu0 0.0
    %2262 = vmatprep.subr.mxu0 0.0
    %2263 = vmatpush1.msra.mxu0 0.0
    %2264 = vmatprep.subr.mxu0 0.0
    %2265 = vmatpush1.msra.mxu0 0.0
    %2266 = vmatprep.subr.mxu0 0.0
    %2267 = vmatpush1.msra.mxu0 0.0
    %2268 = vmatprep.subr.mxu0 0.0
    %2269 = vmatpush1.msra.mxu0 0.0
    %2270 = vmatprep.subr.mxu0 0.0
    %2271 = vmatpush1.msra.mxu0 0.0
    %2272 = vmatprep.subr.mxu0 0.0
    %2273 = vmatpush1.msra.mxu0 0.0
    %2274 = vmatprep.subr.mxu0 0.0
    %2275 = vmatpush1.msra.mxu0 0.0
    %2276 = vmatprep.subr.mxu0 0.0
    %2277 = vmatpush1.msra.mxu0 0.0
    %2278 = vmatprep.subr.mxu0 0.0
    %2279 = vmatpush1.msra.mxu0 %v1587
    %2280 = vmatprep.subr.mxu0 0.0
    %2281 = vmatpush1.msra.mxu0 %v1586
    %2282 = vmatprep.subr.mxu0 0.0
    %2283 = vmatpush1.msra.mxu0 %v1585
    %2284 = vmatprep.subr.mxu0 0.0
    %2285 = vmatpush1.msra.mxu0 %v1584
    %2286 = vmatprep.subr.mxu0 0.0
    %2287 = vmatpush2.msra.mxu0 0.0
    %2288 = vmatprep.subr.mxu0 0.0
    %2289 = vmatpush2.msra.mxu0 0.0
    %2290 = vmatprep.subr.mxu0 0.0
    %2291 = vmatpush2.msra.mxu0 0.0
    %2292 = vmatprep.subr.mxu0 0.0
    %2293 = vmatpush2.msra.mxu0 0.0
    %2294 = vmatprep.subr.mxu0 0.0
    %2295 = vmatpush2.msra.mxu0 0.0
    %2296 = vmatprep.subr.mxu0 0.0
    %2297 = vmatpush2.msra.mxu0 0.0
    %2298 = vmatprep.subr.mxu0 0.0
    %2299 = vmatpush2.msra.mxu0 0.0
    %2300 = vmatprep.subr.mxu0 0.0
    %2301 = vmatpush2.msra.mxu0 0.0
    %2302 = vmatprep.subr.mxu0 0.0
    %2303 = vmatpush2.msra.mxu0 0.0
    %2304 = vmatprep.subr.mxu0 0.0
    %2305 = vmatpush2.msra.mxu0 0.0
    %2306 = vmatprep.subr.mxu0 0.0
    %2307 = vmatpush2.msra.mxu0 0.0
    %2308 = vmatprep.subr.mxu0 0.0
    %2309 = vmatpush2.msra.mxu0 0.0
    %2310 = vmatprep.subr.mxu0 0.0
    %2311 = vmatpush2.msra.mxu0 0.0
    %2312 = vmatprep.subr.mxu0 0.0
    %2313 = vmatpush2.msra.mxu0 0.0
    %2314 = vmatprep.subr.mxu0 0.0
    %2315 = vmatpush2.msra.mxu0 0.0
    %2316 = vmatprep.subr.mxu0 0.0
    %2317 = vmatpush2.msra.mxu0 0.0
    %2318 = vmatprep.mubr.f32.mxu0 0.0
    %2319 = vmatmul.mubr.f32.gmra.mxu0 %v2252
    %v2320 = vpop.f32.mrf.mxu0
    %v2321 = vadd.f32 %v1598, %v2320
    %v2322 = vpop.f32.mrf.mxu0
    %2323 = vdwg.mxu0
    %2324 = vst [vmem:[%s881] sm:$0xff] %v2321
    %v2325 = vld [vmem:[%s364] sm:$0xff]
    %2327 = vrot.lane.b32.xlu0 %v2247, 64
    %v2328 = vpop.permute.xlu0 %2327
    %v2329 = vsel %vm521, %v2328, 0
    %2331 = vmatprep.subr.mxu0 0.0
    %2332 = vmatpush1.msra.mxu0 0.0
    %2333 = vmatprep.subr.mxu0 0.0
    %2334 = vmatpush1.msra.mxu0 0.0
    %2335 = vmatprep.subr.mxu0 0.0
    %2336 = vmatpush1.msra.mxu0 0.0
    %2337 = vmatprep.subr.mxu0 0.0
    %2338 = vmatpush1.msra.mxu0 0.0
    %2339 = vmatprep.subr.mxu0 0.0
    %2340 = vmatpush1.msra.mxu0 0.0
    %2341 = vmatprep.subr.mxu0 0.0
    %2342 = vmatpush1.msra.mxu0 0.0
    %2343 = vmatprep.subr.mxu0 0.0
    %2344 = vmatpush1.msra.mxu0 0.0
    %2345 = vmatprep.subr.mxu0 0.0
    %2346 = vmatpush1.msra.mxu0 0.0
    %2347 = vmatprep.subr.mxu0 0.0
    %2348 = vmatpush1.msra.mxu0 0.0
    %2349 = vmatprep.subr.mxu0 0.0
    %2350 = vmatpush1.msra.mxu0 0.0
    %2351 = vmatprep.subr.mxu0 0.0
    %2352 = vmatpush1.msra.mxu0 0.0
    %2353 = vmatprep.subr.mxu0 0.0
    %2354 = vmatpush1.msra.mxu0 0.0
    %2355 = vmatprep.subr.mxu0 0.0
    %2356 = vmatpush1.msra.mxu0 %v1591
    %2357 = vmatprep.subr.mxu0 0.0
    %2358 = vmatpush1.msra.mxu0 %v1590
    %2359 = vmatprep.subr.mxu0 0.0
    %2360 = vmatpush1.msra.mxu0 %v1589
    %2361 = vmatprep.subr.mxu0 0.0
    %2362 = vmatpush1.msra.mxu0 %v1588
    %2363 = vmatprep.subr.mxu0 0.0
    %2364 = vmatpush2.msra.mxu0 0.0
    %2365 = vmatprep.subr.mxu0 0.0
    %2366 = vmatpush2.msra.mxu0 0.0
    %2367 = vmatprep.subr.mxu0 0.0
    %2368 = vmatpush2.msra.mxu0 0.0
    %2369 = vmatprep.subr.mxu0 0.0
    %2370 = vmatpush2.msra.mxu0 0.0
    %2371 = vmatprep.subr.mxu0 0.0
    %2372 = vmatpush2.msra.mxu0 0.0
    %2373 = vmatprep.subr.mxu0 0.0
    %2374 = vmatpush2.msra.mxu0 0.0
    %2375 = vmatprep.subr.mxu0 0.0
    %2376 = vmatpush2.msra.mxu0 0.0
    %2377 = vmatprep.subr.mxu0 0.0
    %2378 = vmatpush2.msra.mxu0 0.0
    %2379 = vmatprep.subr.mxu0 0.0
    %2380 = vmatpush2.msra.mxu0 0.0
    %2381 = vmatprep.subr.mxu0 0.0
    %2382 = vmatpush2.msra.mxu0 0.0
    %2383 = vmatprep.subr.mxu0 0.0
    %2384 = vmatpush2.msra.mxu0 0.0
    %2385 = vmatprep.subr.mxu0 0.0
    %2386 = vmatpush2.msra.mxu0 0.0
    %2387 = vmatprep.subr.mxu0 0.0
    %2388 = vmatpush2.msra.mxu0 0.0
    %2389 = vmatprep.subr.mxu0 0.0
    %2390 = vmatpush2.msra.mxu0 0.0
    %2391 = vmatprep.subr.mxu0 0.0
    %2392 = vmatpush2.msra.mxu0 0.0
    %2393 = vmatprep.subr.mxu0 0.0
    %2394 = vmatpush2.msra.mxu0 0.0
    %2395 = vmatprep.mubr.f32.mxu0 0.0
    %2396 = vmatmul.mubr.f32.gmra.mxu0 %v2329
    %v2397 = vpop.f32.mrf.mxu0
    %v2398 = vadd.f32 0.0, %v2397
    %v2399 = vpop.f32.mrf.mxu0
    %2400 = vdwg.mxu0
    %v2401 = vadd.f32 %v2325, %v2398
    %v2402 = vxor.u32 %v2401, 2147483648
    %v2403 = vmul.f32 %v2402, 1.442695
    %v2404 = vpow.pop %v2403
    %v2405 = vadd.f32 %v2404, 1.0
    %v2406 = vrcp.pop %v2405
    %v2407 = vmul.f32 1.0, %v2406
    %v2408 = vtanh.pop %v2401
    %v2409 = vmul.f32 %v2407, %v2241
    %2411 = vrot.lane.b32.xlu0 %v2408, 32
    %v2412 = vpop.permute.xlu0 %2411
    %v2414 = vmul.f32 %v2407, %v2412
    %2416 = vrot.lane.b32.xlu0 %v2414, 32
    %v2417 = vpop.permute.xlu0 %2416
    %v2419 = vadd.f32 %v2409, %v2417
    %v2420 = vtanh.pop %v2419
    %2422 = vrot.lane.b32.xlu0 %v2420, 32
    %v2423 = vpop.permute.xlu0 %2422
    %v2425 = vmul.f32 %v2407, %v2423
    %vm2426 = vcmp.eq.s32.totalorder %v122, 2
    %v2427 = vsel %vm2426, %v2425, %v2249
    %v2428 = vld [vmem:[%s1582] sm:$0xff]
    %v2430 = vsel %vm521, %v2428, 0
    %2432 = vmatprep.subr.mxu0 0.0
    %2433 = vmatpush1.msra.mxu0 0.0
    %2434 = vmatprep.subr.mxu0 0.0
    %2435 = vmatpush1.msra.mxu0 0.0
    %2436 = vmatprep.subr.mxu0 0.0
    %2437 = vmatpush1.msra.mxu0 0.0
    %2438 = vmatprep.subr.mxu0 0.0
    %2439 = vmatpush1.msra.mxu0 0.0
    %2440 = vmatprep.subr.mxu0 0.0
    %2441 = vmatpush1.msra.mxu0 0.0
    %2442 = vmatprep.subr.mxu0 0.0
    %2443 = vmatpush1.msra.mxu0 0.0
    %2444 = vmatprep.subr.mxu0 0.0
    %2445 = vmatpush1.msra.mxu0 0.0
    %2446 = vmatprep.subr.mxu0 0.0
    %2447 = vmatpush1.msra.mxu0 0.0
    %2448 = vmatprep.subr.mxu0 0.0
    %2449 = vmatpush1.msra.mxu0 0.0
    %2450 = vmatprep.subr.mxu0 0.0
    %2451 = vmatpush1.msra.mxu0 0.0
    %2452 = vmatprep.subr.mxu0 0.0
    %2453 = vmatpush1.msra.mxu0 0.0
    %2454 = vmatprep.subr.mxu0 0.0
    %2455 = vmatpush1.msra.mxu0 0.0
    %2456 = vmatprep.subr.mxu0 0.0
    %2457 = vmatpush1.msra.mxu0 %v1587
    %2458 = vmatprep.subr.mxu0 0.0
    %2459 = vmatpush1.msra.mxu0 %v1586
    %2460 = vmatprep.subr.mxu0 0.0
    %2461 = vmatpush1.msra.mxu0 %v1585
    %2462 = vmatprep.subr.mxu0 0.0
    %2463 = vmatpush1.msra.mxu0 %v1584
    %2464 = vmatprep.subr.mxu0 0.0
    %2465 = vmatpush2.msra.mxu0 0.0
    %2466 = vmatprep.subr.mxu0 0.0
    %2467 = vmatpush2.msra.mxu0 0.0
    %2468 = vmatprep.subr.mxu0 0.0
    %2469 = vmatpush2.msra.mxu0 0.0
    %2470 = vmatprep.subr.mxu0 0.0
    %2471 = vmatpush2.msra.mxu0 0.0
    %2472 = vmatprep.subr.mxu0 0.0
    %2473 = vmatpush2.msra.mxu0 0.0
    %2474 = vmatprep.subr.mxu0 0.0
    %2475 = vmatpush2.msra.mxu0 0.0
    %2476 = vmatprep.subr.mxu0 0.0
    %2477 = vmatpush2.msra.mxu0 0.0
    %2478 = vmatprep.subr.mxu0 0.0
    %2479 = vmatpush2.msra.mxu0 0.0
    %2480 = vmatprep.subr.mxu0 0.0
    %2481 = vmatpush2.msra.mxu0 0.0
    %2482 = vmatprep.subr.mxu0 0.0
    %2483 = vmatpush2.msra.mxu0 0.0
    %2484 = vmatprep.subr.mxu0 0.0
    %2485 = vmatpush2.msra.mxu0 0.0
    %2486 = vmatprep.subr.mxu0 0.0
    %2487 = vmatpush2.msra.mxu0 0.0
    %2488 = vmatprep.subr.mxu0 0.0
    %2489 = vmatpush2.msra.mxu0 0.0
    %2490 = vmatprep.subr.mxu0 0.0
    %2491 = vmatpush2.msra.mxu0 0.0
    %2492 = vmatprep.subr.mxu0 0.0
    %2493 = vmatpush2.msra.mxu0 0.0
    %2494 = vmatprep.subr.mxu0 0.0
    %2495 = vmatpush2.msra.mxu0 0.0
    %2496 = vmatprep.mubr.f32.mxu0 0.0
    %2497 = vmatmul.mubr.f32.gmra.mxu0 %v2430
    %v2498 = vpop.f32.mrf.mxu0
    %v2499 = vadd.f32 %v1598, %v2498
    %v2500 = vpop.f32.mrf.mxu0
    %2501 = vdwg.mxu0
    %2502 = vst [vmem:[%s1062] sm:$0xff] %v2499
    %v2503 = vld [vmem:[%s441] sm:$0xff]
    %2505 = vrot.lane.b32.xlu0 %v2425, 64
    %v2506 = vpop.permute.xlu0 %2505
    %v2507 = vsel %vm521, %v2506, 0
    %2509 = vmatprep.subr.mxu0 0.0
    %2510 = vmatpush1.msra.mxu0 0.0
    %2511 = vmatprep.subr.mxu0 0.0
    %2512 = vmatpush1.msra.mxu0 0.0
    %2513 = vmatprep.subr.mxu0 0.0
    %2514 = vmatpush1.msra.mxu0 0.0
    %2515 = vmatprep.subr.mxu0 0.0
    %2516 = vmatpush1.msra.mxu0 0.0
    %2517 = vmatprep.subr.mxu0 0.0
    %2518 = vmatpush1.msra.mxu0 0.0
    %2519 = vmatprep.subr.mxu0 0.0
    %2520 = vmatpush1.msra.mxu0 0.0
    %2521 = vmatprep.subr.mxu0 0.0
    %2522 = vmatpush1.msra.mxu0 0.0
    %2523 = vmatprep.subr.mxu0 0.0
    %2524 = vmatpush1.msra.mxu0 0.0
    %2525 = vmatprep.subr.mxu0 0.0
    %2526 = vmatpush1.msra.mxu0 0.0
    %2527 = vmatprep.subr.mxu0 0.0
    %2528 = vmatpush1.msra.mxu0 0.0
    %2529 = vmatprep.subr.mxu0 0.0
    %2530 = vmatpush1.msra.mxu0 0.0
    %2531 = vmatprep.subr.mxu0 0.0
    %2532 = vmatpush1.msra.mxu0 0.0
    %2533 = vmatprep.subr.mxu0 0.0
    %2534 = vmatpush1.msra.mxu0 %v1591
    %2535 = vmatprep.subr.mxu0 0.0
    %2536 = vmatpush1.msra.mxu0 %v1590
    %2537 = vmatprep.subr.mxu0 0.0
    %2538 = vmatpush1.msra.mxu0 %v1589
    %2539 = vmatprep.subr.mxu0 0.0
    %2540 = vmatpush1.msra.mxu0 %v1588
    %2541 = vmatprep.subr.mxu0 0.0
    %2542 = vmatpush2.msra.mxu0 0.0
    %2543 = vmatprep.subr.mxu0 0.0
    %2544 = vmatpush2.msra.mxu0 0.0
    %2545 = vmatprep.subr.mxu0 0.0
    %2546 = vmatpush2.msra.mxu0 0.0
    %2547 = vmatprep.subr.mxu0 0.0
    %2548 = vmatpush2.msra.mxu0 0.0
    %2549 = vmatprep.subr.mxu0 0.0
    %2550 = vmatpush2.msra.mxu0 0.0
    %2551 = vmatprep.subr.mxu0 0.0
    %2552 = vmatpush2.msra.mxu0 0.0
    %2553 = vmatprep.subr.mxu0 0.0
    %2554 = vmatpush2.msra.mxu0 0.0
    %2555 = vmatprep.subr.mxu0 0.0
    %2556 = vmatpush2.msra.mxu0 0.0
    %2557 = vmatprep.subr.mxu0 0.0
    %2558 = vmatpush2.msra.mxu0 0.0
    %2559 = vmatprep.subr.mxu0 0.0
    %2560 = vmatpush2.msra.mxu0 0.0
    %2561 = vmatprep.subr.mxu0 0.0
    %2562 = vmatpush2.msra.mxu0 0.0
    %2563 = vmatprep.subr.mxu0 0.0
    %2564 = vmatpush2.msra.mxu0 0.0
    %2565 = vmatprep.subr.mxu0 0.0
    %2566 = vmatpush2.msra.mxu0 0.0
    %2567 = vmatprep.subr.mxu0 0.0
    %2568 = vmatpush2.msra.mxu0 0.0
    %2569 = vmatprep.subr.mxu0 0.0
    %2570 = vmatpush2.msra.mxu0 0.0
    %2571 = vmatprep.subr.mxu0 0.0
    %2572 = vmatpush2.msra.mxu0 0.0
    %2573 = vmatprep.mubr.f32.mxu0 0.0
    %2574 = vmatmul.mubr.f32.gmra.mxu0 %v2507
    %v2575 = vpop.f32.mrf.mxu0
    %v2576 = vadd.f32 0.0, %v2575
    %v2577 = vpop.f32.mrf.mxu0
    %2578 = vdwg.mxu0
    %v2579 = vadd.f32 %v2503, %v2576
    %v2580 = vxor.u32 %v2579, 2147483648
    %v2581 = vmul.f32 %v2580, 1.442695
    %v2582 = vpow.pop %v2581
    %v2583 = vadd.f32 %v2582, 1.0
    %v2584 = vrcp.pop %v2583
    %v2585 = vmul.f32 1.0, %v2584
    %v2586 = vtanh.pop %v2579
    %v2587 = vmul.f32 %v2585, %v2419
    %2589 = vrot.lane.b32.xlu0 %v2586, 32
    %v2590 = vpop.permute.xlu0 %2589
    %v2592 = vmul.f32 %v2585, %v2590
    %2594 = vrot.lane.b32.xlu0 %v2592, 32
    %v2595 = vpop.permute.xlu0 %2594
    %v2597 = vadd.f32 %v2587, %v2595
    %v2598 = vtanh.pop %v2597
    %2600 = vrot.lane.b32.xlu0 %v2598, 32
    %v2601 = vpop.permute.xlu0 %2600
    %v2603 = vmul.f32 %v2585, %v2601
    %vm2604 = vcmp.eq.s32.totalorder %v122, 3
    %v2605 = vsel %vm2604, %v2603, %v2427
    %v2606 = vld [vmem:[%s518] sm:$0xff]
    %2608 = vrot.lane.b32.xlu0 %v2603, 64
    %v2609 = vpop.permute.xlu0 %2608
    %v2610 = vsel %vm521, %v2609, 0
    %2612 = vmatprep.subr.mxu0 0.0
    %2613 = vmatpush1.msra.mxu0 0.0
    %2614 = vmatprep.subr.mxu0 0.0
    %2615 = vmatpush1.msra.mxu0 0.0
    %2616 = vmatprep.subr.mxu0 0.0
    %2617 = vmatpush1.msra.mxu0 0.0
    %2618 = vmatprep.subr.mxu0 0.0
    %2619 = vmatpush1.msra.mxu0 0.0
    %2620 = vmatprep.subr.mxu0 0.0
    %2621 = vmatpush1.msra.mxu0 0.0
    %2622 = vmatprep.subr.mxu0 0.0
    %2623 = vmatpush1.msra.mxu0 0.0
    %2624 = vmatprep.subr.mxu0 0.0
    %2625 = vmatpush1.msra.mxu0 0.0
    %2626 = vmatprep.subr.mxu0 0.0
    %2627 = vmatpush1.msra.mxu0 0.0
    %2628 = vmatprep.subr.mxu0 0.0
    %2629 = vmatpush1.msra.mxu0 0.0
    %2630 = vmatprep.subr.mxu0 0.0
    %2631 = vmatpush1.msra.mxu0 0.0
    %2632 = vmatprep.subr.mxu0 0.0
    %2633 = vmatpush1.msra.mxu0 0.0
    %2634 = vmatprep.subr.mxu0 0.0
    %2635 = vmatpush1.msra.mxu0 0.0
    %2636 = vmatprep.subr.mxu0 0.0
    %2637 = vmatpush1.msra.mxu0 %v1591
    %2638 = vmatprep.subr.mxu0 0.0
    %2639 = vmatpush1.msra.mxu0 %v1590
    %2640 = vmatprep.subr.mxu0 0.0
    %2641 = vmatpush1.msra.mxu0 %v1589
    %2642 = vmatprep.subr.mxu0 0.0
    %2643 = vmatpush1.msra.mxu0 %v1588
    %2644 = vmatprep.subr.mxu0 0.0
    %2645 = vmatpush2.msra.mxu0 0.0
    %2646 = vmatprep.subr.mxu0 0.0
    %2647 = vmatpush2.msra.mxu0 0.0
    %2648 = vmatprep.subr.mxu0 0.0
    %2649 = vmatpush2.msra.mxu0 0.0
    %2650 = vmatprep.subr.mxu0 0.0
    %2651 = vmatpush2.msra.mxu0 0.0
    %2652 = vmatprep.subr.mxu0 0.0
    %2653 = vmatpush2.msra.mxu0 0.0
    %2654 = vmatprep.subr.mxu0 0.0
    %2655 = vmatpush2.msra.mxu0 0.0
    %2656 = vmatprep.subr.mxu0 0.0
    %2657 = vmatpush2.msra.mxu0 0.0
    %2658 = vmatprep.subr.mxu0 0.0
    %2659 = vmatpush2.msra.mxu0 0.0
    %2660 = vmatprep.subr.mxu0 0.0
    %2661 = vmatpush2.msra.mxu0 0.0
    %2662 = vmatprep.subr.mxu0 0.0
    %2663 = vmatpush2.msra.mxu0 0.0
    %2664 = vmatprep.subr.mxu0 0.0
    %2665 = vmatpush2.msra.mxu0 0.0
    %2666 = vmatprep.subr.mxu0 0.0
    %2667 = vmatpush2.msra.mxu0 0.0
    %2668 = vmatprep.subr.mxu0 0.0
    %2669 = vmatpush2.msra.mxu0 0.0
    %2670 = vmatprep.subr.mxu0 0.0
    %2671 = vmatpush2.msra.mxu0 0.0
    %2672 = vmatprep.subr.mxu0 0.0
    %2673 = vmatpush2.msra.mxu0 0.0
    %2674 = vmatprep.subr.mxu0 0.0
    %2675 = vmatpush2.msra.mxu0 0.0
    %2676 = vmatprep.mubr.f32.mxu0 0.0
    %2677 = vmatmul.mubr.f32.gmra.mxu0 %v2610
    %v2678 = vpop.f32.mrf.mxu0
    %v2679 = vadd.f32 0.0, %v2678
    %v2680 = vpop.f32.mrf.mxu0
    %2681 = vdwg.mxu0
    %v2682 = vadd.f32 %v2606, %v2679
    %v2683 = vxor.u32 %v2682, 2147483648
    %v2684 = vmul.f32 %v2683, 1.442695
    %v2685 = vpow.pop %v2684
    %v2686 = vadd.f32 %v2685, 1.0
    %v2687 = vrcp.pop %v2686
    %v2688 = vmul.f32 1.0, %v2687
    %v2689 = vtanh.pop %v2682
    %v2690 = vmul.f32 %v2688, %v2597
    %2692 = vrot.lane.b32.xlu0 %v2689, 32
    %v2693 = vpop.permute.xlu0 %2692
    %v2695 = vmul.f32 %v2688, %v2693
    %2697 = vrot.lane.b32.xlu0 %v2695, 32
    %v2698 = vpop.permute.xlu0 %2697
    %v2700 = vadd.f32 %v2690, %v2698
    %v2701 = vtanh.pop %v2700
    %2703 = vrot.lane.b32.xlu0 %v2701, 32
    %v2704 = vpop.permute.xlu0 %2703
    %v2706 = vmul.f32 %v2688, %v2704
    %vm2707 = vcmp.eq.s32.totalorder %v122, 4
    %v2708 = vsel %vm2707, %v2706, %v2605
    %v2709 = vld [vmem:[%s700] sm:$0xff]
    %2711 = vrot.lane.b32.xlu0 %v2706, 64
    %v2712 = vpop.permute.xlu0 %2711
    %v2713 = vsel %vm521, %v2712, 0
    %2715 = vmatprep.subr.mxu0 0.0
    %2716 = vmatpush1.msra.mxu0 0.0
    %2717 = vmatprep.subr.mxu0 0.0
    %2718 = vmatpush1.msra.mxu0 0.0
    %2719 = vmatprep.subr.mxu0 0.0
    %2720 = vmatpush1.msra.mxu0 0.0
    %2721 = vmatprep.subr.mxu0 0.0
    %2722 = vmatpush1.msra.mxu0 0.0
    %2723 = vmatprep.subr.mxu0 0.0
    %2724 = vmatpush1.msra.mxu0 0.0
    %2725 = vmatprep.subr.mxu0 0.0
    %2726 = vmatpush1.msra.mxu0 0.0
    %2727 = vmatprep.subr.mxu0 0.0
    %2728 = vmatpush1.msra.mxu0 0.0
    %2729 = vmatprep.subr.mxu0 0.0
    %2730 = vmatpush1.msra.mxu0 0.0
    %2731 = vmatprep.subr.mxu0 0.0
    %2732 = vmatpush1.msra.mxu0 0.0
    %2733 = vmatprep.subr.mxu0 0.0
    %2734 = vmatpush1.msra.mxu0 0.0
    %2735 = vmatprep.subr.mxu0 0.0
    %2736 = vmatpush1.msra.mxu0 0.0
    %2737 = vmatprep.subr.mxu0 0.0
    %2738 = vmatpush1.msra.mxu0 0.0
    %2739 = vmatprep.subr.mxu0 0.0
    %2740 = vmatpush1.msra.mxu0 %v1591
    %2741 = vmatprep.subr.mxu0 0.0
    %2742 = vmatpush1.msra.mxu0 %v1590
    %2743 = vmatprep.subr.mxu0 0.0
    %2744 = vmatpush1.msra.mxu0 %v1589
    %2745 = vmatprep.subr.mxu0 0.0
    %2746 = vmatpush1.msra.mxu0 %v1588
    %2747 = vmatprep.subr.mxu0 0.0
    %2748 = vmatpush2.msra.mxu0 0.0
    %2749 = vmatprep.subr.mxu0 0.0
    %2750 = vmatpush2.msra.mxu0 0.0
    %2751 = vmatprep.subr.mxu0 0.0
    %2752 = vmatpush2.msra.mxu0 0.0
    %2753 = vmatprep.subr.mxu0 0.0
    %2754 = vmatpush2.msra.mxu0 0.0
    %2755 = vmatprep.subr.mxu0 0.0
    %2756 = vmatpush2.msra.mxu0 0.0
    %2757 = vmatprep.subr.mxu0 0.0
    %2758 = vmatpush2.msra.mxu0 0.0
    %2759 = vmatprep.subr.mxu0 0.0
    %2760 = vmatpush2.msra.mxu0 0.0
    %2761 = vmatprep.subr.mxu0 0.0
    %2762 = vmatpush2.msra.mxu0 0.0
    %2763 = vmatprep.subr.mxu0 0.0
    %2764 = vmatpush2.msra.mxu0 0.0
    %2765 = vmatprep.subr.mxu0 0.0
    %2766 = vmatpush2.msra.mxu0 0.0
    %2767 = vmatprep.subr.mxu0 0.0
    %2768 = vmatpush2.msra.mxu0 0.0
    %2769 = vmatprep.subr.mxu0 0.0
    %2770 = vmatpush2.msra.mxu0 0.0
    %2771 = vmatprep.subr.mxu0 0.0
    %2772 = vmatpush2.msra.mxu0 0.0
    %2773 = vmatprep.subr.mxu0 0.0
    %2774 = vmatpush2.msra.mxu0 0.0
    %2775 = vmatprep.subr.mxu0 0.0
    %2776 = vmatpush2.msra.mxu0 0.0
    %2777 = vmatprep.subr.mxu0 0.0
    %2778 = vmatpush2.msra.mxu0 0.0
    %2779 = vmatprep.mubr.f32.mxu0 0.0
    %2780 = vmatmul.mubr.f32.gmra.mxu0 %v2713
    %v2781 = vpop.f32.mrf.mxu0
    %v2782 = vadd.f32 0.0, %v2781
    %v2783 = vpop.f32.mrf.mxu0
    %2784 = vdwg.mxu0
    %v2785 = vadd.f32 %v2709, %v2782
    %v2786 = vxor.u32 %v2785, 2147483648
    %v2787 = vmul.f32 %v2786, 1.442695
    %v2788 = vpow.pop %v2787
    %v2789 = vadd.f32 %v2788, 1.0
    %v2790 = vrcp.pop %v2789
    %v2791 = vmul.f32 1.0, %v2790
    %v2792 = vtanh.pop %v2785
    %v2793 = vmul.f32 %v2791, %v2700
    %2795 = vrot.lane.b32.xlu0 %v2792, 32
    %v2796 = vpop.permute.xlu0 %2795
    %v2798 = vmul.f32 %v2791, %v2796
    %2800 = vrot.lane.b32.xlu0 %v2798, 32
    %v2801 = vpop.permute.xlu0 %2800
    %v2803 = vadd.f32 %v2793, %v2801
    %v2804 = vtanh.pop %v2803
    %2806 = vrot.lane.b32.xlu0 %v2804, 32
    %v2807 = vpop.permute.xlu0 %2806
    %v2809 = vmul.f32 %v2791, %v2807
    %vm2810 = vcmp.eq.s32.totalorder %v122, 5
    %v2811 = vsel %vm2810, %v2809, %v2708
    %v2812 = vld [vmem:[%s881] sm:$0xff]
    %2814 = vrot.lane.b32.xlu0 %v2809, 64
    %v2815 = vpop.permute.xlu0 %2814
    %v2816 = vsel %vm521, %v2815, 0
    %2818 = vmatprep.subr.mxu0 0.0
    %2819 = vmatpush1.msra.mxu0 0.0
    %2820 = vmatprep.subr.mxu0 0.0
    %2821 = vmatpush1.msra.mxu0 0.0
    %2822 = vmatprep.subr.mxu0 0.0
    %2823 = vmatpush1.msra.mxu0 0.0
    %2824 = vmatprep.subr.mxu0 0.0
    %2825 = vmatpush1.msra.mxu0 0.0
    %2826 = vmatprep.subr.mxu0 0.0
    %2827 = vmatpush1.msra.mxu0 0.0
    %2828 = vmatprep.subr.mxu0 0.0
    %2829 = vmatpush1.msra.mxu0 0.0
    %2830 = vmatprep.subr.mxu0 0.0
    %2831 = vmatpush1.msra.mxu0 0.0
    %2832 = vmatprep.subr.mxu0 0.0
    %2833 = vmatpush1.msra.mxu0 0.0
    %2834 = vmatprep.subr.mxu0 0.0
    %2835 = vmatpush1.msra.mxu0 0.0
    %2836 = vmatprep.subr.mxu0 0.0
    %2837 = vmatpush1.msra.mxu0 0.0
    %2838 = vmatprep.subr.mxu0 0.0
    %2839 = vmatpush1.msra.mxu0 0.0
    %2840 = vmatprep.subr.mxu0 0.0
    %2841 = vmatpush1.msra.mxu0 0.0
    %2842 = vmatprep.subr.mxu0 0.0
    %2843 = vmatpush1.msra.mxu0 %v1591
    %2844 = vmatprep.subr.mxu0 0.0
    %2845 = vmatpush1.msra.mxu0 %v1590
    %2846 = vmatprep.subr.mxu0 0.0
    %2847 = vmatpush1.msra.mxu0 %v1589
    %2848 = vmatprep.subr.mxu0 0.0
    %2849 = vmatpush1.msra.mxu0 %v1588
    %2850 = vmatprep.subr.mxu0 0.0
    %2851 = vmatpush2.msra.mxu0 0.0
    %2852 = vmatprep.subr.mxu0 0.0
    %2853 = vmatpush2.msra.mxu0 0.0
    %2854 = vmatprep.subr.mxu0 0.0
    %2855 = vmatpush2.msra.mxu0 0.0
    %2856 = vmatprep.subr.mxu0 0.0
    %2857 = vmatpush2.msra.mxu0 0.0
    %2858 = vmatprep.subr.mxu0 0.0
    %2859 = vmatpush2.msra.mxu0 0.0
    %2860 = vmatprep.subr.mxu0 0.0
    %2861 = vmatpush2.msra.mxu0 0.0
    %2862 = vmatprep.subr.mxu0 0.0
    %2863 = vmatpush2.msra.mxu0 0.0
    %2864 = vmatprep.subr.mxu0 0.0
    %2865 = vmatpush2.msra.mxu0 0.0
    %2866 = vmatprep.subr.mxu0 0.0
    %2867 = vmatpush2.msra.mxu0 0.0
    %2868 = vmatprep.subr.mxu0 0.0
    %2869 = vmatpush2.msra.mxu0 0.0
    %2870 = vmatprep.subr.mxu0 0.0
    %2871 = vmatpush2.msra.mxu0 0.0
    %2872 = vmatprep.subr.mxu0 0.0
    %2873 = vmatpush2.msra.mxu0 0.0
    %2874 = vmatprep.subr.mxu0 0.0
    %2875 = vmatpush2.msra.mxu0 0.0
    %2876 = vmatprep.subr.mxu0 0.0
    %2877 = vmatpush2.msra.mxu0 0.0
    %2878 = vmatprep.subr.mxu0 0.0
    %2879 = vmatpush2.msra.mxu0 0.0
    %2880 = vmatprep.subr.mxu0 0.0
    %2881 = vmatpush2.msra.mxu0 0.0
    %2882 = vmatprep.mubr.f32.mxu0 0.0
    %2883 = vmatmul.mubr.f32.gmra.mxu0 %v2816
    %v2884 = vpop.f32.mrf.mxu0
    %v2885 = vadd.f32 0.0, %v2884
    %v2886 = vpop.f32.mrf.mxu0
    %2887 = vdwg.mxu0
    %v2888 = vadd.f32 %v2812, %v2885
    %v2889 = vxor.u32 %v2888, 2147483648
    %v2890 = vmul.f32 %v2889, 1.442695
    %v2891 = vpow.pop %v2890
    %v2892 = vadd.f32 %v2891, 1.0
    %v2893 = vrcp.pop %v2892
    %v2894 = vmul.f32 1.0, %v2893
    %v2895 = vtanh.pop %v2888
    %v2896 = vmul.f32 %v2894, %v2803
    %2898 = vrot.lane.b32.xlu0 %v2895, 32
    %v2899 = vpop.permute.xlu0 %2898
    %v2901 = vmul.f32 %v2894, %v2899
    %2903 = vrot.lane.b32.xlu0 %v2901, 32
    %v2904 = vpop.permute.xlu0 %2903
    %v2906 = vadd.f32 %v2896, %v2904
    %v2907 = vtanh.pop %v2906
    %2909 = vrot.lane.b32.xlu0 %v2907, 32
    %v2910 = vpop.permute.xlu0 %2909
    %v2912 = vmul.f32 %v2894, %v2910
    %vm2913 = vcmp.eq.s32.totalorder %v122, 6
    %v2914 = vsel %vm2913, %v2912, %v2811
    %v2915 = vld [vmem:[%s1062] sm:$0xff]
    %2917 = vrot.lane.b32.xlu0 %v2912, 64
    %v2918 = vpop.permute.xlu0 %2917
    %v2919 = vsel %vm521, %v2918, 0
    %2921 = vmatprep.subr.mxu0 0.0
    %2922 = vmatpush1.msra.mxu0 0.0
    %2923 = vmatprep.subr.mxu0 0.0
    %2924 = vmatpush1.msra.mxu0 0.0
    %2925 = vmatprep.subr.mxu0 0.0
    %2926 = vmatpush1.msra.mxu0 0.0
    %2927 = vmatprep.subr.mxu0 0.0
    %2928 = vmatpush1.msra.mxu0 0.0
    %2929 = vmatprep.subr.mxu0 0.0
    %2930 = vmatpush1.msra.mxu0 0.0
    %2931 = vmatprep.subr.mxu0 0.0
    %2932 = vmatpush1.msra.mxu0 0.0
    %2933 = vmatprep.subr.mxu0 0.0
    %2934 = vmatpush1.msra.mxu0 0.0
    %2935 = vmatprep.subr.mxu0 0.0
    %2936 = vmatpush1.msra.mxu0 0.0
    %2937 = vmatprep.subr.mxu0 0.0
    %2938 = vmatpush1.msra.mxu0 0.0
    %2939 = vmatprep.subr.mxu0 0.0
    %2940 = vmatpush1.msra.mxu0 0.0
    %2941 = vmatprep.subr.mxu0 0.0
    %2942 = vmatpush1.msra.mxu0 0.0
    %2943 = vmatprep.subr.mxu0 0.0
    %2944 = vmatpush1.msra.mxu0 0.0
    %2945 = vmatprep.subr.mxu0 0.0
    %2946 = vmatpush1.msra.mxu0 %v1591
    %2947 = vmatprep.subr.mxu0 0.0
    %2948 = vmatpush1.msra.mxu0 %v1590
    %2949 = vmatprep.subr.mxu0 0.0
    %2950 = vmatpush1.msra.mxu0 %v1589
    %2951 = vmatprep.subr.mxu0 0.0
    %2952 = vmatpush1.msra.mxu0 %v1588
    %2953 = vmatprep.subr.mxu0 0.0
    %2954 = vmatpush2.msra.mxu0 0.0
    %2955 = vmatprep.subr.mxu0 0.0
    %2956 = vmatpush2.msra.mxu0 0.0
    %2957 = vmatprep.subr.mxu0 0.0
    %2958 = vmatpush2.msra.mxu0 0.0
    %2959 = vmatprep.subr.mxu0 0.0
    %2960 = vmatpush2.msra.mxu0 0.0
    %2961 = vmatprep.subr.mxu0 0.0
    %2962 = vmatpush2.msra.mxu0 0.0
    %2963 = vmatprep.subr.mxu0 0.0
    %2964 = vmatpush2.msra.mxu0 0.0
    %2965 = vmatprep.subr.mxu0 0.0
    %2966 = vmatpush2.msra.mxu0 0.0
    %2967 = vmatprep.subr.mxu0 0.0
    %2968 = vmatpush2.msra.mxu0 0.0
    %2969 = vmatprep.subr.mxu0 0.0
    %2970 = vmatpush2.msra.mxu0 0.0
    %2971 = vmatprep.subr.mxu0 0.0
    %2972 = vmatpush2.msra.mxu0 0.0
    %2973 = vmatprep.subr.mxu0 0.0
    %2974 = vmatpush2.msra.mxu0 0.0
    %2975 = vmatprep.subr.mxu0 0.0
    %2976 = vmatpush2.msra.mxu0 0.0
    %2977 = vmatprep.subr.mxu0 0.0
    %2978 = vmatpush2.msra.mxu0 0.0
    %2979 = vmatprep.subr.mxu0 0.0
    %2980 = vmatpush2.msra.mxu0 0.0
    %2981 = vmatprep.subr.mxu0 0.0
    %2982 = vmatpush2.msra.mxu0 0.0
    %2983 = vmatprep.subr.mxu0 0.0
    %2984 = vmatpush2.msra.mxu0 0.0
    %2985 = vmatprep.mubr.f32.mxu0 0.0
    %2986 = vmatmul.mubr.f32.gmra.mxu0 %v2919
    %v2987 = vpop.f32.mrf.mxu0
    %v2988 = vadd.f32 0.0, %v2987
    %v2989 = vpop.f32.mrf.mxu0
    %2990 = vdwg.mxu0
    %v2991 = vadd.f32 %v2915, %v2988
    %v2992 = vxor.u32 %v2991, 2147483648
    %v2993 = vmul.f32 %v2992, 1.442695
    %v2994 = vpow.pop %v2993
    %v2995 = vadd.f32 %v2994, 1.0
    %v2996 = vrcp.pop %v2995
    %v2997 = vmul.f32 1.0, %v2996
    %v2998 = vtanh.pop %v2991
    %v2999 = vmul.f32 %v2997, %v2906
    %3001 = vrot.lane.b32.xlu0 %v2998, 32
    %v3002 = vpop.permute.xlu0 %3001
    %v3004 = vmul.f32 %v2997, %v3002
    %3006 = vrot.lane.b32.xlu0 %v3004, 32
    %v3007 = vpop.permute.xlu0 %3006
    %v3009 = vadd.f32 %v2999, %v3007
    %v3010 = vtanh.pop %v3009
    %3012 = vrot.lane.b32.xlu0 %v3010, 32
    %v3013 = vpop.permute.xlu0 %3012
    %v3015 = vmul.f32 %v2997, %v3013
    %vm3016 = vcmp.eq.s32.totalorder %v122, 7
    %v3017 = vsel %vm3016, %v3015, %v2914
    %v3018 = vld [vmem:[#allocation13] sm:$0xff]
    %v3019 = vld [vmem:[#allocation13 + $0x8] sm:$0xff]
    %v3020 = vld [vmem:[#allocation13 + $0x10] sm:$0xff]
    %v3021 = vld [vmem:[#allocation13 + $0x18] sm:$0xff]
    %v3022 = vld [vmem:[%s9] sm:$0x1]
    %v3024 = vlaneseq
    %v3025 = vshrl.u32 %v3024, 7
    %v3026 = vsub.s32 0, %v3025
    %v3027 = vrot.slane %v3022, %v3026
    %3030 = vrot.lane.b32.xlu0 %v3017, 64
    %v3031 = vpop.permute.xlu0 %3030
    %v3032 = vsel %vm521, %v3031, 0
    %3034 = vmatprep.subr.mxu0 0.0
    %3035 = vmatpush1.msra.mxu0 0.0
    %3036 = vmatprep.subr.mxu0 0.0
    %3037 = vmatpush1.msra.mxu0 0.0
    %3038 = vmatprep.subr.mxu0 0.0
    %3039 = vmatpush1.msra.mxu0 0.0
    %3040 = vmatprep.subr.mxu0 0.0
    %3041 = vmatpush1.msra.mxu0 0.0
    %3042 = vmatprep.subr.mxu0 0.0
    %3043 = vmatpush1.msra.mxu0 0.0
    %3044 = vmatprep.subr.mxu0 0.0
    %3045 = vmatpush1.msra.mxu0 0.0
    %3046 = vmatprep.subr.mxu0 0.0
    %3047 = vmatpush1.msra.mxu0 0.0
    %3048 = vmatprep.subr.mxu0 0.0
    %3049 = vmatpush1.msra.mxu0 0.0
    %3050 = vmatprep.subr.mxu0 0.0
    %3051 = vmatpush1.msra.mxu0 0.0
    %3052 = vmatprep.subr.mxu0 0.0
    %3053 = vmatpush1.msra.mxu0 0.0
    %3054 = vmatprep.subr.mxu0 0.0
    %3055 = vmatpush1.msra.mxu0 0.0
    %3056 = vmatprep.subr.mxu0 0.0
    %3057 = vmatpush1.msra.mxu0 0.0
    %3058 = vmatprep.subr.mxu0 0.0
    %3059 = vmatpush1.msra.mxu0 %v3021
    %3060 = vmatprep.subr.mxu0 0.0
    %3061 = vmatpush1.msra.mxu0 %v3020
    %3062 = vmatprep.subr.mxu0 0.0
    %3063 = vmatpush1.msra.mxu0 %v3019
    %3064 = vmatprep.subr.mxu0 0.0
    %3065 = vmatpush1.msra.mxu0 %v3018
    %3066 = vmatprep.subr.mxu0 0.0
    %3067 = vmatpush2.msra.mxu0 0.0
    %3068 = vmatprep.subr.mxu0 0.0
    %3069 = vmatpush2.msra.mxu0 0.0
    %3070 = vmatprep.subr.mxu0 0.0
    %3071 = vmatpush2.msra.mxu0 0.0
    %3072 = vmatprep.subr.mxu0 0.0
    %3073 = vmatpush2.msra.mxu0 0.0
    %3074 = vmatprep.subr.mxu0 0.0
    %3075 = vmatpush2.msra.mxu0 0.0
    %3076 = vmatprep.subr.mxu0 0.0
    %3077 = vmatpush2.msra.mxu0 0.0
    %3078 = vmatprep.subr.mxu0 0.0
    %3079 = vmatpush2.msra.mxu0 0.0
    %3080 = vmatprep.subr.mxu0 0.0
    %3081 = vmatpush2.msra.mxu0 0.0
    %3082 = vmatprep.subr.mxu0 0.0
    %3083 = vmatpush2.msra.mxu0 0.0
    %3084 = vmatprep.subr.mxu0 0.0
    %3085 = vmatpush2.msra.mxu0 0.0
    %3086 = vmatprep.subr.mxu0 0.0
    %3087 = vmatpush2.msra.mxu0 0.0
    %3088 = vmatprep.subr.mxu0 0.0
    %3089 = vmatpush2.msra.mxu0 0.0
    %3090 = vmatprep.subr.mxu0 0.0
    %3091 = vmatpush2.msra.mxu0 0.0
    %3092 = vmatprep.subr.mxu0 0.0
    %3093 = vmatpush2.msra.mxu0 0.0
    %3094 = vmatprep.subr.mxu0 0.0
    %3095 = vmatpush2.msra.mxu0 0.0
    %3096 = vmatprep.subr.mxu0 0.0
    %3097 = vmatpush2.msra.mxu0 0.0
    %3098 = vmatprep.mubr.f32.mxu0 0.0
    %3099 = vmatmul.mubr.f32.gmra.mxu0 %v3032
    %v3100 = vpop.f32.mrf.mxu0
    %v3101 = vadd.f32 %v3027, %v3100
    %v3102 = vpop.f32.mrf.mxu0
    %3103 = vdwg.mxu0
    %3104 = vst [vmem:[#allocation15] sm:$0xff] %v3101
    // Predicated region
    $region66: #{tpu_custom_call.1} parent=1 // pred_check
      _
    $region67: #{tpu_custom_call.1} parent=1 // pred_check_branch
      %3106 = sbr.rel (0) target = $region69
    $region68: #{tpu_custom_call.1} parent=1 // pred_region
      %s3108 = ssub.s32 128, 128
      %3109 = vsyncadd [#allocation6], %s3108
      %s3111 = sshll.u32 [#allocation15], 4
      %s3112 = int_to_ptr.vmem [resolvable:$true] %s3111
      %3114 = dma.vmem_to_hbm [thread:$0]  %s3112, 128, %s10, [#allocation6]
    $region69: #{tpu_custom_call.1} parent=1 // pred_fallthru
      _
    // Predicated region
    $region70: #{tpu_custom_call.1} parent=1 // pred_check
      _
    $region71: #{tpu_custom_call.1} parent=1 // pred_check_branch
      %3116 = sbr.rel (0) target = $region73
    $region72: #{tpu_custom_call.1} parent=1 // pred_region
      %3117 = dma.done [#allocation6], 128
    $region73: #{tpu_custom_call.1} parent=1 // pred_fallthru
      _
    %3118 = vsyncpa [#allocation5], 1
    %3119 = vsyncpa [#allocation8], 1
    %3120 = vsyncpa [#allocation11], 1
    %3121 = vsyncpa [#allocation14], 1
    %3122 = vsyncpa [#allocation6], 1

</llo_original>
